<compile_context>
chip_gen: v7x
topology: tpu7x:2x2x1
jax: 0.10.0
libtpu: 0.0.40
codegen_flags: <defaults>
</compile_context>

<pallas_src>
import jax
import jax.numpy as jnp
from jax import lax
from jax.experimental import pallas as pl
from jax.experimental.pallas import tpu as pltpu

BN_EPS = 1e-5
LANE = 128
SUBLANE = 8
POOL_SIZES = (1, 2, 3, 6)


def _round_up(x, m):
    return (x + m - 1) // m * m


# ---------------------------------------------------------------------------
# Pallas kernels: fused 1x1-conv (matmul) + BatchNorm(train) + ReLU, two passes
# ---------------------------------------------------------------------------

def _conv_stats_kernel(x_ref, w_ref, part_ref):
    """Pass 1: y = x @ w on the MXU; emit per-tile per-channel sum and sum-of-squares."""
    y = jnp.dot(x_ref[...], w_ref[...], preferred_element_type=jnp.float32)   # (TM, Coutp)
    s = jnp.sum(y, axis=0, keepdims=True)                                     # (1, Coutp)
    q = jnp.sum(y * y, axis=0, keepdims=True)                                 # (1, Coutp)
    pad = jnp.zeros((SUBLANE - 2, y.shape[1]), dtype=jnp.float32)
    part_ref[...] = jnp.concatenate([s, q, pad], axis=0)                      # (8, Coutp)


def _conv_affine_relu_kernel(x_ref, w_ref, scale_ref, shift_ref, o_ref):
    """Pass 2: y = x @ w; folded BatchNorm (one FMA) + ReLU; lane-dense store."""
    y = jnp.dot(x_ref[...], w_ref[...], preferred_element_type=jnp.float32)
    o_ref[...] = jnp.maximum(y * scale_ref[...] + shift_ref[...], 0.0)


def fused_conv1x1_bn_relu(x2d, w_mat, gamma, beta, *, tm_max=512):
    """Conv2d(k=1, bias=False) -> BatchNorm2d (train-mode batch stats) -> ReLU.

    x2d   : (M, K)  rows = N*H*W pixels (channels-last), K = in-channels.
    w_mat : (K, Cout);   gamma, beta : (Cout,).
    Returns (M, Cout) float32.
    """
    M, K = x2d.shape
    Cout = w_mat.shape[1]
    Coutp = _round_up(Cout, LANE)                     # lane-dense output / fill MXU width

    TM = tm_max if M >= tm_max else _round_up(max(M, SUBLANE), SUBLANE)
    Mpad = _round_up(M, TM)
    ntiles = Mpad // TM

    xpad = x2d.astype(jnp.float32)
    if Mpad != M:
        # zero rows give zero conv output -> contribute 0 to sum/sumsq; stats divide by true M
        xpad = jnp.pad(xpad, ((0, Mpad - M), (0, 0)))
    wpad = jnp.pad(w_mat.astype(jnp.float32), ((0, 0), (0, Coutp - Cout)))
    gpad = jnp.pad(gamma.astype(jnp.float32), (0, Coutp - Cout), constant_values=1.0)
    bpad = jnp.pad(beta.astype(jnp.float32), (0, Coutp - Cout))

    # VMEM budget: 2x double-buffered x tile + 2x output tile + resident weight + vectors.
    vmem_need = 4 * (2 * TM * K + 2 * TM * Coutp + K * Coutp + 8 * Coutp) + (2 << 20)
    vmem_limit = int(min(64 << 20, max(vmem_need, 16 << 20)))
    cparams = pltpu.CompilerParams(
        dimension_semantics=("parallel",),            # v7x: split M tiles across both TCs
        vmem_limit_bytes=vmem_limit,
    )

    # ---- pass 1: conv matmul + per-tile partial BN statistics --------------
    partial = pl.pallas_call(
        _conv_stats_kernel,
        out_shape=jax.ShapeDtypeStruct((ntiles * SUBLANE, Coutp), jnp.float32),
        grid=(ntiles,),
        in_specs=[
            pl.BlockSpec((TM, K), lambda i: (i, 0)),
            pl.BlockSpec((K, Coutp), lambda i: (0, 0)),
        ],
        out_specs=pl.BlockSpec((SUBLANE, Coutp), lambda i: (i, 0)),
        compiler_params=cparams,
        cost_estimate=pl.CostEstimate(
            flops=2 * Mpad * K * Coutp,
            transcendentals=0,
            bytes_accessed=int(4 * (Mpad * K + K * Coutp + ntiles * SUBLANE * Coutp)),
        ),
    )(xpad, wpad)

    # ---- tiny glue: finalize stats, fold BN into a single scale/shift ------
    stats = partial.reshape(ntiles, SUBLANE, Coutp)
    mean = jnp.sum(stats[:, 0, :], axis=0) / M                                  # (Coutp,)
    var = jnp.maximum(jnp.sum(stats[:, 1, :], axis=0) / M - mean * mean, 0.0)   # biased var
    inv = lax.rsqrt(var + BN_EPS)
    scale = (gpad * inv).reshape(1, Coutp)
    shift = (bpad - mean * gpad * inv).reshape(1, Coutp)

    # ---- pass 2: recompute conv, fused scale/shift (BN) + ReLU -------------
    out = pl.pallas_call(
        _conv_affine_relu_kernel,
        out_shape=jax.ShapeDtypeStruct((Mpad, Coutp), jnp.float32),
        grid=(ntiles,),
        in_specs=[
            pl.BlockSpec((TM, K), lambda i: (i, 0)),
            pl.BlockSpec((K, Coutp), lambda i: (0, 0)),
            pl.BlockSpec((1, Coutp), lambda i: (0, 0)),
            pl.BlockSpec((1, Coutp), lambda i: (0, 0)),
        ],
        out_specs=pl.BlockSpec((TM, Coutp), lambda i: (i, 0)),
        compiler_params=cparams,
        cost_estimate=pl.CostEstimate(
            flops=2 * Mpad * K * Coutp + 3 * Mpad * Coutp,
            transcendentals=0,
            bytes_accessed=int(4 * (Mpad * K + K * Coutp + 2 * Coutp + Mpad * Coutp)),
        ),
    )(xpad, wpad, scale, shift)

    return out[:M, :Cout]


# ---------------------------------------------------------------------------
# Glue: adaptive average pooling / bilinear (align_corners=True) as dense mats
# ---------------------------------------------------------------------------

def _adaptive_pool_matrix(out_size, in_size):
    """Averaging matrix matching F.adaptive_avg_pool2d region boundaries."""
    rows = []
    for i in range(out_size):
        start = (i * in_size) // out_size
        end = -((-(i + 1) * in_size) // out_size)       # ceil((i+1)*in/out)
        rows.append(jnp.zeros((in_size,), jnp.float32).at[start:end].set(1.0 / (end - start)))
    return jnp.stack(rows, axis=0)                       # (out_size, in_size)


def _upsample_matrix(out_size, in_size):
    """Bilinear interpolation matrix, align_corners=True (matches F.interpolate)."""
    if in_size == 1:
        return jnp.ones((out_size, 1), jnp.float32)
    if out_size == 1:
        return jnp.zeros((1, in_size), jnp.float32).at[0, 0].set(1.0)
    src = jnp.arange(out_size, dtype=jnp.float32) * (in_size - 1) / (out_size - 1)
    i0 = jnp.clip(jnp.floor(src), 0, in_size - 2).astype(jnp.int32)
    frac = src - i0.astype(jnp.float32)
    rows = jnp.arange(out_size)
    m = jnp.zeros((out_size, in_size), jnp.float32)
    m = m.at[rows, i0].add(1.0 - frac)
    m = m.at[rows, i0 + 1].add(frac)
    return m


# ---------------------------------------------------------------------------
# PyramidPooling forward
# ---------------------------------------------------------------------------

def pyramid_pooling_forward(x_nchw, params):
    """x_nchw: (N, Cin, H, W) float32 -> (N, Cout, H, W) float32."""
    N, Cin, H, W = x_nchw.shape
    x = jnp.transpose(x_nchw, (0, 2, 3, 1)).astype(jnp.float32)        # NHWC: channels on lanes
    feats = [x]
    for size, (w, gamma, beta) in zip(POOL_SIZES, params["branches"]):
        hidden = w.shape[0]
        ph = _adaptive_pool_matrix(size, H)
        pw = _adaptive_pool_matrix(size, W)
        pooled = jnp.einsum("ah,nhwc,bw->nabc", ph, x, pw)             # adaptive avg pool
        conv = fused_conv1x1_bn_relu(
            pooled.reshape(N * size * size, Cin),
            jnp.transpose(w.reshape(hidden, Cin)), gamma, beta,
        ).reshape(N, size, size, hidden)
        bh = _upsample_matrix(H, size)
        bw = _upsample_matrix(W, size)
        # TODO(synk): the bilinear upsample + concat could be folded into the final Pallas
        # kernel (interpolation commutes with the 1x1 conv) to avoid materializing the
        # upsampled branch maps in HBM; kept as XLA glue here.
        feats.append(jnp.einsum("ha,nabc,wb->nhwc", bh, conv, bw))     # bilinear, align_corners
    cat = jnp.concatenate(feats, axis=-1)                              # (N, H, W, 2*Cin)
    w_out, g_out, b_out = params["out"]
    cout = w_out.shape[0]
    y = fused_conv1x1_bn_relu(
        cat.reshape(N * H * W, 2 * Cin),
        jnp.transpose(w_out.reshape(cout, 2 * Cin)), g_out, b_out,
    ).reshape(N, H, W, cout)
    # TODO(synk): BatchNorm running_mean/running_var buffer updates are omitted; they do not
    # affect the train-mode forward output.
    return jnp.transpose(y, (0, 3, 1, 2))


# ---------------------------------------------------------------------------
# Pure-JAX reference (mirrors the PyTorch module in NCHW) and parameter init
# ---------------------------------------------------------------------------

def _reference_pyramid_pooling(x_nchw, params):
    x = x_nchw.astype(jnp.float32)
    N, Cin, H, W = x.shape

    def cbr(z, w, gamma, beta):
        co = w.shape[0]
        y = jnp.einsum("oi,nihw->nohw", w.reshape(co, -1).astype(jnp.float32), z)
        mean = jnp.mean(y, axis=(0, 2, 3), keepdims=True)
        var = jnp.mean((y - mean) ** 2, axis=(0, 2, 3), keepdims=True)
        y = (y - mean) * lax.rsqrt(var + BN_EPS)
        y = y * gamma.reshape(1, -1, 1, 1) + beta.reshape(1, -1, 1, 1)
        return jnp.maximum(y, 0.0)

    feats = [x]
    for size, (w, gamma, beta) in zip(POOL_SIZES, params["branches"]):
        ph = _adaptive_pool_matrix(size, H)
        pw = _adaptive_pool_matrix(size, W)
        pooled = jnp.einsum("ah,nchw,bw->ncab", ph, x, pw)
        conv = cbr(pooled, w, gamma, beta)
        bh = _upsample_matrix(H, size)
        bw = _upsample_matrix(W, size)
        feats.append(jnp.einsum("ha,ncab,wb->nchw", bh, conv, bw))
    cat = jnp.concatenate(feats, axis=1)
    w_out, g_out, b_out = params["out"]
    return cbr(cat, w_out, g_out, b_out)


def make_params(key, in_channel, out_channel):
    """Deterministic synthetic parameters (PyTorch layout: Conv2d weight (Co, Ci, 1, 1))."""
    hidden = in_channel // 4
    keys = jax.random.split(key, 15)
    branches = []
    for i in range(4):
        w = 0.1 * jax.random.normal(keys[3 * i], (hidden, in_channel, 1, 1), jnp.float32)
        gamma = 1.0 + 0.1 * jax.random.normal(keys[3 * i + 1], (hidden,), jnp.float32)
        beta = 0.1 * jax.random.normal(keys[3 * i + 2], (hidden,), jnp.float32)
        branches.append((w, gamma, beta))
    w_out = 0.1 * jax.random.normal(keys[12], (out_channel, 2 * in_channel, 1, 1), jnp.float32)
    g_out = 1.0 + 0.1 * jax.random.normal(keys[13], (out_channel,), jnp.float32)
    b_out = 0.1 * jax.random.normal(keys[14], (out_channel,), jnp.float32)
    return {"branches": branches, "out": (w_out, g_out, b_out)}


if __name__ == "__main__":
    key = jax.random.PRNGKey(0)
    k_x, k_p = jax.random.split(key)

    N, Cin, Cout, H, W = 2, 4, 8, 16, 16
    x = jax.random.normal(k_x, (N, Cin, H, W), dtype=jnp.float32)
    params = make_params(k_p, Cin, Cout)

    fwd = jax.jit(pyramid_pooling_forward)
    out = jax.block_until_ready(fwd(x, params))

    ref = jax.block_until_ready(_reference_pyramid_pooling(x, params))
    assert out.shape == (N, Cout, H, W), out.shape
    max_err = float(jnp.max(jnp.abs(out - ref)))
    assert jnp.allclose(out, ref, atol=5e-4, rtol=5e-4), max_err

    print("KERNEL_OK")
</pallas_src>

<mosaic_0001>
module attributes {stable_mosaic.version = 11 : i64} {
  func.func private @main(%arg0: i32) attributes {dimension_semantics = [#tpu.dimension_semantics<core_parallel>], iteration_bounds = array<i64: 2>, tpu.core_type = #tpu.core_type<sc_scalar_subcore>, window_params = []} {
    return
  }
}

module attributes {stable_mosaic.version = 11 : i64} {
  func.func private @main(%arg0: i32) attributes {dimension_semantics = [#tpu.dimension_semantics<core_parallel>], iteration_bounds = array<i64: 2>, tpu.core_type = #tpu.core_type<sc_scalar_subcore>, window_params = []} {
    return
  }
}

module attributes {stable_mosaic.version = 11 : i64} {
  func.func @_conv_stats_kernel(%arg0: i32, %arg1: memref<8x4xf32, #tpu.memory_space<vmem>>, %arg2: memref<4x128xf32, #tpu.memory_space<vmem>>, %arg3: memref<8x128xf32, #tpu.memory_space<vmem>>) attributes {dimension_semantics = [#tpu.dimension_semantics<parallel>], iteration_bounds = array<i64: 1>, scalar_prefetch = 0 : i64, scratch_operands = 0 : i64, tpu.core_type = #tpu.core_type<tc>, window_params = [{transform_indices = @transform_0, window_bounds = array<i64: 8, 4>}, {pipeline_mode = #tpu.pipeline_mode<synchronous>, transform_indices = @transform_1, window_bounds = array<i64: 4, 128>}, {transform_indices = @transform_2, window_bounds = array<i64: 8, 128>}]} {
    %c0 = arith.constant 0 : index
    %c0_0 = arith.constant 0 : index
    %0 = vector.load %arg1[%c0, %c0_0] : memref<8x4xf32, #tpu.memory_space<vmem>>, vector<8x4xf32>
    %c0_1 = arith.constant 0 : index
    %c0_2 = arith.constant 0 : index
    %1 = vector.load %arg2[%c0_1, %c0_2] : memref<4x128xf32, #tpu.memory_space<vmem>>, vector<4x128xf32>
    %cst = arith.constant dense<0.000000e+00> : vector<8x128xf32>
    %2 = tpu.matmul %0, %1, %cst {dimension_numbers = #tpu.dot_dimension_numbers<[1], [0], [0], [1], [0, 0, 1, 1], [], []>} : vector<8x4xf32>, vector<4x128xf32>, vector<8x128xf32> -> vector<8x128xf32>
    %cst_3 = arith.constant dense<0.000000e+00> : vector<128xf32>
    %3 = vector.multi_reduction <add>, %2, %cst_3 [0] : vector<8x128xf32> to vector<128xf32>
    %4 = vector.shape_cast %3 : vector<128xf32> to vector<1x128xf32>
    %5 = arith.mulf %2, %2 : vector<8x128xf32>
    %cst_4 = arith.constant dense<0.000000e+00> : vector<128xf32>
    %6 = vector.multi_reduction <add>, %5, %cst_4 [0] : vector<8x128xf32> to vector<128xf32>
    %7 = vector.shape_cast %6 : vector<128xf32> to vector<1x128xf32>
    %cst_5 = arith.constant 0.000000e+00 : f32
    %8 = vector.broadcast %cst_5 : f32 to vector<6x128xf32>
    %9 = tpu.concatenate %4, %7, %8 in 0 : vector<1x128xf32>, vector<1x128xf32>, vector<6x128xf32> -> vector<8x128xf32>
    %c0_6 = arith.constant 0 : index
    %c0_7 = arith.constant 0 : index
    %10 = vector.load %arg3[%c0_6, %c0_7] : memref<8x128xf32, #tpu.memory_space<vmem>>, vector<8x128xf32>
    tpu.vector_store %arg3[%c0_6, %c0_7], %9 {strides = array<i32>} : memref<8x128xf32, #tpu.memory_space<vmem>>, vector<8x128xf32>,
    return
  }
  func.func @transform_0(%arg0: i32) -> (i32, i32) {
    %c0_i32 = arith.constant 0 : i32
    %c0_i32_0 = arith.constant 0 : i32
    return %arg0, %c0_i32 : i32, i32
  }
  func.func @transform_1(%arg0: i32) -> (i32, i32) {
    %c0_i32 = arith.constant 0 : i32
    %c0_i32_0 = arith.constant 0 : i32
    %c0_i32_1 = arith.constant 0 : i32
    return %c0_i32, %c0_i32_0 : i32, i32
  }
  func.func @transform_2(%arg0: i32) -> (i32, i32) {
    %c0_i32 = arith.constant 0 : i32
    %c0_i32_0 = arith.constant 0 : i32
    return %arg0, %c0_i32 : i32, i32
  }
}

module attributes {stable_mosaic.version = 11 : i64} {
  func.func @_conv_affine_relu_kernel(%arg0: i32, %arg1: memref<8x4xf32, #tpu.memory_space<vmem>>, %arg2: memref<4x128xf32, #tpu.memory_space<vmem>>, %arg3: memref<1x128xf32, #tpu.memory_space<vmem>>, %arg4: memref<1x128xf32, #tpu.memory_space<vmem>>, %arg5: memref<8x128xf32, #tpu.memory_space<vmem>>) attributes {dimension_semantics = [#tpu.dimension_semantics<parallel>], iteration_bounds = array<i64: 1>, scalar_prefetch = 0 : i64, scratch_operands = 0 : i64, tpu.core_type = #tpu.core_type<tc>, window_params = [{transform_indices = @transform_0, window_bounds = array<i64: 8, 4>}, {pipeline_mode = #tpu.pipeline_mode<synchronous>, transform_indices = @transform_1, window_bounds = array<i64: 4, 128>}, {pipeline_mode = #tpu.pipeline_mode<synchronous>, transform_indices = @transform_2, window_bounds = array<i64: 1, 128>}, {pipeline_mode = #tpu.pipeline_mode<synchronous>, transform_indices = @transform_3, window_bounds = array<i64: 1, 128>}, {transform_indices = @transform_4, window_bounds = array<i64: 8, 128>}]} {
    %c0 = arith.constant 0 : index
    %c0_0 = arith.constant 0 : index
    %0 = vector.load %arg1[%c0, %c0_0] : memref<8x4xf32, #tpu.memory_space<vmem>>, vector<8x4xf32>
    %c0_1 = arith.constant 0 : index
    %c0_2 = arith.constant 0 : index
    %1 = vector.load %arg2[%c0_1, %c0_2] : memref<4x128xf32, #tpu.memory_space<vmem>>, vector<4x128xf32>
    %cst = arith.constant dense<0.000000e+00> : vector<8x128xf32>
    %2 = tpu.matmul %0, %1, %cst {dimension_numbers = #tpu.dot_dimension_numbers<[1], [0], [0], [1], [0, 0, 1, 1], [], []>} : vector<8x4xf32>, vector<4x128xf32>, vector<8x128xf32> -> vector<8x128xf32>
    %c0_3 = arith.constant 0 : index
    %c0_4 = arith.constant 0 : index
    %3 = vector.load %arg3[%c0_3, %c0_4] : memref<1x128xf32, #tpu.memory_space<vmem>>, vector<1x128xf32>
    %4 = vector.broadcast %3 : vector<1x128xf32> to vector<8x128xf32>
    %5 = arith.mulf %2, %4 : vector<8x128xf32>
    %c0_5 = arith.constant 0 : index
    %c0_6 = arith.constant 0 : index
    %6 = vector.load %arg4[%c0_5, %c0_6] : memref<1x128xf32, #tpu.memory_space<vmem>>, vector<1x128xf32>
    %7 = vector.broadcast %6 : vector<1x128xf32> to vector<8x128xf32>
    %8 = arith.addf %5, %7 : vector<8x128xf32>
    %cst_7 = arith.constant 0.000000e+00 : f32
    %9 = vector.broadcast %cst_7 : f32 to vector<8x128xf32>
    %10 = arith.maximumf %8, %9 : vector<8x128xf32>
    %c0_8 = arith.constant 0 : index
    %c0_9 = arith.constant 0 : index
    %11 = vector.load %arg5[%c0_8, %c0_9] : memref<8x128xf32, #tpu.memory_space<vmem>>, vector<8x128xf32>
    tpu.vector_store %arg5[%c0_8, %c0_9], %10 {strides = array<i32>} : memref<8x128xf32, #tpu.memory_space<vmem>>, vector<8x128xf32>,
    return
  }
  func.func @transform_0(%arg0: i32) -> (i32, i32) {
    %c0_i32 = arith.constant 0 : i32
    %c0_i32_0 = arith.constant 0 : i32
    return %arg0, %c0_i32 : i32, i32
  }
  func.func @transform_1(%arg0: i32) -> (i32, i32) {
    %c0_i32 = arith.constant 0 : i32
    %c0_i32_0 = arith.constant 0 : i32
    %c0_i32_1 = arith.constant 0 : i32
    return %c0_i32, %c0_i32_0 : i32, i32
  }
  func.func @transform_2(%arg0: i32) -> (i32, i32) {
    %c0_i32 = arith.constant 0 : i32
    %c0_i32_0 = arith.constant 0 : i32
    %c0_i32_1 = arith.constant 0 : i32
    return %c0_i32, %c0_i32_0 : i32, i32
  }
  func.func @transform_3(%arg0: i32) -> (i32, i32) {
    %c0_i32 = arith.constant 0 : i32
    %c0_i32_0 = arith.constant 0 : i32
    %c0_i32_1 = arith.constant 0 : i32
    return %c0_i32, %c0_i32_0 : i32, i32
  }
  func.func @transform_4(%arg0: i32) -> (i32, i32) {
    %c0_i32 = arith.constant 0 : i32
    %c0_i32_0 = arith.constant 0 : i32
    return %arg0, %c0_i32 : i32, i32
  }
}

module attributes {stable_mosaic.version = 11 : i64} {
  func.func @_conv_stats_kernel(%arg0: i32, %arg1: memref<24x4xf32, #tpu.memory_space<vmem>>, %arg2: memref<4x128xf32, #tpu.memory_space<vmem>>, %arg3: memref<8x128xf32, #tpu.memory_space<vmem>>) attributes {dimension_semantics = [#tpu.dimension_semantics<parallel>], iteration_bounds = array<i64: 1>, scalar_prefetch = 0 : i64, scratch_operands = 0 : i64, tpu.core_type = #tpu.core_type<tc>, window_params = [{transform_indices = @transform_0, window_bounds = array<i64: 24, 4>}, {pipeline_mode = #tpu.pipeline_mode<synchronous>, transform_indices = @transform_1, window_bounds = array<i64: 4, 128>}, {transform_indices = @transform_2, window_bounds = array<i64: 8, 128>}]} {
    %c0 = arith.constant 0 : index
    %c0_0 = arith.constant 0 : index
    %0 = vector.load %arg1[%c0, %c0_0] : memref<24x4xf32, #tpu.memory_space<vmem>>, vector<24x4xf32>
    %c0_1 = arith.constant 0 : index
    %c0_2 = arith.constant 0 : index
    %1 = vector.load %arg2[%c0_1, %c0_2] : memref<4x128xf32, #tpu.memory_space<vmem>>, vector<4x128xf32>
    %cst = arith.constant dense<0.000000e+00> : vector<24x128xf32>
    %2 = tpu.matmul %0, %1, %cst {dimension_numbers = #tpu.dot_dimension_numbers<[1], [0], [0], [1], [0, 0, 1, 1], [], []>} : vector<24x4xf32>, vector<4x128xf32>, vector<24x128xf32> -> vector<24x128xf32>
    %cst_3 = arith.constant dense<0.000000e+00> : vector<128xf32>
    %3 = vector.multi_reduction <add>, %2, %cst_3 [0] : vector<24x128xf32> to vector<128xf32>
    %4 = vector.shape_cast %3 : vector<128xf32> to vector<1x128xf32>
    %5 = arith.mulf %2, %2 : vector<24x128xf32>
    %cst_4 = arith.constant dense<0.000000e+00> : vector<128xf32>
    %6 = vector.multi_reduction <add>, %5, %cst_4 [0] : vector<24x128xf32> to vector<128xf32>
    %7 = vector.shape_cast %6 : vector<128xf32> to vector<1x128xf32>
    %cst_5 = arith.constant 0.000000e+00 : f32
    %8 = vector.broadcast %cst_5 : f32 to vector<6x128xf32>
    %9 = tpu.concatenate %4, %7, %8 in 0 : vector<1x128xf32>, vector<1x128xf32>, vector<6x128xf32> -> vector<8x128xf32>
    %c0_6 = arith.constant 0 : index
    %c0_7 = arith.constant 0 : index
    %10 = vector.load %arg3[%c0_6, %c0_7] : memref<8x128xf32, #tpu.memory_space<vmem>>, vector<8x128xf32>
    tpu.vector_store %arg3[%c0_6, %c0_7], %9 {strides = array<i32>} : memref<8x128xf32, #tpu.memory_space<vmem>>, vector<8x128xf32>,
    return
  }
  func.func @transform_0(%arg0: i32) -> (i32, i32) {
    %c0_i32 = arith.constant 0 : i32
    %c0_i32_0 = arith.constant 0 : i32
    return %arg0, %c0_i32 : i32, i32
  }
  func.func @transform_1(%arg0: i32) -> (i32, i32) {
    %c0_i32 = arith.constant 0 : i32
    %c0_i32_0 = arith.constant 0 : i32
    %c0_i32_1 = arith.constant 0 : i32
    return %c0_i32, %c0_i32_0 : i32, i32
  }
  func.func @transform_2(%arg0: i32) -> (i32, i32) {
    %c0_i32 = arith.constant 0 : i32
    %c0_i32_0 = arith.constant 0 : i32
    return %arg0, %c0_i32 : i32, i32
  }
}

module attributes {stable_mosaic.version = 11 : i64} {
  func.func @_conv_affine_relu_kernel(%arg0: i32, %arg1: memref<24x4xf32, #tpu.memory_space<vmem>>, %arg2: memref<4x128xf32, #tpu.memory_space<vmem>>, %arg3: memref<1x128xf32, #tpu.memory_space<vmem>>, %arg4: memref<1x128xf32, #tpu.memory_space<vmem>>, %arg5: memref<24x128xf32, #tpu.memory_space<vmem>>) attributes {dimension_semantics = [#tpu.dimension_semantics<parallel>], iteration_bounds = array<i64: 1>, scalar_prefetch = 0 : i64, scratch_operands = 0 : i64, tpu.core_type = #tpu.core_type<tc>, window_params = [{transform_indices = @transform_0, window_bounds = array<i64: 24, 4>}, {pipeline_mode = #tpu.pipeline_mode<synchronous>, transform_indices = @transform_1, window_bounds = array<i64: 4, 128>}, {pipeline_mode = #tpu.pipeline_mode<synchronous>, transform_indices = @transform_2, window_bounds = array<i64: 1, 128>}, {pipeline_mode = #tpu.pipeline_mode<synchronous>, transform_indices = @transform_3, window_bounds = array<i64: 1, 128>}, {transform_indices = @transform_4, window_bounds = array<i64: 24, 128>}]} {
    %c0 = arith.constant 0 : index
    %c0_0 = arith.constant 0 : index
    %0 = vector.load %arg1[%c0, %c0_0] : memref<24x4xf32, #tpu.memory_space<vmem>>, vector<24x4xf32>
    %c0_1 = arith.constant 0 : index
    %c0_2 = arith.constant 0 : index
    %1 = vector.load %arg2[%c0_1, %c0_2] : memref<4x128xf32, #tpu.memory_space<vmem>>, vector<4x128xf32>
    %cst = arith.constant dense<0.000000e+00> : vector<24x128xf32>
    %2 = tpu.matmul %0, %1, %cst {dimension_numbers = #tpu.dot_dimension_numbers<[1], [0], [0], [1], [0, 0, 1, 1], [], []>} : vector<24x4xf32>, vector<4x128xf32>, vector<24x128xf32> -> vector<24x128xf32>
    %c0_3 = arith.constant 0 : index
    %c0_4 = arith.constant 0 : index
    %3 = vector.load %arg3[%c0_3, %c0_4] : memref<1x128xf32, #tpu.memory_space<vmem>>, vector<1x128xf32>
    %4 = vector.broadcast %3 : vector<1x128xf32> to vector<24x128xf32>
    %5 = arith.mulf %2, %4 : vector<24x128xf32>
    %c0_5 = arith.constant 0 : index
    %c0_6 = arith.constant 0 : index
    %6 = vector.load %arg4[%c0_5, %c0_6] : memref<1x128xf32, #tpu.memory_space<vmem>>, vector<1x128xf32>
    %7 = vector.broadcast %6 : vector<1x128xf32> to vector<24x128xf32>
    %8 = arith.addf %5, %7 : vector<24x128xf32>
    %cst_7 = arith.constant 0.000000e+00 : f32
    %9 = vector.broadcast %cst_7 : f32 to vector<24x128xf32>
    %10 = arith.maximumf %8, %9 : vector<24x128xf32>
    %c0_8 = arith.constant 0 : index
    %c0_9 = arith.constant 0 : index
    %11 = vector.load %arg5[%c0_8, %c0_9] : memref<24x128xf32, #tpu.memory_space<vmem>>, vector<24x128xf32>
    tpu.vector_store %arg5[%c0_8, %c0_9], %10 {strides = array<i32>} : memref<24x128xf32, #tpu.memory_space<vmem>>, vector<24x128xf32>,
    return
  }
  func.func @transform_0(%arg0: i32) -> (i32, i32) {
    %c0_i32 = arith.constant 0 : i32
    %c0_i32_0 = arith.constant 0 : i32
    return %arg0, %c0_i32 : i32, i32
  }
  func.func @transform_1(%arg0: i32) -> (i32, i32) {
    %c0_i32 = arith.constant 0 : i32
    %c0_i32_0 = arith.constant 0 : i32
    %c0_i32_1 = arith.constant 0 : i32
    return %c0_i32, %c0_i32_0 : i32, i32
  }
  func.func @transform_2(%arg0: i32) -> (i32, i32) {
    %c0_i32 = arith.constant 0 : i32
    %c0_i32_0 = arith.constant 0 : i32
    %c0_i32_1 = arith.constant 0 : i32
    return %c0_i32, %c0_i32_0 : i32, i32
  }
  func.func @transform_3(%arg0: i32) -> (i32, i32) {
    %c0_i32 = arith.constant 0 : i32
    %c0_i32_0 = arith.constant 0 : i32
    %c0_i32_1 = arith.constant 0 : i32
    return %c0_i32, %c0_i32_0 : i32, i32
  }
  func.func @transform_4(%arg0: i32) -> (i32, i32) {
    %c0_i32 = arith.constant 0 : i32
    %c0_i32_0 = arith.constant 0 : i32
    return %arg0, %c0_i32 : i32, i32
  }
}

module attributes {stable_mosaic.version = 11 : i64} {
  func.func @_conv_affine_relu_kernel(%arg0: i32, %arg1: memref<72x4xf32, #tpu.memory_space<vmem>>, %arg2: memref<4x128xf32, #tpu.memory_space<vmem>>, %arg3: memref<1x128xf32, #tpu.memory_space<vmem>>, %arg4: memref<1x128xf32, #tpu.memory_space<vmem>>, %arg5: memref<72x128xf32, #tpu.memory_space<vmem>>) attributes {dimension_semantics = [#tpu.dimension_semantics<parallel>], iteration_bounds = array<i64: 1>, scalar_prefetch = 0 : i64, scratch_operands = 0 : i64, tpu.core_type = #tpu.core_type<tc>, window_params = [{transform_indices = @transform_0, window_bounds = array<i64: 72, 4>}, {pipeline_mode = #tpu.pipeline_mode<synchronous>, transform_indices = @transform_1, window_bounds = array<i64: 4, 128>}, {pipeline_mode = #tpu.pipeline_mode<synchronous>, transform_indices = @transform_2, window_bounds = array<i64: 1, 128>}, {pipeline_mode = #tpu.pipeline_mode<synchronous>, transform_indices = @transform_3, window_bounds = array<i64: 1, 128>}, {transform_indices = @transform_4, window_bounds = array<i64: 72, 128>}]} {
    %c0 = arith.constant 0 : index
    %c0_0 = arith.constant 0 : index
    %0 = vector.load %arg1[%c0, %c0_0] : memref<72x4xf32, #tpu.memory_space<vmem>>, vector<72x4xf32>
    %c0_1 = arith.constant 0 : index
    %c0_2 = arith.constant 0 : index
    %1 = vector.load %arg2[%c0_1, %c0_2] : memref<4x128xf32, #tpu.memory_space<vmem>>, vector<4x128xf32>
    %cst = arith.constant dense<0.000000e+00> : vector<72x128xf32>
    %2 = tpu.matmul %0, %1, %cst {dimension_numbers = #tpu.dot_dimension_numbers<[1], [0], [0], [1], [0, 0, 1, 1], [], []>} : vector<72x4xf32>, vector<4x128xf32>, vector<72x128xf32> -> vector<72x128xf32>
    %c0_3 = arith.constant 0 : index
    %c0_4 = arith.constant 0 : index
    %3 = vector.load %arg3[%c0_3, %c0_4] : memref<1x128xf32, #tpu.memory_space<vmem>>, vector<1x128xf32>
    %4 = vector.broadcast %3 : vector<1x128xf32> to vector<72x128xf32>
    %5 = arith.mulf %2, %4 : vector<72x128xf32>
    %c0_5 = arith.constant 0 : index
    %c0_6 = arith.constant 0 : index
    %6 = vector.load %arg4[%c0_5, %c0_6] : memref<1x128xf32, #tpu.memory_space<vmem>>, vector<1x128xf32>
    %7 = vector.broadcast %6 : vector<1x128xf32> to vector<72x128xf32>
    %8 = arith.addf %5, %7 : vector<72x128xf32>
    %cst_7 = arith.constant 0.000000e+00 : f32
    %9 = vector.broadcast %cst_7 : f32 to vector<72x128xf32>
    %10 = arith.maximumf %8, %9 : vector<72x128xf32>
    %c0_8 = arith.constant 0 : index
    %c0_9 = arith.constant 0 : index
    %11 = vector.load %arg5[%c0_8, %c0_9] : memref<72x128xf32, #tpu.memory_space<vmem>>, vector<72x128xf32>
    tpu.vector_store %arg5[%c0_8, %c0_9], %10 {strides = array<i32>} : memref<72x128xf32, #tpu.memory_space<vmem>>, vector<72x128xf32>,
    return
  }
  func.func @transform_0(%arg0: i32) -> (i32, i32) {
    %c0_i32 = arith.constant 0 : i32
    %c0_i32_0 = arith.constant 0 : i32
    return %arg0, %c0_i32 : i32, i32
  }
  func.func @transform_1(%arg0: i32) -> (i32, i32) {
    %c0_i32 = arith.constant 0 : i32
    %c0_i32_0 = arith.constant 0 : i32
    %c0_i32_1 = arith.constant 0 : i32
    return %c0_i32, %c0_i32_0 : i32, i32
  }
  func.func @transform_2(%arg0: i32) -> (i32, i32) {
    %c0_i32 = arith.constant 0 : i32
    %c0_i32_0 = arith.constant 0 : i32
    %c0_i32_1 = arith.constant 0 : i32
    return %c0_i32, %c0_i32_0 : i32, i32
  }
  func.func @transform_3(%arg0: i32) -> (i32, i32) {
    %c0_i32 = arith.constant 0 : i32
    %c0_i32_0 = arith.constant 0 : i32
    %c0_i32_1 = arith.constant 0 : i32
    return %c0_i32, %c0_i32_0 : i32, i32
  }
  func.func @transform_4(%arg0: i32) -> (i32, i32) {
    %c0_i32 = arith.constant 0 : i32
    %c0_i32_0 = arith.constant 0 : i32
    return %arg0, %c0_i32 : i32, i32
  }
}

module attributes {stable_mosaic.version = 11 : i64} {
  func.func @_conv_stats_kernel(%arg0: i32, %arg1: memref<72x4xf32, #tpu.memory_space<vmem>>, %arg2: memref<4x128xf32, #tpu.memory_space<vmem>>, %arg3: memref<8x128xf32, #tpu.memory_space<vmem>>) attributes {dimension_semantics = [#tpu.dimension_semantics<parallel>], iteration_bounds = array<i64: 1>, scalar_prefetch = 0 : i64, scratch_operands = 0 : i64, tpu.core_type = #tpu.core_type<tc>, window_params = [{transform_indices = @transform_0, window_bounds = array<i64: 72, 4>}, {pipeline_mode = #tpu.pipeline_mode<synchronous>, transform_indices = @transform_1, window_bounds = array<i64: 4, 128>}, {transform_indices = @transform_2, window_bounds = array<i64: 8, 128>}]} {
    %c0 = arith.constant 0 : index
    %c0_0 = arith.constant 0 : index
    %0 = vector.load %arg1[%c0, %c0_0] : memref<72x4xf32, #tpu.memory_space<vmem>>, vector<72x4xf32>
    %c0_1 = arith.constant 0 : index
    %c0_2 = arith.constant 0 : index
    %1 = vector.load %arg2[%c0_1, %c0_2] : memref<4x128xf32, #tpu.memory_space<vmem>>, vector<4x128xf32>
    %cst = arith.constant dense<0.000000e+00> : vector<72x128xf32>
    %2 = tpu.matmul %0, %1, %cst {dimension_numbers = #tpu.dot_dimension_numbers<[1], [0], [0], [1], [0, 0, 1, 1], [], []>} : vector<72x4xf32>, vector<4x128xf32>, vector<72x128xf32> -> vector<72x128xf32>
    %cst_3 = arith.constant dense<0.000000e+00> : vector<128xf32>
    %3 = vector.multi_reduction <add>, %2, %cst_3 [0] : vector<72x128xf32> to vector<128xf32>
    %4 = vector.shape_cast %3 : vector<128xf32> to vector<1x128xf32>
    %5 = arith.mulf %2, %2 : vector<72x128xf32>
    %cst_4 = arith.constant dense<0.000000e+00> : vector<128xf32>
    %6 = vector.multi_reduction <add>, %5, %cst_4 [0] : vector<72x128xf32> to vector<128xf32>
    %7 = vector.shape_cast %6 : vector<128xf32> to vector<1x128xf32>
    %cst_5 = arith.constant 0.000000e+00 : f32
    %8 = vector.broadcast %cst_5 : f32 to vector<6x128xf32>
    %9 = tpu.concatenate %4, %7, %8 in 0 : vector<1x128xf32>, vector<1x128xf32>, vector<6x128xf32> -> vector<8x128xf32>
    %c0_6 = arith.constant 0 : index
    %c0_7 = arith.constant 0 : index
    %10 = vector.load %arg3[%c0_6, %c0_7] : memref<8x128xf32, #tpu.memory_space<vmem>>, vector<8x128xf32>
    tpu.vector_store %arg3[%c0_6, %c0_7], %9 {strides = array<i32>} : memref<8x128xf32, #tpu.memory_space<vmem>>, vector<8x128xf32>,
    return
  }
  func.func @transform_0(%arg0: i32) -> (i32, i32) {
    %c0_i32 = arith.constant 0 : i32
    %c0_i32_0 = arith.constant 0 : i32
    return %arg0, %c0_i32 : i32, i32
  }
  func.func @transform_1(%arg0: i32) -> (i32, i32) {
    %c0_i32 = arith.constant 0 : i32
    %c0_i32_0 = arith.constant 0 : i32
    %c0_i32_1 = arith.constant 0 : i32
    return %c0_i32, %c0_i32_0 : i32, i32
  }
  func.func @transform_2(%arg0: i32) -> (i32, i32) {
    %c0_i32 = arith.constant 0 : i32
    %c0_i32_0 = arith.constant 0 : i32
    return %arg0, %c0_i32 : i32, i32
  }
}

module attributes {stable_mosaic.version = 11 : i64} {
  func.func @_conv_stats_kernel(%arg0: i32, %arg1: memref<512x8xf32, #tpu.memory_space<vmem>>, %arg2: memref<8x128xf32, #tpu.memory_space<vmem>>, %arg3: memref<8x128xf32, #tpu.memory_space<vmem>>) attributes {dimension_semantics = [#tpu.dimension_semantics<parallel>], iteration_bounds = array<i64: 1>, scalar_prefetch = 0 : i64, scratch_operands = 0 : i64, tpu.core_type = #tpu.core_type<tc>, window_params = [{transform_indices = @transform_0, window_bounds = array<i64: 512, 8>}, {pipeline_mode = #tpu.pipeline_mode<synchronous>, transform_indices = @transform_1, window_bounds = array<i64: 8, 128>}, {transform_indices = @transform_2, window_bounds = array<i64: 8, 128>}]} {
    %c0 = arith.constant 0 : index
    %c0_0 = arith.constant 0 : index
    %0 = vector.load %arg1[%c0, %c0_0] : memref<512x8xf32, #tpu.memory_space<vmem>>, vector<512x8xf32>
    %c0_1 = arith.constant 0 : index
    %c0_2 = arith.constant 0 : index
    %1 = vector.load %arg2[%c0_1, %c0_2] : memref<8x128xf32, #tpu.memory_space<vmem>>, vector<8x128xf32>
    %cst = arith.constant dense<0.000000e+00> : vector<512x128xf32>
    %2 = tpu.matmul %0, %1, %cst {dimension_numbers = #tpu.dot_dimension_numbers<[1], [0], [0], [1], [0, 0, 1, 1], [], []>} : vector<512x8xf32>, vector<8x128xf32>, vector<512x128xf32> -> vector<512x128xf32>
    %cst_3 = arith.constant dense<0.000000e+00> : vector<128xf32>
    %3 = vector.multi_reduction <add>, %2, %cst_3 [0] : vector<512x128xf32> to vector<128xf32>
    %4 = vector.shape_cast %3 : vector<128xf32> to vector<1x128xf32>
    %5 = arith.mulf %2, %2 : vector<512x128xf32>
    %cst_4 = arith.constant dense<0.000000e+00> : vector<128xf32>
    %6 = vector.multi_reduction <add>, %5, %cst_4 [0] : vector<512x128xf32> to vector<128xf32>
    %7 = vector.shape_cast %6 : vector<128xf32> to vector<1x128xf32>
    %cst_5 = arith.constant 0.000000e+00 : f32
    %8 = vector.broadcast %cst_5 : f32 to vector<6x128xf32>
    %9 = tpu.concatenate %4, %7, %8 in 0 : vector<1x128xf32>, vector<1x128xf32>, vector<6x128xf32> -> vector<8x128xf32>
    %c0_6 = arith.constant 0 : index
    %c0_7 = arith.constant 0 : index
    %10 = vector.load %arg3[%c0_6, %c0_7] : memref<8x128xf32, #tpu.memory_space<vmem>>, vector<8x128xf32>
    tpu.vector_store %arg3[%c0_6, %c0_7], %9 {strides = array<i32>} : memref<8x128xf32, #tpu.memory_space<vmem>>, vector<8x128xf32>,
    return
  }
  func.func @transform_0(%arg0: i32) -> (i32, i32) {
    %c0_i32 = arith.constant 0 : i32
    %c0_i32_0 = arith.constant 0 : i32
    return %arg0, %c0_i32 : i32, i32
  }
  func.func @transform_1(%arg0: i32) -> (i32, i32) {
    %c0_i32 = arith.constant 0 : i32
    %c0_i32_0 = arith.constant 0 : i32
    %c0_i32_1 = arith.constant 0 : i32
    return %c0_i32, %c0_i32_0 : i32, i32
  }
  func.func @transform_2(%arg0: i32) -> (i32, i32) {
    %c0_i32 = arith.constant 0 : i32
    %c0_i32_0 = arith.constant 0 : i32
    return %arg0, %c0_i32 : i32, i32
  }
}

module attributes {stable_mosaic.version = 11 : i64} {
  func.func @_conv_affine_relu_kernel(%arg0: i32, %arg1: memref<512x8xf32, #tpu.memory_space<vmem>>, %arg2: memref<8x128xf32, #tpu.memory_space<vmem>>, %arg3: memref<1x128xf32, #tpu.memory_space<vmem>>, %arg4: memref<1x128xf32, #tpu.memory_space<vmem>>, %arg5: memref<512x128xf32, #tpu.memory_space<vmem>>) attributes {dimension_semantics = [#tpu.dimension_semantics<parallel>], iteration_bounds = array<i64: 1>, scalar_prefetch = 0 : i64, scratch_operands = 0 : i64, tpu.core_type = #tpu.core_type<tc>, window_params = [{transform_indices = @transform_0, window_bounds = array<i64: 512, 8>}, {pipeline_mode = #tpu.pipeline_mode<synchronous>, transform_indices = @transform_1, window_bounds = array<i64: 8, 128>}, {pipeline_mode = #tpu.pipeline_mode<synchronous>, transform_indices = @transform_2, window_bounds = array<i64: 1, 128>}, {pipeline_mode = #tpu.pipeline_mode<synchronous>, transform_indices = @transform_3, window_bounds = array<i64: 1, 128>}, {transform_indices = @transform_4, window_bounds = array<i64: 512, 128>}]} {
    %c0 = arith.constant 0 : index
    %c0_0 = arith.constant 0 : index
    %0 = vector.load %arg1[%c0, %c0_0] : memref<512x8xf32, #tpu.memory_space<vmem>>, vector<512x8xf32>
    %c0_1 = arith.constant 0 : index
    %c0_2 = arith.constant 0 : index
    %1 = vector.load %arg2[%c0_1, %c0_2] : memref<8x128xf32, #tpu.memory_space<vmem>>, vector<8x128xf32>
    %cst = arith.constant dense<0.000000e+00> : vector<512x128xf32>
    %2 = tpu.matmul %0, %1, %cst {dimension_numbers = #tpu.dot_dimension_numbers<[1], [0], [0], [1], [0, 0, 1, 1], [], []>} : vector<512x8xf32>, vector<8x128xf32>, vector<512x128xf32> -> vector<512x128xf32>
    %c0_3 = arith.constant 0 : index
    %c0_4 = arith.constant 0 : index
    %3 = vector.load %arg3[%c0_3, %c0_4] : memref<1x128xf32, #tpu.memory_space<vmem>>, vector<1x128xf32>
    %4 = vector.broadcast %3 : vector<1x128xf32> to vector<512x128xf32>
    %5 = arith.mulf %2, %4 : vector<512x128xf32>
    %c0_5 = arith.constant 0 : index
    %c0_6 = arith.constant 0 : index
    %6 = vector.load %arg4[%c0_5, %c0_6] : memref<1x128xf32, #tpu.memory_space<vmem>>, vector<1x128xf32>
    %7 = vector.broadcast %6 : vector<1x128xf32> to vector<512x128xf32>
    %8 = arith.addf %5, %7 : vector<512x128xf32>
    %cst_7 = arith.constant 0.000000e+00 : f32
    %9 = vector.broadcast %cst_7 : f32 to vector<512x128xf32>
    %10 = arith.maximumf %8, %9 : vector<512x128xf32>
    %c0_8 = arith.constant 0 : index
    %c0_9 = arith.constant 0 : index
    %11 = vector.load %arg5[%c0_8, %c0_9] : memref<512x128xf32, #tpu.memory_space<vmem>>, vector<512x128xf32>
    tpu.vector_store %arg5[%c0_8, %c0_9], %10 {strides = array<i32>} : memref<512x128xf32, #tpu.memory_space<vmem>>, vector<512x128xf32>,
    return
  }
  func.func @transform_0(%arg0: i32) -> (i32, i32) {
    %c0_i32 = arith.constant 0 : i32
    %c0_i32_0 = arith.constant 0 : i32
    return %arg0, %c0_i32 : i32, i32
  }
  func.func @transform_1(%arg0: i32) -> (i32, i32) {
    %c0_i32 = arith.constant 0 : i32
    %c0_i32_0 = arith.constant 0 : i32
    %c0_i32_1 = arith.constant 0 : i32
    return %c0_i32, %c0_i32_0 : i32, i32
  }
  func.func @transform_2(%arg0: i32) -> (i32, i32) {
    %c0_i32 = arith.constant 0 : i32
    %c0_i32_0 = arith.constant 0 : i32
    %c0_i32_1 = arith.constant 0 : i32
    return %c0_i32, %c0_i32_0 : i32, i32
  }
  func.func @transform_3(%arg0: i32) -> (i32, i32) {
    %c0_i32 = arith.constant 0 : i32
    %c0_i32_0 = arith.constant 0 : i32
    %c0_i32_1 = arith.constant 0 : i32
    return %c0_i32, %c0_i32_0 : i32, i32
  }
  func.func @transform_4(%arg0: i32) -> (i32, i32) {
    %c0_i32 = arith.constant 0 : i32
    %c0_i32_0 = arith.constant 0 : i32
    return %arg0, %c0_i32 : i32, i32
  }
}

</mosaic_0001>

<llo_original>
// kernel: pyramid_pooling_forward.12
$region0: #{pyramid_pooling_forward.12}
  #allocation0 [shape = 'u32[]', space=smem, size = 0x4, offset = 0x4, fixed_abs, tag = 'smem constant byte address 0x4 - core index']
  #allocation1 [shape = 'u32[144,128]{1,0:T(1,128)}', space=vmem, size = 0x12000, scoped, tag = 'internal scratch']
  %s0 = inlined_call_operand.vmem [shape: f32[8,4], index: 0, kind: input, shape index: {}]
  %s1 = inlined_call_operand.vmem [shape: f32[4,128], index: 1, kind: input, shape index: {}]
  %s2 = inlined_call_operand.vmem [shape: f32[8,128], index: 2, kind: output, shape index: {}]
  %s3 = sld [smem:[#allocation0]]
  $region18: #{pyramid_pooling_forward.12} parent=0
    _
  %s5 = ssub.s32 1, %s3
  %s6 = scalar_select 0, %s5, %s3
  // Predicated region
  $region2: #{pyramid_pooling_forward.12} parent=0 // pred_check
    _
  $region3: #{pyramid_pooling_forward.12} parent=0 // pred_check_branch
    %8 = sbr.rel (0) target = $region5
  $region4: #{pyramid_pooling_forward.12} parent=0 // pred_region
    _
  $region5: #{pyramid_pooling_forward.12} parent=0 // pred_fallthru
    _
  // Predicated region
  $region6: #{pyramid_pooling_forward.12} parent=0 // pred_check
    _
  $region7: #{pyramid_pooling_forward.12} parent=0 // pred_check_branch
    %10 = sbr.rel (0) target = $region9
  $region8: #{pyramid_pooling_forward.12} parent=0 // pred_region
    _
  $region9: #{pyramid_pooling_forward.12} parent=0 // pred_fallthru
    _
  %v11 = vld [vmem:[%s0] sm:$0xff]
  %v12 = vld [vmem:[%s1] sm:$0xf]
  %vm13 = vcmask 31744
  %v15 = vsel %vm13, %v11, 0
  %vm17 = vcmask 1043456
  %v19 = vsel %vm17, %v12, 0
  %21 = vmatprep.subr.mxu0 0.0
  %22 = vmatpush1.msra.mxu0 %v19
  %23 = vmatprep.subr.mxu0 0.0
  %24 = vmatpush1.msra.mxu0 0.0
  %25 = vmatprep.subr.mxu0 0.0
  %26 = vmatpush1.msra.mxu0 0.0
  %27 = vmatprep.subr.mxu0 0.0
  %28 = vmatpush1.msra.mxu0 0.0
  %29 = vmatprep.subr.mxu0 0.0
  %30 = vmatpush1.msra.mxu0 0.0
  %31 = vmatprep.subr.mxu0 0.0
  %32 = vmatpush1.msra.mxu0 0.0
  %33 = vmatprep.subr.mxu0 0.0
  %34 = vmatpush1.msra.mxu0 0.0
  %35 = vmatprep.subr.mxu0 0.0
  %36 = vmatpush1.msra.mxu0 0.0
  %37 = vmatprep.subr.mxu0 0.0
  %38 = vmatpush1.msra.mxu0 0.0
  %39 = vmatprep.subr.mxu0 0.0
  %40 = vmatpush1.msra.mxu0 0.0
  %41 = vmatprep.subr.mxu0 0.0
  %42 = vmatpush1.msra.mxu0 0.0
  %43 = vmatprep.subr.mxu0 0.0
  %44 = vmatpush1.msra.mxu0 0.0
  %45 = vmatprep.subr.mxu0 0.0
  %46 = vmatpush1.msra.mxu0 0.0
  %47 = vmatprep.subr.mxu0 0.0
  %48 = vmatpush1.msra.mxu0 0.0
  %49 = vmatprep.subr.mxu0 0.0
  %50 = vmatpush1.msra.mxu0 0.0
  %51 = vmatprep.subr.mxu0 0.0
  %52 = vmatpush1.msra.mxu0 0.0
  %53 = vmatprep.subr.mxu0 0.0
  %54 = vmatpush1.msra.mxu0 0.0
  %55 = vmatprep.subr.mxu0 0.0
  %56 = vmatpush1.msra.mxu0 0.0
  %57 = vmatprep.subr.mxu0 0.0
  %58 = vmatpush1.msra.mxu0 0.0
  %59 = vmatprep.subr.mxu0 0.0
  %60 = vmatpush1.msra.mxu0 0.0
  %61 = vmatprep.subr.mxu0 0.0
  %62 = vmatpush1.msra.mxu0 0.0
  %63 = vmatprep.subr.mxu0 0.0
  %64 = vmatpush1.msra.mxu0 0.0
  %65 = vmatprep.subr.mxu0 0.0
  %66 = vmatpush1.msra.mxu0 0.0
  %67 = vmatprep.subr.mxu0 0.0
  %68 = vmatpush1.msra.mxu0 0.0
  %69 = vmatprep.subr.mxu0 0.0
  %70 = vmatpush1.msra.mxu0 0.0
  %71 = vmatprep.subr.mxu0 0.0
  %72 = vmatpush1.msra.mxu0 0.0
  %73 = vmatprep.subr.mxu0 0.0
  %74 = vmatpush1.msra.mxu0 0.0
  %75 = vmatprep.subr.mxu0 0.0
  %76 = vmatpush1.msra.mxu0 0.0
  %77 = vmatprep.subr.mxu0 0.0
  %78 = vmatpush1.msra.mxu0 0.0
  %79 = vmatprep.subr.mxu0 0.0
  %80 = vmatpush1.msra.mxu0 0.0
  %81 = vmatprep.subr.mxu0 0.0
  %82 = vmatpush1.msra.mxu0 0.0
  %83 = vmatprep.subr.mxu0 0.0
  %84 = vmatpush1.msra.mxu0 0.0
  %85 = vmatprep.mubr.f32.mxu0 0.0
  %86 = vmatmul.mubr.f32.gmra.mrb[0].mxu0 %v15
  %v87 = vpop.f32.mrb[0].mxu0
  %v88 = vadd.f32 0.0, %v87
  %v89 = vpop.f32.mrb[0].mxu0
  %90 = vdwg.mxu0
  %v91 = vrot.slane %v88, 4
  %v92 = vadd.f32 %v88, %v91
  %v93 = vrot.slane %v92, 2
  %v94 = vadd.f32 %v92, %v93
  %v95 = vrot.slane %v94, 1
  %v96 = vadd.f32 %v94, %v95
  %v97 = vmul.f32 %v88, %v88
  %v98 = vrot.slane %v97, 4
  %v99 = vadd.f32 %v97, %v98
  %v100 = vrot.slane %v99, 2
  %v101 = vadd.f32 %v99, %v100
  %v102 = vrot.slane %v101, 1
  %v103 = vadd.f32 %v101, %v102
  %vm104 = vcmask 1040384
  %v105 = vsel %vm104, %v96, %v103
  %vm106 = vcmask 1041408
  %v107 = vsel %vm106, %v105, 0.0
  %108 = vst [vmem:[%s2] sm:$0xff] %v107
  // Predicated region
  $region10: #{pyramid_pooling_forward.12} parent=0 // pred_check
    _
  $region11: #{pyramid_pooling_forward.12} parent=0 // pred_check_branch
    %110 = sbr.rel (0) target = $region13
  $region12: #{pyramid_pooling_forward.12} parent=0 // pred_region
    _
  $region13: #{pyramid_pooling_forward.12} parent=0 // pred_fallthru
    _
  // Predicated region
  $region14: #{pyramid_pooling_forward.12} parent=0 // pred_check
    _
  $region15: #{pyramid_pooling_forward.12} parent=0 // pred_check_branch
    %112 = sbr.rel (0) target = $region17
  $region16: #{pyramid_pooling_forward.12} parent=0 // pred_region
    _
  $region17: #{pyramid_pooling_forward.12} parent=0 // pred_fallthru
    _

// kernel: pyramid_pooling_forward.13
$region0: #{pyramid_pooling_forward.13}
  #allocation0 [shape = 'u32[]', space=smem, size = 0x4, offset = 0x4, fixed_abs, tag = 'smem constant byte address 0x4 - core index']
  #allocation1 [shape = 'u32[144,128]{1,0:T(1,128)}', space=vmem, size = 0x12000, scoped, tag = 'internal scratch']
  %s0 = inlined_call_operand.vmem [shape: f32[8,4], index: 0, kind: input, shape index: {}]
  %s1 = inlined_call_operand.vmem [shape: f32[4,128], index: 1, kind: input, shape index: {}]
  %s2 = inlined_call_operand.vmem [shape: f32[1,128], index: 2, kind: input, shape index: {}]
  %s3 = inlined_call_operand.vmem [shape: f32[1,128], index: 3, kind: input, shape index: {}]
  %s4 = inlined_call_operand.vmem [shape: f32[8,128], index: 4, kind: output, shape index: {}]
  %s5 = sld [smem:[#allocation0]]
  $region26: #{pyramid_pooling_forward.13} parent=0
    _
  %s7 = ssub.s32 1, %s5
  %s8 = scalar_select 0, %s7, %s5
  // Predicated region
  $region2: #{pyramid_pooling_forward.13} parent=0 // pred_check
    _
  $region3: #{pyramid_pooling_forward.13} parent=0 // pred_check_branch
    %10 = sbr.rel (0) target = $region5
  $region4: #{pyramid_pooling_forward.13} parent=0 // pred_region
    _
  $region5: #{pyramid_pooling_forward.13} parent=0 // pred_fallthru
    _
  // Predicated region
  $region6: #{pyramid_pooling_forward.13} parent=0 // pred_check
    _
  $region7: #{pyramid_pooling_forward.13} parent=0 // pred_check_branch
    %12 = sbr.rel (0) target = $region9
  $region8: #{pyramid_pooling_forward.13} parent=0 // pred_region
    _
  $region9: #{pyramid_pooling_forward.13} parent=0 // pred_fallthru
    _
  // Predicated region
  $region10: #{pyramid_pooling_forward.13} parent=0 // pred_check
    _
  $region11: #{pyramid_pooling_forward.13} parent=0 // pred_check_branch
    %14 = sbr.rel (0) target = $region13
  $region12: #{pyramid_pooling_forward.13} parent=0 // pred_region
    _
  $region13: #{pyramid_pooling_forward.13} parent=0 // pred_fallthru
    _
  // Predicated region
  $region14: #{pyramid_pooling_forward.13} parent=0 // pred_check
    _
  $region15: #{pyramid_pooling_forward.13} parent=0 // pred_check_branch
    %16 = sbr.rel (0) target = $region17
  $region16: #{pyramid_pooling_forward.13} parent=0 // pred_region
    _
  $region17: #{pyramid_pooling_forward.13} parent=0 // pred_fallthru
    _
  %v17 = vld [vmem:[%s0] sm:$0xff]
  %v18 = vld [vmem:[%s1] sm:$0xf]
  %vm19 = vcmask 31744
  %v21 = vsel %vm19, %v17, 0
  %vm23 = vcmask 1043456
  %v25 = vsel %vm23, %v18, 0
  %27 = vmatprep.subr.mxu0 0.0
  %28 = vmatpush1.msra.mxu0 %v25
  %29 = vmatprep.subr.mxu0 0.0
  %30 = vmatpush1.msra.mxu0 0.0
  %31 = vmatprep.subr.mxu0 0.0
  %32 = vmatpush1.msra.mxu0 0.0
  %33 = vmatprep.subr.mxu0 0.0
  %34 = vmatpush1.msra.mxu0 0.0
  %35 = vmatprep.subr.mxu0 0.0
  %36 = vmatpush1.msra.mxu0 0.0
  %37 = vmatprep.subr.mxu0 0.0
  %38 = vmatpush1.msra.mxu0 0.0
  %39 = vmatprep.subr.mxu0 0.0
  %40 = vmatpush1.msra.mxu0 0.0
  %41 = vmatprep.subr.mxu0 0.0
  %42 = vmatpush1.msra.mxu0 0.0
  %43 = vmatprep.subr.mxu0 0.0
  %44 = vmatpush1.msra.mxu0 0.0
  %45 = vmatprep.subr.mxu0 0.0
  %46 = vmatpush1.msra.mxu0 0.0
  %47 = vmatprep.subr.mxu0 0.0
  %48 = vmatpush1.msra.mxu0 0.0
  %49 = vmatprep.subr.mxu0 0.0
  %50 = vmatpush1.msra.mxu0 0.0
  %51 = vmatprep.subr.mxu0 0.0
  %52 = vmatpush1.msra.mxu0 0.0
  %53 = vmatprep.subr.mxu0 0.0
  %54 = vmatpush1.msra.mxu0 0.0
  %55 = vmatprep.subr.mxu0 0.0
  %56 = vmatpush1.msra.mxu0 0.0
  %57 = vmatprep.subr.mxu0 0.0
  %58 = vmatpush1.msra.mxu0 0.0
  %59 = vmatprep.subr.mxu0 0.0
  %60 = vmatpush1.msra.mxu0 0.0
  %61 = vmatprep.subr.mxu0 0.0
  %62 = vmatpush1.msra.mxu0 0.0
  %63 = vmatprep.subr.mxu0 0.0
  %64 = vmatpush1.msra.mxu0 0.0
  %65 = vmatprep.subr.mxu0 0.0
  %66 = vmatpush1.msra.mxu0 0.0
  %67 = vmatprep.subr.mxu0 0.0
  %68 = vmatpush1.msra.mxu0 0.0
  %69 = vmatprep.subr.mxu0 0.0
  %70 = vmatpush1.msra.mxu0 0.0
  %71 = vmatprep.subr.mxu0 0.0
  %72 = vmatpush1.msra.mxu0 0.0
  %73 = vmatprep.subr.mxu0 0.0
  %74 = vmatpush1.msra.mxu0 0.0
  %75 = vmatprep.subr.mxu0 0.0
  %76 = vmatpush1.msra.mxu0 0.0
  %77 = vmatprep.subr.mxu0 0.0
  %78 = vmatpush1.msra.mxu0 0.0
  %79 = vmatprep.subr.mxu0 0.0
  %80 = vmatpush1.msra.mxu0 0.0
  %81 = vmatprep.subr.mxu0 0.0
  %82 = vmatpush1.msra.mxu0 0.0
  %83 = vmatprep.subr.mxu0 0.0
  %84 = vmatpush1.msra.mxu0 0.0
  %85 = vmatprep.subr.mxu0 0.0
  %86 = vmatpush1.msra.mxu0 0.0
  %87 = vmatprep.subr.mxu0 0.0
  %88 = vmatpush1.msra.mxu0 0.0
  %89 = vmatprep.subr.mxu0 0.0
  %90 = vmatpush1.msra.mxu0 0.0
  %91 = vmatprep.mubr.f32.mxu0 0.0
  %92 = vmatmul.mubr.f32.gmra.mrb[0].mxu0 %v21
  %v93 = vpop.f32.mrb[0].mxu0
  %v94 = vadd.f32 0.0, %v93
  %v95 = vpop.f32.mrb[0].mxu0
  %96 = vdwg.mxu0
  %v97 = vld [vmem:[%s2] sm:$0x1]
  %v99 = vlaneseq
  %v100 = vshrl.u32 %v99, 7
  %v101 = vsub.s32 0, %v100
  %v102 = vrot.slane %v97, %v101
  %v104 = vmul.f32 %v94, %v102
  %v105 = vld [vmem:[%s3] sm:$0x1]
  %v107 = vlaneseq
  %v108 = vshrl.u32 %v107, 7
  %v109 = vsub.s32 0, %v108
  %v110 = vrot.slane %v105, %v109
  %v112 = vadd.f32 %v104, %v110
  %v113 = vmax.f32 %v112, 0.0
  %114 = vst [vmem:[%s4] sm:$0xff] %v113
  // Predicated region
  $region18: #{pyramid_pooling_forward.13} parent=0 // pred_check
    _
  $region19: #{pyramid_pooling_forward.13} parent=0 // pred_check_branch
    %116 = sbr.rel (0) target = $region21
  $region20: #{pyramid_pooling_forward.13} parent=0 // pred_region
    _
  $region21: #{pyramid_pooling_forward.13} parent=0 // pred_fallthru
    _
  // Predicated region
  $region22: #{pyramid_pooling_forward.13} parent=0 // pred_check
    _
  $region23: #{pyramid_pooling_forward.13} parent=0 // pred_check_branch
    %118 = sbr.rel (0) target = $region25
  $region24: #{pyramid_pooling_forward.13} parent=0 // pred_region
    _
  $region25: #{pyramid_pooling_forward.13} parent=0 // pred_fallthru
    _

// kernel: pyramid_pooling_forward.14
$region0: #{pyramid_pooling_forward.14}
  #allocation0 [shape = 'u32[]', space=smem, size = 0x4, offset = 0x4, fixed_abs, tag = 'smem constant byte address 0x4 - core index']
  #allocation1 [shape = 'u32[144,128]{1,0:T(1,128)}', space=vmem, size = 0x12000, scoped, tag = 'internal scratch']
  %s0 = inlined_call_operand.vmem [shape: f32[24,4], index: 0, kind: input, shape index: {}]
  %s1 = inlined_call_operand.vmem [shape: f32[4,128], index: 1, kind: input, shape index: {}]
  %s2 = inlined_call_operand.vmem [shape: f32[8,128], index: 2, kind: output, shape index: {}]
  %s3 = sld [smem:[#allocation0]]
  $region18: #{pyramid_pooling_forward.14} parent=0
    _
  %s5 = ssub.s32 1, %s3
  %s6 = scalar_select 0, %s5, %s3
  // Predicated region
  $region2: #{pyramid_pooling_forward.14} parent=0 // pred_check
    _
  $region3: #{pyramid_pooling_forward.14} parent=0 // pred_check_branch
    %8 = sbr.rel (0) target = $region5
  $region4: #{pyramid_pooling_forward.14} parent=0 // pred_region
    _
  $region5: #{pyramid_pooling_forward.14} parent=0 // pred_fallthru
    _
  // Predicated region
  $region6: #{pyramid_pooling_forward.14} parent=0 // pred_check
    _
  $region7: #{pyramid_pooling_forward.14} parent=0 // pred_check_branch
    %10 = sbr.rel (0) target = $region9
  $region8: #{pyramid_pooling_forward.14} parent=0 // pred_region
    _
  $region9: #{pyramid_pooling_forward.14} parent=0 // pred_fallthru
    _
  %v11 = vld [vmem:[%s0] sm:$0xff]
  %v12 = vld [vmem:[%s0 + $0x8] sm:$0xff]
  %v13 = vld [vmem:[%s0 + $0x10] sm:$0xff]
  %v14 = vld [vmem:[%s1] sm:$0xf]
  %vm15 = vcmask 31744
  %v17 = vsel %vm15, %v11, 0
  %v20 = vsel %vm15, %v12, 0
  %v23 = vsel %vm15, %v13, 0
  %vm25 = vcmask 1043456
  %v27 = vsel %vm25, %v14, 0
  %29 = vmatprep.subr.mxu0 0.0
  %30 = vmatpush1.msra.mxu0 %v27
  %31 = vmatprep.subr.mxu0 0.0
  %32 = vmatpush1.msra.mxu0 0.0
  %33 = vmatprep.subr.mxu0 0.0
  %34 = vmatpush1.msra.mxu0 0.0
  %35 = vmatprep.subr.mxu0 0.0
  %36 = vmatpush1.msra.mxu0 0.0
  %37 = vmatprep.subr.mxu0 0.0
  %38 = vmatpush1.msra.mxu0 0.0
  %39 = vmatprep.subr.mxu0 0.0
  %40 = vmatpush1.msra.mxu0 0.0
  %41 = vmatprep.subr.mxu0 0.0
  %42 = vmatpush1.msra.mxu0 0.0
  %43 = vmatprep.subr.mxu0 0.0
  %44 = vmatpush1.msra.mxu0 0.0
  %45 = vmatprep.subr.mxu0 0.0
  %46 = vmatpush1.msra.mxu0 0.0
  %47 = vmatprep.subr.mxu0 0.0
  %48 = vmatpush1.msra.mxu0 0.0
  %49 = vmatprep.subr.mxu0 0.0
  %50 = vmatpush1.msra.mxu0 0.0
  %51 = vmatprep.subr.mxu0 0.0
  %52 = vmatpush1.msra.mxu0 0.0
  %53 = vmatprep.subr.mxu0 0.0
  %54 = vmatpush1.msra.mxu0 0.0
  %55 = vmatprep.subr.mxu0 0.0
  %56 = vmatpush1.msra.mxu0 0.0
  %57 = vmatprep.subr.mxu0 0.0
  %58 = vmatpush1.msra.mxu0 0.0
  %59 = vmatprep.subr.mxu0 0.0
  %60 = vmatpush1.msra.mxu0 0.0
  %61 = vmatprep.subr.mxu0 0.0
  %62 = vmatpush1.msra.mxu0 0.0
  %63 = vmatprep.subr.mxu0 0.0
  %64 = vmatpush1.msra.mxu0 0.0
  %65 = vmatprep.subr.mxu0 0.0
  %66 = vmatpush1.msra.mxu0 0.0
  %67 = vmatprep.subr.mxu0 0.0
  %68 = vmatpush1.msra.mxu0 0.0
  %69 = vmatprep.subr.mxu0 0.0
  %70 = vmatpush1.msra.mxu0 0.0
  %71 = vmatprep.subr.mxu0 0.0
  %72 = vmatpush1.msra.mxu0 0.0
  %73 = vmatprep.subr.mxu0 0.0
  %74 = vmatpush1.msra.mxu0 0.0
  %75 = vmatprep.subr.mxu0 0.0
  %76 = vmatpush1.msra.mxu0 0.0
  %77 = vmatprep.subr.mxu0 0.0
  %78 = vmatpush1.msra.mxu0 0.0
  %79 = vmatprep.subr.mxu0 0.0
  %80 = vmatpush1.msra.mxu0 0.0
  %81 = vmatprep.subr.mxu0 0.0
  %82 = vmatpush1.msra.mxu0 0.0
  %83 = vmatprep.subr.mxu0 0.0
  %84 = vmatpush1.msra.mxu0 0.0
  %85 = vmatprep.subr.mxu0 0.0
  %86 = vmatpush1.msra.mxu0 0.0
  %87 = vmatprep.subr.mxu0 0.0
  %88 = vmatpush1.msra.mxu0 0.0
  %89 = vmatprep.subr.mxu0 0.0
  %90 = vmatpush1.msra.mxu0 0.0
  %91 = vmatprep.subr.mxu0 0.0
  %92 = vmatpush1.msra.mxu0 0.0
  %93 = vmatprep.mubr.f32.mxu0 0.0
  %94 = vmatmul.mubr.f32.gmra.mrb[0].mxu0 %v17
  %v95 = vpop.f32.mrb[0].mxu0
  %v96 = vadd.f32 0.0, %v95
  %v97 = vpop.f32.mrb[0].mxu0
  %98 = vmatprep.mubr.f32.mxu0 0.0
  %99 = vmatmul.mubr.f32.gmra.mrb[0].mxu0 %v20
  %v100 = vpop.f32.mrb[0].mxu0
  %v101 = vadd.f32 0.0, %v100
  %v102 = vpop.f32.mrb[0].mxu0
  %103 = vmatprep.mubr.f32.mxu0 0.0
  %104 = vmatmul.mubr.f32.gmra.mrb[0].mxu0 %v23
  %v105 = vpop.f32.mrb[0].mxu0
  %v106 = vadd.f32 0.0, %v105
  %v107 = vpop.f32.mrb[0].mxu0
  %108 = vdwg.mxu0
  %v109 = vadd.f32 %v96, %v101
  %v110 = vadd.f32 %v109, %v106
  %v111 = vrot.slane %v110, 4
  %v112 = vadd.f32 %v110, %v111
  %v113 = vrot.slane %v112, 2
  %v114 = vadd.f32 %v112, %v113
  %v115 = vrot.slane %v114, 1
  %v116 = vadd.f32 %v114, %v115
  %v117 = vmul.f32 %v96, %v96
  %v118 = vmul.f32 %v101, %v101
  %v119 = vmul.f32 %v106, %v106
  %v120 = vadd.f32 %v117, %v118
  %v121 = vadd.f32 %v120, %v119
  %v122 = vrot.slane %v121, 4
  %v123 = vadd.f32 %v121, %v122
  %v124 = vrot.slane %v123, 2
  %v125 = vadd.f32 %v123, %v124
  %v126 = vrot.slane %v125, 1
  %v127 = vadd.f32 %v125, %v126
  %vm128 = vcmask 1040384
  %v129 = vsel %vm128, %v116, %v127
  %vm130 = vcmask 1041408
  %v131 = vsel %vm130, %v129, 0.0
  %132 = vst [vmem:[%s2] sm:$0xff] %v131
  // Predicated region
  $region10: #{pyramid_pooling_forward.14} parent=0 // pred_check
    _
  $region11: #{pyramid_pooling_forward.14} parent=0 // pred_check_branch
    %134 = sbr.rel (0) target = $region13
  $region12: #{pyramid_pooling_forward.14} parent=0 // pred_region
    _
  $region13: #{pyramid_pooling_forward.14} parent=0 // pred_fallthru
    _
  // Predicated region
  $region14: #{pyramid_pooling_forward.14} parent=0 // pred_check
    _
  $region15: #{pyramid_pooling_forward.14} parent=0 // pred_check_branch
    %136 = sbr.rel (0) target = $region17
  $region16: #{pyramid_pooling_forward.14} parent=0 // pred_region
    _
  $region17: #{pyramid_pooling_forward.14} parent=0 // pred_fallthru
    _

// kernel: pyramid_pooling_forward.15
$region0: #{pyramid_pooling_forward.15}
  #allocation0 [shape = 'u32[]', space=smem, size = 0x4, offset = 0x4, fixed_abs, tag = 'smem constant byte address 0x4 - core index']
  #allocation1 [shape = 'u32[144,128]{1,0:T(1,128)}', space=vmem, size = 0x12000, scoped, tag = 'internal scratch']
  %s0 = inlined_call_operand.vmem [shape: f32[24,4], index: 0, kind: input, shape index: {}]
  %s1 = inlined_call_operand.vmem [shape: f32[4,128], index: 1, kind: input, shape index: {}]
  %s2 = inlined_call_operand.vmem [shape: f32[1,128], index: 2, kind: input, shape index: {}]
  %s3 = inlined_call_operand.vmem [shape: f32[1,128], index: 3, kind: input, shape index: {}]
  %s4 = inlined_call_operand.vmem [shape: f32[24,128], index: 4, kind: output, shape index: {}]
  %s5 = sld [smem:[#allocation0]]
  $region26: #{pyramid_pooling_forward.15} parent=0
    _
  %s7 = ssub.s32 1, %s5
  %s8 = scalar_select 0, %s7, %s5
  // Predicated region
  $region2: #{pyramid_pooling_forward.15} parent=0 // pred_check
    _
  $region3: #{pyramid_pooling_forward.15} parent=0 // pred_check_branch
    %10 = sbr.rel (0) target = $region5
  $region4: #{pyramid_pooling_forward.15} parent=0 // pred_region
    _
  $region5: #{pyramid_pooling_forward.15} parent=0 // pred_fallthru
    _
  // Predicated region
  $region6: #{pyramid_pooling_forward.15} parent=0 // pred_check
    _
  $region7: #{pyramid_pooling_forward.15} parent=0 // pred_check_branch
    %12 = sbr.rel (0) target = $region9
  $region8: #{pyramid_pooling_forward.15} parent=0 // pred_region
    _
  $region9: #{pyramid_pooling_forward.15} parent=0 // pred_fallthru
    _
  // Predicated region
  $region10: #{pyramid_pooling_forward.15} parent=0 // pred_check
    _
  $region11: #{pyramid_pooling_forward.15} parent=0 // pred_check_branch
    %14 = sbr.rel (0) target = $region13
  $region12: #{pyramid_pooling_forward.15} parent=0 // pred_region
    _
  $region13: #{pyramid_pooling_forward.15} parent=0 // pred_fallthru
    _
  // Predicated region
  $region14: #{pyramid_pooling_forward.15} parent=0 // pred_check
    _
  $region15: #{pyramid_pooling_forward.15} parent=0 // pred_check_branch
    %16 = sbr.rel (0) target = $region17
  $region16: #{pyramid_pooling_forward.15} parent=0 // pred_region
    _
  $region17: #{pyramid_pooling_forward.15} parent=0 // pred_fallthru
    _
  %v17 = vld [vmem:[%s0] sm:$0xff]
  %v18 = vld [vmem:[%s0 + $0x8] sm:$0xff]
  %v19 = vld [vmem:[%s0 + $0x10] sm:$0xff]
  %v20 = vld [vmem:[%s1] sm:$0xf]
  %vm21 = vcmask 31744
  %v23 = vsel %vm21, %v17, 0
  %v26 = vsel %vm21, %v18, 0
  %v29 = vsel %vm21, %v19, 0
  %vm31 = vcmask 1043456
  %v33 = vsel %vm31, %v20, 0
  %35 = vmatprep.subr.mxu0 0.0
  %36 = vmatpush1.msra.mxu0 %v33
  %37 = vmatprep.subr.mxu0 0.0
  %38 = vmatpush1.msra.mxu0 0.0
  %39 = vmatprep.subr.mxu0 0.0
  %40 = vmatpush1.msra.mxu0 0.0
  %41 = vmatprep.subr.mxu0 0.0
  %42 = vmatpush1.msra.mxu0 0.0
  %43 = vmatprep.subr.mxu0 0.0
  %44 = vmatpush1.msra.mxu0 0.0
  %45 = vmatprep.subr.mxu0 0.0
  %46 = vmatpush1.msra.mxu0 0.0
  %47 = vmatprep.subr.mxu0 0.0
  %48 = vmatpush1.msra.mxu0 0.0
  %49 = vmatprep.subr.mxu0 0.0
  %50 = vmatpush1.msra.mxu0 0.0
  %51 = vmatprep.subr.mxu0 0.0
  %52 = vmatpush1.msra.mxu0 0.0
  %53 = vmatprep.subr.mxu0 0.0
  %54 = vmatpush1.msra.mxu0 0.0
  %55 = vmatprep.subr.mxu0 0.0
  %56 = vmatpush1.msra.mxu0 0.0
  %57 = vmatprep.subr.mxu0 0.0
  %58 = vmatpush1.msra.mxu0 0.0
  %59 = vmatprep.subr.mxu0 0.0
  %60 = vmatpush1.msra.mxu0 0.0
  %61 = vmatprep.subr.mxu0 0.0
  %62 = vmatpush1.msra.mxu0 0.0
  %63 = vmatprep.subr.mxu0 0.0
  %64 = vmatpush1.msra.mxu0 0.0
  %65 = vmatprep.subr.mxu0 0.0
  %66 = vmatpush1.msra.mxu0 0.0
  %67 = vmatprep.subr.mxu0 0.0
  %68 = vmatpush1.msra.mxu0 0.0
  %69 = vmatprep.subr.mxu0 0.0
  %70 = vmatpush1.msra.mxu0 0.0
  %71 = vmatprep.subr.mxu0 0.0
  %72 = vmatpush1.msra.mxu0 0.0
  %73 = vmatprep.subr.mxu0 0.0
  %74 = vmatpush1.msra.mxu0 0.0
  %75 = vmatprep.subr.mxu0 0.0
  %76 = vmatpush1.msra.mxu0 0.0
  %77 = vmatprep.subr.mxu0 0.0
  %78 = vmatpush1.msra.mxu0 0.0
  %79 = vmatprep.subr.mxu0 0.0
  %80 = vmatpush1.msra.mxu0 0.0
  %81 = vmatprep.subr.mxu0 0.0
  %82 = vmatpush1.msra.mxu0 0.0
  %83 = vmatprep.subr.mxu0 0.0
  %84 = vmatpush1.msra.mxu0 0.0
  %85 = vmatprep.subr.mxu0 0.0
  %86 = vmatpush1.msra.mxu0 0.0
  %87 = vmatprep.subr.mxu0 0.0
  %88 = vmatpush1.msra.mxu0 0.0
  %89 = vmatprep.subr.mxu0 0.0
  %90 = vmatpush1.msra.mxu0 0.0
  %91 = vmatprep.subr.mxu0 0.0
  %92 = vmatpush1.msra.mxu0 0.0
  %93 = vmatprep.subr.mxu0 0.0
  %94 = vmatpush1.msra.mxu0 0.0
  %95 = vmatprep.subr.mxu0 0.0
  %96 = vmatpush1.msra.mxu0 0.0
  %97 = vmatprep.subr.mxu0 0.0
  %98 = vmatpush1.msra.mxu0 0.0
  %99 = vmatprep.mubr.f32.mxu0 0.0
  %100 = vmatmul.mubr.f32.gmra.mrb[0].mxu0 %v23
  %v101 = vpop.f32.mrb[0].mxu0
  %v102 = vadd.f32 0.0, %v101
  %v103 = vpop.f32.mrb[0].mxu0
  %104 = vmatprep.mubr.f32.mxu0 0.0
  %105 = vmatmul.mubr.f32.gmra.mrb[0].mxu0 %v26
  %v106 = vpop.f32.mrb[0].mxu0
  %v107 = vadd.f32 0.0, %v106
  %v108 = vpop.f32.mrb[0].mxu0
  %109 = vmatprep.mubr.f32.mxu0 0.0
  %110 = vmatmul.mubr.f32.gmra.mrb[0].mxu0 %v29
  %v111 = vpop.f32.mrb[0].mxu0
  %v112 = vadd.f32 0.0, %v111
  %v113 = vpop.f32.mrb[0].mxu0
  %114 = vdwg.mxu0
  %v115 = vld [vmem:[%s2] sm:$0x1]
  %v117 = vlaneseq
  %v118 = vshrl.u32 %v117, 7
  %v119 = vsub.s32 0, %v118
  %v120 = vrot.slane %v115, %v119
  %v122 = vmul.f32 %v102, %v120
  %v123 = vmul.f32 %v107, %v120
  %v124 = vmul.f32 %v112, %v120
  %v125 = vld [vmem:[%s3] sm:$0x1]
  %v127 = vlaneseq
  %v128 = vshrl.u32 %v127, 7
  %v129 = vsub.s32 0, %v128
  %v130 = vrot.slane %v125, %v129
  %v132 = vadd.f32 %v122, %v130
  %v133 = vadd.f32 %v123, %v130
  %v134 = vadd.f32 %v124, %v130
  %v135 = vmax.f32 %v132, 0.0
  %v136 = vmax.f32 %v133, 0.0
  %v137 = vmax.f32 %v134, 0.0
  %138 = vst [vmem:[%s4] sm:$0xff] %v135
  %139 = vst [vmem:[%s4 + $0x8] sm:$0xff] %v136
  %140 = vst [vmem:[%s4 + $0x10] sm:$0xff] %v137
  // Predicated region
  $region18: #{pyramid_pooling_forward.15} parent=0 // pred_check
    _
  $region19: #{pyramid_pooling_forward.15} parent=0 // pred_check_branch
    %142 = sbr.rel (0) target = $region21
  $region20: #{pyramid_pooling_forward.15} parent=0 // pred_region
    _
  $region21: #{pyramid_pooling_forward.15} parent=0 // pred_fallthru
    _
  // Predicated region
  $region22: #{pyramid_pooling_forward.15} parent=0 // pred_check
    _
  $region23: #{pyramid_pooling_forward.15} parent=0 // pred_check_branch
    %144 = sbr.rel (0) target = $region25
  $region24: #{pyramid_pooling_forward.15} parent=0 // pred_region
    _
  $region25: #{pyramid_pooling_forward.15} parent=0 // pred_fallthru
    _

// kernel: pyramid_pooling_forward.17
$region0: #{pyramid_pooling_forward.17}
  #allocation0 [shape = 'u32[]', space=smem, size = 0x4, offset = 0x4, fixed_abs, tag = 'smem constant byte address 0x4 - core index']
  #allocation1 [shape = 'u32[144,128]{1,0:T(1,128)}', space=vmem, size = 0x12000, scoped, tag = 'internal scratch']
  %s0 = inlined_call_operand.vmem [shape: f32[72,4], index: 0, kind: input, shape index: {}]
  %s1 = inlined_call_operand.vmem [shape: f32[4,128], index: 1, kind: input, shape index: {}]
  %s2 = inlined_call_operand.vmem [shape: f32[1,128], index: 2, kind: input, shape index: {}]
  %s3 = inlined_call_operand.vmem [shape: f32[1,128], index: 3, kind: input, shape index: {}]
  %s4 = inlined_call_operand.vmem [shape: f32[72,128], index: 4, kind: output, shape index: {}]
  %s5 = sld [smem:[#allocation0]]
  $region26: #{pyramid_pooling_forward.17} parent=0
    _
  %s7 = ssub.s32 1, %s5
  %s8 = scalar_select 0, %s7, %s5
  // Predicated region
  $region2: #{pyramid_pooling_forward.17} parent=0 // pred_check
    _
  $region3: #{pyramid_pooling_forward.17} parent=0 // pred_check_branch
    %10 = sbr.rel (0) target = $region5
  $region4: #{pyramid_pooling_forward.17} parent=0 // pred_region
    _
  $region5: #{pyramid_pooling_forward.17} parent=0 // pred_fallthru
    _
  // Predicated region
  $region6: #{pyramid_pooling_forward.17} parent=0 // pred_check
    _
  $region7: #{pyramid_pooling_forward.17} parent=0 // pred_check_branch
    %12 = sbr.rel (0) target = $region9
  $region8: #{pyramid_pooling_forward.17} parent=0 // pred_region
    _
  $region9: #{pyramid_pooling_forward.17} parent=0 // pred_fallthru
    _
  // Predicated region
  $region10: #{pyramid_pooling_forward.17} parent=0 // pred_check
    _
  $region11: #{pyramid_pooling_forward.17} parent=0 // pred_check_branch
    %14 = sbr.rel (0) target = $region13
  $region12: #{pyramid_pooling_forward.17} parent=0 // pred_region
    _
  $region13: #{pyramid_pooling_forward.17} parent=0 // pred_fallthru
    _
  // Predicated region
  $region14: #{pyramid_pooling_forward.17} parent=0 // pred_check
    _
  $region15: #{pyramid_pooling_forward.17} parent=0 // pred_check_branch
    %16 = sbr.rel (0) target = $region17
  $region16: #{pyramid_pooling_forward.17} parent=0 // pred_region
    _
  $region17: #{pyramid_pooling_forward.17} parent=0 // pred_fallthru
    _
  %v17 = vld [vmem:[%s0] sm:$0xff]
  %v18 = vld [vmem:[%s0 + $0x8] sm:$0xff]
  %v19 = vld [vmem:[%s0 + $0x10] sm:$0xff]
  %v20 = vld [vmem:[%s0 + $0x18] sm:$0xff]
  %v21 = vld [vmem:[%s0 + $0x20] sm:$0xff]
  %v22 = vld [vmem:[%s0 + $0x28] sm:$0xff]
  %v23 = vld [vmem:[%s0 + $0x30] sm:$0xff]
  %v24 = vld [vmem:[%s0 + $0x38] sm:$0xff]
  %v25 = vld [vmem:[%s0 + $0x40] sm:$0xff]
  %v26 = vld [vmem:[%s1] sm:$0xf]
  %vm27 = vcmask 31744
  %v29 = vsel %vm27, %v17, 0
  %v32 = vsel %vm27, %v18, 0
  %v35 = vsel %vm27, %v19, 0
  %v38 = vsel %vm27, %v20, 0
  %v41 = vsel %vm27, %v21, 0
  %v44 = vsel %vm27, %v22, 0
  %v47 = vsel %vm27, %v23, 0
  %v50 = vsel %vm27, %v24, 0
  %v53 = vsel %vm27, %v25, 0
  %vm55 = vcmask 1043456
  %v57 = vsel %vm55, %v26, 0
  %59 = vmatprep.subr.mxu0 0.0
  %60 = vmatpush1.msra.mxu0 %v57
  %61 = vmatprep.subr.mxu0 0.0
  %62 = vmatpush1.msra.mxu0 0.0
  %63 = vmatprep.subr.mxu0 0.0
  %64 = vmatpush1.msra.mxu0 0.0
  %65 = vmatprep.subr.mxu0 0.0
  %66 = vmatpush1.msra.mxu0 0.0
  %67 = vmatprep.subr.mxu0 0.0
  %68 = vmatpush1.msra.mxu0 0.0
  %69 = vmatprep.subr.mxu0 0.0
  %70 = vmatpush1.msra.mxu0 0.0
  %71 = vmatprep.subr.mxu0 0.0
  %72 = vmatpush1.msra.mxu0 0.0
  %73 = vmatprep.subr.mxu0 0.0
  %74 = vmatpush1.msra.mxu0 0.0
  %75 = vmatprep.subr.mxu0 0.0
  %76 = vmatpush1.msra.mxu0 0.0
  %77 = vmatprep.subr.mxu0 0.0
  %78 = vmatpush1.msra.mxu0 0.0
  %79 = vmatprep.subr.mxu0 0.0
  %80 = vmatpush1.msra.mxu0 0.0
  %81 = vmatprep.subr.mxu0 0.0
  %82 = vmatpush1.msra.mxu0 0.0
  %83 = vmatprep.subr.mxu0 0.0
  %84 = vmatpush1.msra.mxu0 0.0
  %85 = vmatprep.subr.mxu0 0.0
  %86 = vmatpush1.msra.mxu0 0.0
  %87 = vmatprep.subr.mxu0 0.0
  %88 = vmatpush1.msra.mxu0 0.0
  %89 = vmatprep.subr.mxu0 0.0
  %90 = vmatpush1.msra.mxu0 0.0
  %91 = vmatprep.subr.mxu0 0.0
  %92 = vmatpush1.msra.mxu0 0.0
  %93 = vmatprep.subr.mxu0 0.0
  %94 = vmatpush1.msra.mxu0 0.0
  %95 = vmatprep.subr.mxu0 0.0
  %96 = vmatpush1.msra.mxu0 0.0
  %97 = vmatprep.subr.mxu0 0.0
  %98 = vmatpush1.msra.mxu0 0.0
  %99 = vmatprep.subr.mxu0 0.0
  %100 = vmatpush1.msra.mxu0 0.0
  %101 = vmatprep.subr.mxu0 0.0
  %102 = vmatpush1.msra.mxu0 0.0
  %103 = vmatprep.subr.mxu0 0.0
  %104 = vmatpush1.msra.mxu0 0.0
  %105 = vmatprep.subr.mxu0 0.0
  %106 = vmatpush1.msra.mxu0 0.0
  %107 = vmatprep.subr.mxu0 0.0
  %108 = vmatpush1.msra.mxu0 0.0
  %109 = vmatprep.subr.mxu0 0.0
  %110 = vmatpush1.msra.mxu0 0.0
  %111 = vmatprep.subr.mxu0 0.0
  %112 = vmatpush1.msra.mxu0 0.0
  %113 = vmatprep.subr.mxu0 0.0
  %114 = vmatpush1.msra.mxu0 0.0
  %115 = vmatprep.subr.mxu0 0.0
  %116 = vmatpush1.msra.mxu0 0.0
  %117 = vmatprep.subr.mxu0 0.0
  %118 = vmatpush1.msra.mxu0 0.0
  %119 = vmatprep.subr.mxu0 0.0
  %120 = vmatpush1.msra.mxu0 0.0
  %121 = vmatprep.subr.mxu0 0.0
  %122 = vmatpush1.msra.mxu0 0.0
  %123 = vmatprep.mubr.f32.mxu0 0.0
  %124 = vmatmul.mubr.f32.gmra.mrb[0].mxu0 %v29
  %v125 = vpop.f32.mrb[0].mxu0
  %v126 = vadd.f32 0.0, %v125
  %v127 = vpop.f32.mrb[0].mxu0
  %128 = vmatprep.mubr.f32.mxu0 0.0
  %129 = vmatmul.mubr.f32.gmra.mrb[0].mxu0 %v32
  %v130 = vpop.f32.mrb[0].mxu0
  %v131 = vadd.f32 0.0, %v130
  %v132 = vpop.f32.mrb[0].mxu0
  %133 = vmatprep.mubr.f32.mxu0 0.0
  %134 = vmatmul.mubr.f32.gmra.mrb[0].mxu0 %v35
  %v135 = vpop.f32.mrb[0].mxu0
  %v136 = vadd.f32 0.0, %v135
  %v137 = vpop.f32.mrb[0].mxu0
  %138 = vmatprep.mubr.f32.mxu0 0.0
  %139 = vmatmul.mubr.f32.gmra.mrb[0].mxu0 %v38
  %v140 = vpop.f32.mrb[0].mxu0
  %v141 = vadd.f32 0.0, %v140
  %v142 = vpop.f32.mrb[0].mxu0
  %143 = vmatprep.mubr.f32.mxu0 0.0
  %144 = vmatmul.mubr.f32.gmra.mrb[0].mxu0 %v41
  %v145 = vpop.f32.mrb[0].mxu0
  %v146 = vadd.f32 0.0, %v145
  %v147 = vpop.f32.mrb[0].mxu0
  %148 = vmatprep.mubr.f32.mxu0 0.0
  %149 = vmatmul.mubr.f32.gmra.mrb[0].mxu0 %v44
  %v150 = vpop.f32.mrb[0].mxu0
  %v151 = vadd.f32 0.0, %v150
  %v152 = vpop.f32.mrb[0].mxu0
  %153 = vmatprep.mubr.f32.mxu0 0.0
  %154 = vmatmul.mubr.f32.gmra.mrb[0].mxu0 %v47
  %v155 = vpop.f32.mrb[0].mxu0
  %v156 = vadd.f32 0.0, %v155
  %v157 = vpop.f32.mrb[0].mxu0
  %158 = vmatprep.mubr.f32.mxu0 0.0
  %159 = vmatmul.mubr.f32.gmra.mrb[0].mxu0 %v50
  %v160 = vpop.f32.mrb[0].mxu0
  %v161 = vadd.f32 0.0, %v160
  %v162 = vpop.f32.mrb[0].mxu0
  %163 = vmatprep.mubr.f32.mxu0 0.0
  %164 = vmatmul.mubr.f32.gmra.mrb[0].mxu0 %v53
  %v165 = vpop.f32.mrb[0].mxu0
  %v166 = vadd.f32 0.0, %v165
  %v167 = vpop.f32.mrb[0].mxu0
  %168 = vdwg.mxu0
  %v169 = vld [vmem:[%s2] sm:$0x1]
  %v171 = vlaneseq
  %v172 = vshrl.u32 %v171, 7
  %v173 = vsub.s32 0, %v172
  %v174 = vrot.slane %v169, %v173
  %v176 = vmul.f32 %v126, %v174
  %v177 = vmul.f32 %v131, %v174
  %v178 = vmul.f32 %v136, %v174
  %v179 = vmul.f32 %v141, %v174
  %v180 = vmul.f32 %v146, %v174
  %v181 = vmul.f32 %v151, %v174
  %v182 = vmul.f32 %v156, %v174
  %v183 = vmul.f32 %v161, %v174
  %v184 = vmul.f32 %v166, %v174
  %v185 = vld [vmem:[%s3] sm:$0x1]
  %v187 = vlaneseq
  %v188 = vshrl.u32 %v187, 7
  %v189 = vsub.s32 0, %v188
  %v190 = vrot.slane %v185, %v189
  %v192 = vadd.f32 %v176, %v190
  %v193 = vadd.f32 %v177, %v190
  %v194 = vadd.f32 %v178, %v190
  %v195 = vadd.f32 %v179, %v190
  %v196 = vadd.f32 %v180, %v190
  %v197 = vadd.f32 %v181, %v190
  %v198 = vadd.f32 %v182, %v190
  %v199 = vadd.f32 %v183, %v190
  %v200 = vadd.f32 %v184, %v190
  %v201 = vmax.f32 %v192, 0.0
  %v202 = vmax.f32 %v193, 0.0
  %v203 = vmax.f32 %v194, 0.0
  %v204 = vmax.f32 %v195, 0.0
  %v205 = vmax.f32 %v196, 0.0
  %v206 = vmax.f32 %v197, 0.0
  %v207 = vmax.f32 %v198, 0.0
  %v208 = vmax.f32 %v199, 0.0
  %v209 = vmax.f32 %v200, 0.0
  %210 = vst [vmem:[%s4] sm:$0xff] %v201
  %211 = vst [vmem:[%s4 + $0x8] sm:$0xff] %v202
  %212 = vst [vmem:[%s4 + $0x10] sm:$0xff] %v203
  %213 = vst [vmem:[%s4 + $0x18] sm:$0xff] %v204
  %214 = vst [vmem:[%s4 + $0x20] sm:$0xff] %v205
  %215 = vst [vmem:[%s4 + $0x28] sm:$0xff] %v206
  %216 = vst [vmem:[%s4 + $0x30] sm:$0xff] %v207
  %217 = vst [vmem:[%s4 + $0x38] sm:$0xff] %v208
  %218 = vst [vmem:[%s4 + $0x40] sm:$0xff] %v209
  // Predicated region
  $region18: #{pyramid_pooling_forward.17} parent=0 // pred_check
    _
  $region19: #{pyramid_pooling_forward.17} parent=0 // pred_check_branch
    %220 = sbr.rel (0) target = $region21
  $region20: #{pyramid_pooling_forward.17} parent=0 // pred_region
    _
  $region21: #{pyramid_pooling_forward.17} parent=0 // pred_fallthru
    _
  // Predicated region
  $region22: #{pyramid_pooling_forward.17} parent=0 // pred_check
    _
  $region23: #{pyramid_pooling_forward.17} parent=0 // pred_check_branch
    %222 = sbr.rel (0) target = $region25
  $region24: #{pyramid_pooling_forward.17} parent=0 // pred_region
    _
  $region25: #{pyramid_pooling_forward.17} parent=0 // pred_fallthru
    _

// kernel: pyramid_pooling_forward.16
$region0: #{pyramid_pooling_forward.16}
  #allocation0 [shape = 'u32[]', space=smem, size = 0x4, offset = 0x4, fixed_abs, tag = 'smem constant byte address 0x4 - core index']
  #allocation1 [shape = 'u32[144,128]{1,0:T(1,128)}', space=vmem, size = 0x12000, scoped, tag = 'internal scratch']
  %s0 = inlined_call_operand.vmem [shape: f32[72,4], index: 0, kind: input, shape index: {}]
  %s1 = inlined_call_operand.vmem [shape: f32[4,128], index: 1, kind: input, shape index: {}]
  %s2 = inlined_call_operand.vmem [shape: f32[8,128], index: 2, kind: output, shape index: {}]
  %s3 = sld [smem:[#allocation0]]
  $region18: #{pyramid_pooling_forward.16} parent=0
    _
  %s5 = ssub.s32 1, %s3
  %s6 = scalar_select 0, %s5, %s3
  // Predicated region
  $region2: #{pyramid_pooling_forward.16} parent=0 // pred_check
    _
  $region3: #{pyramid_pooling_forward.16} parent=0 // pred_check_branch
    %8 = sbr.rel (0) target = $region5
  $region4: #{pyramid_pooling_forward.16} parent=0 // pred_region
    _
  $region5: #{pyramid_pooling_forward.16} parent=0 // pred_fallthru
    _
  // Predicated region
  $region6: #{pyramid_pooling_forward.16} parent=0 // pred_check
    _
  $region7: #{pyramid_pooling_forward.16} parent=0 // pred_check_branch
    %10 = sbr.rel (0) target = $region9
  $region8: #{pyramid_pooling_forward.16} parent=0 // pred_region
    _
  $region9: #{pyramid_pooling_forward.16} parent=0 // pred_fallthru
    _
  %v11 = vld [vmem:[%s0] sm:$0xff]
  %v12 = vld [vmem:[%s0 + $0x8] sm:$0xff]
  %v13 = vld [vmem:[%s0 + $0x10] sm:$0xff]
  %v14 = vld [vmem:[%s0 + $0x18] sm:$0xff]
  %v15 = vld [vmem:[%s0 + $0x20] sm:$0xff]
  %v16 = vld [vmem:[%s0 + $0x28] sm:$0xff]
  %v17 = vld [vmem:[%s0 + $0x30] sm:$0xff]
  %v18 = vld [vmem:[%s0 + $0x38] sm:$0xff]
  %v19 = vld [vmem:[%s0 + $0x40] sm:$0xff]
  %v20 = vld [vmem:[%s1] sm:$0xf]
  %vm21 = vcmask 31744
  %v23 = vsel %vm21, %v11, 0
  %v26 = vsel %vm21, %v12, 0
  %v29 = vsel %vm21, %v13, 0
  %v32 = vsel %vm21, %v14, 0
  %v35 = vsel %vm21, %v15, 0
  %v38 = vsel %vm21, %v16, 0
  %v41 = vsel %vm21, %v17, 0
  %v44 = vsel %vm21, %v18, 0
  %v47 = vsel %vm21, %v19, 0
  %vm49 = vcmask 1043456
  %v51 = vsel %vm49, %v20, 0
  %53 = vmatprep.subr.mxu0 0.0
  %54 = vmatpush1.msra.mxu0 %v51
  %55 = vmatprep.subr.mxu0 0.0
  %56 = vmatpush1.msra.mxu0 0.0
  %57 = vmatprep.subr.mxu0 0.0
  %58 = vmatpush1.msra.mxu0 0.0
  %59 = vmatprep.subr.mxu0 0.0
  %60 = vmatpush1.msra.mxu0 0.0
  %61 = vmatprep.subr.mxu0 0.0
  %62 = vmatpush1.msra.mxu0 0.0
  %63 = vmatprep.subr.mxu0 0.0
  %64 = vmatpush1.msra.mxu0 0.0
  %65 = vmatprep.subr.mxu0 0.0
  %66 = vmatpush1.msra.mxu0 0.0
  %67 = vmatprep.subr.mxu0 0.0
  %68 = vmatpush1.msra.mxu0 0.0
  %69 = vmatprep.subr.mxu0 0.0
  %70 = vmatpush1.msra.mxu0 0.0
  %71 = vmatprep.subr.mxu0 0.0
  %72 = vmatpush1.msra.mxu0 0.0
  %73 = vmatprep.subr.mxu0 0.0
  %74 = vmatpush1.msra.mxu0 0.0
  %75 = vmatprep.subr.mxu0 0.0
  %76 = vmatpush1.msra.mxu0 0.0
  %77 = vmatprep.subr.mxu0 0.0
  %78 = vmatpush1.msra.mxu0 0.0
  %79 = vmatprep.subr.mxu0 0.0
  %80 = vmatpush1.msra.mxu0 0.0
  %81 = vmatprep.subr.mxu0 0.0
  %82 = vmatpush1.msra.mxu0 0.0
  %83 = vmatprep.subr.mxu0 0.0
  %84 = vmatpush1.msra.mxu0 0.0
  %85 = vmatprep.subr.mxu0 0.0
  %86 = vmatpush1.msra.mxu0 0.0
  %87 = vmatprep.subr.mxu0 0.0
  %88 = vmatpush1.msra.mxu0 0.0
  %89 = vmatprep.subr.mxu0 0.0
  %90 = vmatpush1.msra.mxu0 0.0
  %91 = vmatprep.subr.mxu0 0.0
  %92 = vmatpush1.msra.mxu0 0.0
  %93 = vmatprep.subr.mxu0 0.0
  %94 = vmatpush1.msra.mxu0 0.0
  %95 = vmatprep.subr.mxu0 0.0
  %96 = vmatpush1.msra.mxu0 0.0
  %97 = vmatprep.subr.mxu0 0.0
  %98 = vmatpush1.msra.mxu0 0.0
  %99 = vmatprep.subr.mxu0 0.0
  %100 = vmatpush1.msra.mxu0 0.0
  %101 = vmatprep.subr.mxu0 0.0
  %102 = vmatpush1.msra.mxu0 0.0
  %103 = vmatprep.subr.mxu0 0.0
  %104 = vmatpush1.msra.mxu0 0.0
  %105 = vmatprep.subr.mxu0 0.0
  %106 = vmatpush1.msra.mxu0 0.0
  %107 = vmatprep.subr.mxu0 0.0
  %108 = vmatpush1.msra.mxu0 0.0
  %109 = vmatprep.subr.mxu0 0.0
  %110 = vmatpush1.msra.mxu0 0.0
  %111 = vmatprep.subr.mxu0 0.0
  %112 = vmatpush1.msra.mxu0 0.0
  %113 = vmatprep.subr.mxu0 0.0
  %114 = vmatpush1.msra.mxu0 0.0
  %115 = vmatprep.subr.mxu0 0.0
  %116 = vmatpush1.msra.mxu0 0.0
  %117 = vmatprep.mubr.f32.mxu0 0.0
  %118 = vmatmul.mubr.f32.gmra.mrb[0].mxu0 %v23
  %v119 = vpop.f32.mrb[0].mxu0
  %v120 = vadd.f32 0.0, %v119
  %v121 = vpop.f32.mrb[0].mxu0
  %122 = vmatprep.mubr.f32.mxu0 0.0
  %123 = vmatmul.mubr.f32.gmra.mrb[0].mxu0 %v26
  %v124 = vpop.f32.mrb[0].mxu0
  %v125 = vadd.f32 0.0, %v124
  %v126 = vpop.f32.mrb[0].mxu0
  %127 = vmatprep.mubr.f32.mxu0 0.0
  %128 = vmatmul.mubr.f32.gmra.mrb[0].mxu0 %v29
  %v129 = vpop.f32.mrb[0].mxu0
  %v130 = vadd.f32 0.0, %v129
  %v131 = vpop.f32.mrb[0].mxu0
  %132 = vmatprep.mubr.f32.mxu0 0.0
  %133 = vmatmul.mubr.f32.gmra.mrb[0].mxu0 %v32
  %v134 = vpop.f32.mrb[0].mxu0
  %v135 = vadd.f32 0.0, %v134
  %v136 = vpop.f32.mrb[0].mxu0
  %137 = vmatprep.mubr.f32.mxu0 0.0
  %138 = vmatmul.mubr.f32.gmra.mrb[0].mxu0 %v35
  %v139 = vpop.f32.mrb[0].mxu0
  %v140 = vadd.f32 0.0, %v139
  %v141 = vpop.f32.mrb[0].mxu0
  %142 = vmatprep.mubr.f32.mxu0 0.0
  %143 = vmatmul.mubr.f32.gmra.mrb[0].mxu0 %v38
  %v144 = vpop.f32.mrb[0].mxu0
  %v145 = vadd.f32 0.0, %v144
  %v146 = vpop.f32.mrb[0].mxu0
  %147 = vmatprep.mubr.f32.mxu0 0.0
  %148 = vmatmul.mubr.f32.gmra.mrb[0].mxu0 %v41
  %v149 = vpop.f32.mrb[0].mxu0
  %v150 = vadd.f32 0.0, %v149
  %v151 = vpop.f32.mrb[0].mxu0
  %152 = vmatprep.mubr.f32.mxu0 0.0
  %153 = vmatmul.mubr.f32.gmra.mrb[0].mxu0 %v44
  %v154 = vpop.f32.mrb[0].mxu0
  %v155 = vadd.f32 0.0, %v154
  %v156 = vpop.f32.mrb[0].mxu0
  %157 = vmatprep.mubr.f32.mxu0 0.0
  %158 = vmatmul.mubr.f32.gmra.mrb[0].mxu0 %v47
  %v159 = vpop.f32.mrb[0].mxu0
  %v160 = vadd.f32 0.0, %v159
  %v161 = vpop.f32.mrb[0].mxu0
  %162 = vdwg.mxu0
  %v163 = vadd.f32 %v120, %v125
  %v164 = vadd.f32 %v163, %v130
  %v165 = vadd.f32 %v164, %v135
  %v166 = vadd.f32 %v165, %v140
  %v167 = vadd.f32 %v166, %v145
  %v168 = vadd.f32 %v167, %v150
  %v169 = vadd.f32 %v168, %v155
  %v170 = vadd.f32 %v169, %v160
  %v171 = vrot.slane %v170, 4
  %v172 = vadd.f32 %v170, %v171
  %v173 = vrot.slane %v172, 2
  %v174 = vadd.f32 %v172, %v173
  %v175 = vrot.slane %v174, 1
  %v176 = vadd.f32 %v174, %v175
  %v177 = vmul.f32 %v120, %v120
  %v178 = vmul.f32 %v125, %v125
  %v179 = vmul.f32 %v130, %v130
  %v180 = vmul.f32 %v135, %v135
  %v181 = vmul.f32 %v140, %v140
  %v182 = vmul.f32 %v145, %v145
  %v183 = vmul.f32 %v150, %v150
  %v184 = vmul.f32 %v155, %v155
  %v185 = vmul.f32 %v160, %v160
  %v186 = vadd.f32 %v177, %v178
  %v187 = vadd.f32 %v186, %v179
  %v188 = vadd.f32 %v187, %v180
  %v189 = vadd.f32 %v188, %v181
  %v190 = vadd.f32 %v189, %v182
  %v191 = vadd.f32 %v190, %v183
  %v192 = vadd.f32 %v191, %v184
  %v193 = vadd.f32 %v192, %v185
  %v194 = vrot.slane %v193, 4
  %v195 = vadd.f32 %v193, %v194
  %v196 = vrot.slane %v195, 2
  %v197 = vadd.f32 %v195, %v196
  %v198 = vrot.slane %v197, 1
  %v199 = vadd.f32 %v197, %v198
  %vm200 = vcmask 1040384
  %v201 = vsel %vm200, %v176, %v199
  %vm202 = vcmask 1041408
  %v203 = vsel %vm202, %v201, 0.0
  %204 = vst [vmem:[%s2] sm:$0xff] %v203
  // Predicated region
  $region10: #{pyramid_pooling_forward.16} parent=0 // pred_check
    _
  $region11: #{pyramid_pooling_forward.16} parent=0 // pred_check_branch
    %206 = sbr.rel (0) target = $region13
  $region12: #{pyramid_pooling_forward.16} parent=0 // pred_region
    _
  $region13: #{pyramid_pooling_forward.16} parent=0 // pred_fallthru
    _
  // Predicated region
  $region14: #{pyramid_pooling_forward.16} parent=0 // pred_check
    _
  $region15: #{pyramid_pooling_forward.16} parent=0 // pred_check_branch
    %208 = sbr.rel (0) target = $region17
  $region16: #{pyramid_pooling_forward.16} parent=0 // pred_region
    _
  $region17: #{pyramid_pooling_forward.16} parent=0 // pred_fallthru
    _

// kernel: pyramid_pooling_forward.18
$region0: #{pyramid_pooling_forward.18}
  #allocation0 [shape = 'u32[]', space=smem, size = 0x4, offset = 0x4, fixed_abs, tag = 'smem constant byte address 0x4 - core index']
  #allocation1 [shape = 'u32[144,128]{1,0:T(1,128)}', space=vmem, size = 0x12000, scoped, tag = 'internal scratch']
  %s0 = inlined_call_operand.vmem [shape: f32[512,8], index: 0, kind: input, shape index: {}]
  %s1 = inlined_call_operand.vmem [shape: f32[8,128], index: 1, kind: input, shape index: {}]
  %s2 = inlined_call_operand.vmem [shape: f32[8,128], index: 2, kind: output, shape index: {}]
  %s3 = sld [smem:[#allocation0]]
  $region18: #{pyramid_pooling_forward.18} parent=0
    _
  %s5 = ssub.s32 1, %s3
  %s6 = scalar_select 0, %s5, %s3
  // Predicated region
  $region2: #{pyramid_pooling_forward.18} parent=0 // pred_check
    _
  $region3: #{pyramid_pooling_forward.18} parent=0 // pred_check_branch
    %8 = sbr.rel (0) target = $region5
  $region4: #{pyramid_pooling_forward.18} parent=0 // pred_region
    _
  $region5: #{pyramid_pooling_forward.18} parent=0 // pred_fallthru
    _
  // Predicated region
  $region6: #{pyramid_pooling_forward.18} parent=0 // pred_check
    _
  $region7: #{pyramid_pooling_forward.18} parent=0 // pred_check_branch
    %10 = sbr.rel (0) target = $region9
  $region8: #{pyramid_pooling_forward.18} parent=0 // pred_region
    _
  $region9: #{pyramid_pooling_forward.18} parent=0 // pred_fallthru
    _
  %v11 = vld [vmem:[%s0] sm:$0xff]
  %v12 = vld [vmem:[%s0 + $0x8] sm:$0xff]
  %v13 = vld [vmem:[%s0 + $0x10] sm:$0xff]
  %v14 = vld [vmem:[%s0 + $0x18] sm:$0xff]
  %v15 = vld [vmem:[%s0 + $0x20] sm:$0xff]
  %v16 = vld [vmem:[%s0 + $0x28] sm:$0xff]
  %v17 = vld [vmem:[%s0 + $0x30] sm:$0xff]
  %v18 = vld [vmem:[%s0 + $0x38] sm:$0xff]
  %v19 = vld [vmem:[%s0 + $0x40] sm:$0xff]
  %v20 = vld [vmem:[%s0 + $0x48] sm:$0xff]
  %v21 = vld [vmem:[%s0 + $0x50] sm:$0xff]
  %v22 = vld [vmem:[%s0 + $0x58] sm:$0xff]
  %v23 = vld [vmem:[%s0 + $0x60] sm:$0xff]
  %v24 = vld [vmem:[%s0 + $0x68] sm:$0xff]
  %v25 = vld [vmem:[%s0 + $0x70] sm:$0xff]
  %v26 = vld [vmem:[%s0 + $0x78] sm:$0xff]
  %v27 = vld [vmem:[%s0 + $0x80] sm:$0xff]
  %v28 = vld [vmem:[%s0 + $0x88] sm:$0xff]
  %v29 = vld [vmem:[%s0 + $0x90] sm:$0xff]
  %v30 = vld [vmem:[%s0 + $0x98] sm:$0xff]
  %v31 = vld [vmem:[%s0 + $0xa0] sm:$0xff]
  %v32 = vld [vmem:[%s0 + $0xa8] sm:$0xff]
  %v33 = vld [vmem:[%s0 + $0xb0] sm:$0xff]
  %v34 = vld [vmem:[%s0 + $0xb8] sm:$0xff]
  %v35 = vld [vmem:[%s0 + $0xc0] sm:$0xff]
  %v36 = vld [vmem:[%s0 + $0xc8] sm:$0xff]
  %v37 = vld [vmem:[%s0 + $0xd0] sm:$0xff]
  %v38 = vld [vmem:[%s0 + $0xd8] sm:$0xff]
  %v39 = vld [vmem:[%s0 + $0xe0] sm:$0xff]
  %v40 = vld [vmem:[%s0 + $0xe8] sm:$0xff]
  %v41 = vld [vmem:[%s0 + $0xf0] sm:$0xff]
  %v42 = vld [vmem:[%s0 + $0xf8] sm:$0xff]
  %v43 = vld [vmem:[%s0 + $0x100] sm:$0xff]
  %v44 = vld [vmem:[%s0 + $0x108] sm:$0xff]
  %v45 = vld [vmem:[%s0 + $0x110] sm:$0xff]
  %v46 = vld [vmem:[%s0 + $0x118] sm:$0xff]
  %v47 = vld [vmem:[%s0 + $0x120] sm:$0xff]
  %v48 = vld [vmem:[%s0 + $0x128] sm:$0xff]
  %v49 = vld [vmem:[%s0 + $0x130] sm:$0xff]
  %v50 = vld [vmem:[%s0 + $0x138] sm:$0xff]
  %v51 = vld [vmem:[%s0 + $0x140] sm:$0xff]
  %v52 = vld [vmem:[%s0 + $0x148] sm:$0xff]
  %v53 = vld [vmem:[%s0 + $0x150] sm:$0xff]
  %v54 = vld [vmem:[%s0 + $0x158] sm:$0xff]
  %v55 = vld [vmem:[%s0 + $0x160] sm:$0xff]
  %v56 = vld [vmem:[%s0 + $0x168] sm:$0xff]
  %v57 = vld [vmem:[%s0 + $0x170] sm:$0xff]
  %v58 = vld [vmem:[%s0 + $0x178] sm:$0xff]
  %v59 = vld [vmem:[%s0 + $0x180] sm:$0xff]
  %v60 = vld [vmem:[%s0 + $0x188] sm:$0xff]
  %v61 = vld [vmem:[%s0 + $0x190] sm:$0xff]
  %v62 = vld [vmem:[%s0 + $0x198] sm:$0xff]
  %v63 = vld [vmem:[%s0 + $0x1a0] sm:$0xff]
  %v64 = vld [vmem:[%s0 + $0x1a8] sm:$0xff]
  %v65 = vld [vmem:[%s0 + $0x1b0] sm:$0xff]
  %v66 = vld [vmem:[%s0 + $0x1b8] sm:$0xff]
  %v67 = vld [vmem:[%s0 + $0x1c0] sm:$0xff]
  %v68 = vld [vmem:[%s0 + $0x1c8] sm:$0xff]
  %v69 = vld [vmem:[%s0 + $0x1d0] sm:$0xff]
  %v70 = vld [vmem:[%s0 + $0x1d8] sm:$0xff]
  %v71 = vld [vmem:[%s0 + $0x1e0] sm:$0xff]
  %v72 = vld [vmem:[%s0 + $0x1e8] sm:$0xff]
  %v73 = vld [vmem:[%s0 + $0x1f0] sm:$0xff]
  %v74 = vld [vmem:[%s0 + $0x1f8] sm:$0xff]
  %v75 = vld [vmem:[%s1] sm:$0xff]
  %vm76 = vcmask 64512
  %v78 = vsel %vm76, %v11, 0
  %v81 = vsel %vm76, %v12, 0
  %v84 = vsel %vm76, %v13, 0
  %v87 = vsel %vm76, %v14, 0
  %v90 = vsel %vm76, %v15, 0
  %v93 = vsel %vm76, %v16, 0
  %v96 = vsel %vm76, %v17, 0
  %v99 = vsel %vm76, %v18, 0
  %v102 = vsel %vm76, %v19, 0
  %v105 = vsel %vm76, %v20, 0
  %v108 = vsel %vm76, %v21, 0
  %v111 = vsel %vm76, %v22, 0
  %v114 = vsel %vm76, %v23, 0
  %v117 = vsel %vm76, %v24, 0
  %v120 = vsel %vm76, %v25, 0
  %v123 = vsel %vm76, %v26, 0
  %v126 = vsel %vm76, %v27, 0
  %v129 = vsel %vm76, %v28, 0
  %v132 = vsel %vm76, %v29, 0
  %v135 = vsel %vm76, %v30, 0
  %v138 = vsel %vm76, %v31, 0
  %v141 = vsel %vm76, %v32, 0
  %v144 = vsel %vm76, %v33, 0
  %v147 = vsel %vm76, %v34, 0
  %v150 = vsel %vm76, %v35, 0
  %v153 = vsel %vm76, %v36, 0
  %v156 = vsel %vm76, %v37, 0
  %v159 = vsel %vm76, %v38, 0
  %v162 = vsel %vm76, %v39, 0
  %v165 = vsel %vm76, %v40, 0
  %v168 = vsel %vm76, %v41, 0
  %v171 = vsel %vm76, %v42, 0
  %v174 = vsel %vm76, %v43, 0
  %v177 = vsel %vm76, %v44, 0
  %v180 = vsel %vm76, %v45, 0
  %v183 = vsel %vm76, %v46, 0
  %v186 = vsel %vm76, %v47, 0
  %v189 = vsel %vm76, %v48, 0
  %v192 = vsel %vm76, %v49, 0
  %v195 = vsel %vm76, %v50, 0
  %v198 = vsel %vm76, %v51, 0
  %v201 = vsel %vm76, %v52, 0
  %v204 = vsel %vm76, %v53, 0
  %v207 = vsel %vm76, %v54, 0
  %v210 = vsel %vm76, %v55, 0
  %v213 = vsel %vm76, %v56, 0
  %v216 = vsel %vm76, %v57, 0
  %v219 = vsel %vm76, %v58, 0
  %v222 = vsel %vm76, %v59, 0
  %v225 = vsel %vm76, %v60, 0
  %v228 = vsel %vm76, %v61, 0
  %v231 = vsel %vm76, %v62, 0
  %v234 = vsel %vm76, %v63, 0
  %v237 = vsel %vm76, %v64, 0
  %v240 = vsel %vm76, %v65, 0
  %v243 = vsel %vm76, %v66, 0
  %v246 = vsel %vm76, %v67, 0
  %v249 = vsel %vm76, %v68, 0
  %v252 = vsel %vm76, %v69, 0
  %v255 = vsel %vm76, %v70, 0
  %v258 = vsel %vm76, %v71, 0
  %v261 = vsel %vm76, %v72, 0
  %v264 = vsel %vm76, %v73, 0
  %v267 = vsel %vm76, %v74, 0
  %269 = vmatprep.subr.mxu0 0.0
  %270 = vmatpush1.msra.mxu0 %v75
  %271 = vmatprep.subr.mxu0 0.0
  %272 = vmatpush1.msra.mxu0 0.0
  %273 = vmatprep.subr.mxu0 0.0
  %274 = vmatpush1.msra.mxu0 0.0
  %275 = vmatprep.subr.mxu0 0.0
  %276 = vmatpush1.msra.mxu0 0.0
  %277 = vmatprep.subr.mxu0 0.0
  %278 = vmatpush1.msra.mxu0 0.0
  %279 = vmatprep.subr.mxu0 0.0
  %280 = vmatpush1.msra.mxu0 0.0
  %281 = vmatprep.subr.mxu0 0.0
  %282 = vmatpush1.msra.mxu0 0.0
  %283 = vmatprep.subr.mxu0 0.0
  %284 = vmatpush1.msra.mxu0 0.0
  %285 = vmatprep.subr.mxu0 0.0
  %286 = vmatpush1.msra.mxu0 0.0
  %287 = vmatprep.subr.mxu0 0.0
  %288 = vmatpush1.msra.mxu0 0.0
  %289 = vmatprep.subr.mxu0 0.0
  %290 = vmatpush1.msra.mxu0 0.0
  %291 = vmatprep.subr.mxu0 0.0
  %292 = vmatpush1.msra.mxu0 0.0
  %293 = vmatprep.subr.mxu0 0.0
  %294 = vmatpush1.msra.mxu0 0.0
  %295 = vmatprep.subr.mxu0 0.0
  %296 = vmatpush1.msra.mxu0 0.0
  %297 = vmatprep.subr.mxu0 0.0
  %298 = vmatpush1.msra.mxu0 0.0
  %299 = vmatprep.subr.mxu0 0.0
  %300 = vmatpush1.msra.mxu0 0.0
  %301 = vmatprep.subr.mxu0 0.0
  %302 = vmatpush1.msra.mxu0 0.0
  %303 = vmatprep.subr.mxu0 0.0
  %304 = vmatpush1.msra.mxu0 0.0
  %305 = vmatprep.subr.mxu0 0.0
  %306 = vmatpush1.msra.mxu0 0.0
  %307 = vmatprep.subr.mxu0 0.0
  %308 = vmatpush1.msra.mxu0 0.0
  %309 = vmatprep.subr.mxu0 0.0
  %310 = vmatpush1.msra.mxu0 0.0
  %311 = vmatprep.subr.mxu0 0.0
  %312 = vmatpush1.msra.mxu0 0.0
  %313 = vmatprep.subr.mxu0 0.0
  %314 = vmatpush1.msra.mxu0 0.0
  %315 = vmatprep.subr.mxu0 0.0
  %316 = vmatpush1.msra.mxu0 0.0
  %317 = vmatprep.subr.mxu0 0.0
  %318 = vmatpush1.msra.mxu0 0.0
  %319 = vmatprep.subr.mxu0 0.0
  %320 = vmatpush1.msra.mxu0 0.0
  %321 = vmatprep.subr.mxu0 0.0
  %322 = vmatpush1.msra.mxu0 0.0
  %323 = vmatprep.subr.mxu0 0.0
  %324 = vmatpush1.msra.mxu0 0.0
  %325 = vmatprep.subr.mxu0 0.0
  %326 = vmatpush1.msra.mxu0 0.0
  %327 = vmatprep.subr.mxu0 0.0
  %328 = vmatpush1.msra.mxu0 0.0
  %329 = vmatprep.subr.mxu0 0.0
  %330 = vmatpush1.msra.mxu0 0.0
  %331 = vmatprep.subr.mxu0 0.0
  %332 = vmatpush1.msra.mxu0 0.0
  %333 = vmatprep.mubr.f32.mxu0 0.0
  %334 = vmatmul.mubr.f32.gmra.mrb[0].mxu0 %v78
  %v335 = vpop.f32.mrb[0].mxu0
  %v336 = vadd.f32 0.0, %v335
  %v337 = vpop.f32.mrb[0].mxu0
  %338 = vmatprep.mubr.f32.mxu0 0.0
  %339 = vmatmul.mubr.f32.gmra.mrb[0].mxu0 %v81
  %v340 = vpop.f32.mrb[0].mxu0
  %v341 = vadd.f32 0.0, %v340
  %v342 = vpop.f32.mrb[0].mxu0
  %343 = vmatprep.mubr.f32.mxu0 0.0
  %344 = vmatmul.mubr.f32.gmra.mrb[0].mxu0 %v84
  %v345 = vpop.f32.mrb[0].mxu0
  %v346 = vadd.f32 0.0, %v345
  %v347 = vpop.f32.mrb[0].mxu0
  %348 = vmatprep.mubr.f32.mxu0 0.0
  %349 = vmatmul.mubr.f32.gmra.mrb[0].mxu0 %v87
  %v350 = vpop.f32.mrb[0].mxu0
  %v351 = vadd.f32 0.0, %v350
  %v352 = vpop.f32.mrb[0].mxu0
  %353 = vmatprep.mubr.f32.mxu0 0.0
  %354 = vmatmul.mubr.f32.gmra.mrb[0].mxu0 %v90
  %v355 = vpop.f32.mrb[0].mxu0
  %v356 = vadd.f32 0.0, %v355
  %v357 = vpop.f32.mrb[0].mxu0
  %358 = vmatprep.mubr.f32.mxu0 0.0
  %359 = vmatmul.mubr.f32.gmra.mrb[0].mxu0 %v93
  %v360 = vpop.f32.mrb[0].mxu0
  %v361 = vadd.f32 0.0, %v360
  %v362 = vpop.f32.mrb[0].mxu0
  %363 = vmatprep.mubr.f32.mxu0 0.0
  %364 = vmatmul.mubr.f32.gmra.mrb[0].mxu0 %v96
  %v365 = vpop.f32.mrb[0].mxu0
  %v366 = vadd.f32 0.0, %v365
  %v367 = vpop.f32.mrb[0].mxu0
  %368 = vmatprep.mubr.f32.mxu0 0.0
  %369 = vmatmul.mubr.f32.gmra.mrb[0].mxu0 %v99
  %v370 = vpop.f32.mrb[0].mxu0
  %v371 = vadd.f32 0.0, %v370
  %v372 = vpop.f32.mrb[0].mxu0
  %373 = vmatprep.mubr.f32.mxu0 0.0
  %374 = vmatmul.mubr.f32.gmra.mrb[0].mxu0 %v102
  %v375 = vpop.f32.mrb[0].mxu0
  %v376 = vadd.f32 0.0, %v375
  %v377 = vpop.f32.mrb[0].mxu0
  %378 = vmatprep.mubr.f32.mxu0 0.0
  %379 = vmatmul.mubr.f32.gmra.mrb[0].mxu0 %v105
  %v380 = vpop.f32.mrb[0].mxu0
  %v381 = vadd.f32 0.0, %v380
  %v382 = vpop.f32.mrb[0].mxu0
  %383 = vmatprep.mubr.f32.mxu0 0.0
  %384 = vmatmul.mubr.f32.gmra.mrb[0].mxu0 %v108
  %v385 = vpop.f32.mrb[0].mxu0
  %v386 = vadd.f32 0.0, %v385
  %v387 = vpop.f32.mrb[0].mxu0
  %388 = vmatprep.mubr.f32.mxu0 0.0
  %389 = vmatmul.mubr.f32.gmra.mrb[0].mxu0 %v111
  %v390 = vpop.f32.mrb[0].mxu0
  %v391 = vadd.f32 0.0, %v390
  %v392 = vpop.f32.mrb[0].mxu0
  %393 = vmatprep.mubr.f32.mxu0 0.0
  %394 = vmatmul.mubr.f32.gmra.mrb[0].mxu0 %v114
  %v395 = vpop.f32.mrb[0].mxu0
  %v396 = vadd.f32 0.0, %v395
  %v397 = vpop.f32.mrb[0].mxu0
  %398 = vmatprep.mubr.f32.mxu0 0.0
  %399 = vmatmul.mubr.f32.gmra.mrb[0].mxu0 %v117
  %v400 = vpop.f32.mrb[0].mxu0
  %v401 = vadd.f32 0.0, %v400
  %v402 = vpop.f32.mrb[0].mxu0
  %403 = vmatprep.mubr.f32.mxu0 0.0
  %404 = vmatmul.mubr.f32.gmra.mrb[0].mxu0 %v120
  %v405 = vpop.f32.mrb[0].mxu0
  %v406 = vadd.f32 0.0, %v405
  %v407 = vpop.f32.mrb[0].mxu0
  %408 = vmatprep.mubr.f32.mxu0 0.0
  %409 = vmatmul.mubr.f32.gmra.mrb[0].mxu0 %v123
  %v410 = vpop.f32.mrb[0].mxu0
  %v411 = vadd.f32 0.0, %v410
  %v412 = vpop.f32.mrb[0].mxu0
  %413 = vmatprep.mubr.f32.mxu0 0.0
  %414 = vmatmul.mubr.f32.gmra.mrb[0].mxu0 %v126
  %v415 = vpop.f32.mrb[0].mxu0
  %v416 = vadd.f32 0.0, %v415
  %v417 = vpop.f32.mrb[0].mxu0
  %418 = vmatprep.mubr.f32.mxu0 0.0
  %419 = vmatmul.mubr.f32.gmra.mrb[0].mxu0 %v129
  %v420 = vpop.f32.mrb[0].mxu0
  %v421 = vadd.f32 0.0, %v420
  %v422 = vpop.f32.mrb[0].mxu0
  %423 = vmatprep.mubr.f32.mxu0 0.0
  %424 = vmatmul.mubr.f32.gmra.mrb[0].mxu0 %v132
  %v425 = vpop.f32.mrb[0].mxu0
  %v426 = vadd.f32 0.0, %v425
  %v427 = vpop.f32.mrb[0].mxu0
  %428 = vmatprep.mubr.f32.mxu0 0.0
  %429 = vmatmul.mubr.f32.gmra.mrb[0].mxu0 %v135
  %v430 = vpop.f32.mrb[0].mxu0
  %v431 = vadd.f32 0.0, %v430
  %v432 = vpop.f32.mrb[0].mxu0
  %433 = vmatprep.mubr.f32.mxu0 0.0
  %434 = vmatmul.mubr.f32.gmra.mrb[0].mxu0 %v138
  %v435 = vpop.f32.mrb[0].mxu0
  %v436 = vadd.f32 0.0, %v435
  %v437 = vpop.f32.mrb[0].mxu0
  %438 = vmatprep.mubr.f32.mxu0 0.0
  %439 = vmatmul.mubr.f32.gmra.mrb[0].mxu0 %v141
  %v440 = vpop.f32.mrb[0].mxu0
  %v441 = vadd.f32 0.0, %v440
  %v442 = vpop.f32.mrb[0].mxu0
  %443 = vmatprep.mubr.f32.mxu0 0.0
  %444 = vmatmul.mubr.f32.gmra.mrb[0].mxu0 %v144
  %v445 = vpop.f32.mrb[0].mxu0
  %v446 = vadd.f32 0.0, %v445
  %v447 = vpop.f32.mrb[0].mxu0
  %448 = vmatprep.mubr.f32.mxu0 0.0
  %449 = vmatmul.mubr.f32.gmra.mrb[0].mxu0 %v147
  %v450 = vpop.f32.mrb[0].mxu0
  %v451 = vadd.f32 0.0, %v450
  %v452 = vpop.f32.mrb[0].mxu0
  %453 = vmatprep.mubr.f32.mxu0 0.0
  %454 = vmatmul.mubr.f32.gmra.mrb[0].mxu0 %v150
  %v455 = vpop.f32.mrb[0].mxu0
  %v456 = vadd.f32 0.0, %v455
  %v457 = vpop.f32.mrb[0].mxu0
  %458 = vmatprep.mubr.f32.mxu0 0.0
  %459 = vmatmul.mubr.f32.gmra.mrb[0].mxu0 %v153
  %v460 = vpop.f32.mrb[0].mxu0
  %v461 = vadd.f32 0.0, %v460
  %v462 = vpop.f32.mrb[0].mxu0
  %463 = vmatprep.mubr.f32.mxu0 0.0
  %464 = vmatmul.mubr.f32.gmra.mrb[0].mxu0 %v156
  %v465 = vpop.f32.mrb[0].mxu0
  %v466 = vadd.f32 0.0, %v465
  %v467 = vpop.f32.mrb[0].mxu0
  %468 = vmatprep.mubr.f32.mxu0 0.0
  %469 = vmatmul.mubr.f32.gmra.mrb[0].mxu0 %v159
  %v470 = vpop.f32.mrb[0].mxu0
  %v471 = vadd.f32 0.0, %v470
  %v472 = vpop.f32.mrb[0].mxu0
  %473 = vmatprep.mubr.f32.mxu0 0.0
  %474 = vmatmul.mubr.f32.gmra.mrb[0].mxu0 %v162
  %v475 = vpop.f32.mrb[0].mxu0
  %v476 = vadd.f32 0.0, %v475
  %v477 = vpop.f32.mrb[0].mxu0
  %478 = vmatprep.mubr.f32.mxu0 0.0
  %479 = vmatmul.mubr.f32.gmra.mrb[0].mxu0 %v165
  %v480 = vpop.f32.mrb[0].mxu0
  %v481 = vadd.f32 0.0, %v480
  %v482 = vpop.f32.mrb[0].mxu0
  %483 = vmatprep.mubr.f32.mxu0 0.0
  %484 = vmatmul.mubr.f32.gmra.mrb[0].mxu0 %v168
  %v485 = vpop.f32.mrb[0].mxu0
  %v486 = vadd.f32 0.0, %v485
  %v487 = vpop.f32.mrb[0].mxu0
  %488 = vmatprep.mubr.f32.mxu0 0.0
  %489 = vmatmul.mubr.f32.gmra.mrb[0].mxu0 %v171
  %v490 = vpop.f32.mrb[0].mxu0
  %v491 = vadd.f32 0.0, %v490
  %v492 = vpop.f32.mrb[0].mxu0
  %493 = vmatprep.mubr.f32.mxu0 0.0
  %494 = vmatmul.mubr.f32.gmra.mrb[0].mxu0 %v174
  %v495 = vpop.f32.mrb[0].mxu0
  %v496 = vadd.f32 0.0, %v495
  %v497 = vpop.f32.mrb[0].mxu0
  %498 = vmatprep.mubr.f32.mxu0 0.0
  %499 = vmatmul.mubr.f32.gmra.mrb[0].mxu0 %v177
  %v500 = vpop.f32.mrb[0].mxu0
  %v501 = vadd.f32 0.0, %v500
  %v502 = vpop.f32.mrb[0].mxu0
  %503 = vmatprep.mubr.f32.mxu0 0.0
  %504 = vmatmul.mubr.f32.gmra.mrb[0].mxu0 %v180
  %v505 = vpop.f32.mrb[0].mxu0
  %v506 = vadd.f32 0.0, %v505
  %v507 = vpop.f32.mrb[0].mxu0
  %508 = vmatprep.mubr.f32.mxu0 0.0
  %509 = vmatmul.mubr.f32.gmra.mrb[0].mxu0 %v183
  %v510 = vpop.f32.mrb[0].mxu0
  %v511 = vadd.f32 0.0, %v510
  %v512 = vpop.f32.mrb[0].mxu0
  %513 = vmatprep.mubr.f32.mxu0 0.0
  %514 = vmatmul.mubr.f32.gmra.mrb[0].mxu0 %v186
  %v515 = vpop.f32.mrb[0].mxu0
  %v516 = vadd.f32 0.0, %v515
  %v517 = vpop.f32.mrb[0].mxu0
  %518 = vmatprep.mubr.f32.mxu0 0.0
  %519 = vmatmul.mubr.f32.gmra.mrb[0].mxu0 %v189
  %v520 = vpop.f32.mrb[0].mxu0
  %v521 = vadd.f32 0.0, %v520
  %v522 = vpop.f32.mrb[0].mxu0
  %523 = vmatprep.mubr.f32.mxu0 0.0
  %524 = vmatmul.mubr.f32.gmra.mrb[0].mxu0 %v192
  %v525 = vpop.f32.mrb[0].mxu0
  %v526 = vadd.f32 0.0, %v525
  %v527 = vpop.f32.mrb[0].mxu0
  %528 = vmatprep.mubr.f32.mxu0 0.0
  %529 = vmatmul.mubr.f32.gmra.mrb[0].mxu0 %v195
  %v530 = vpop.f32.mrb[0].mxu0
  %v531 = vadd.f32 0.0, %v530
  %v532 = vpop.f32.mrb[0].mxu0
  %533 = vmatprep.mubr.f32.mxu0 0.0
  %534 = vmatmul.mubr.f32.gmra.mrb[0].mxu0 %v198
  %v535 = vpop.f32.mrb[0].mxu0
  %v536 = vadd.f32 0.0, %v535
  %v537 = vpop.f32.mrb[0].mxu0
  %538 = vmatprep.mubr.f32.mxu0 0.0
  %539 = vmatmul.mubr.f32.gmra.mrb[0].mxu0 %v201
  %v540 = vpop.f32.mrb[0].mxu0
  %v541 = vadd.f32 0.0, %v540
  %v542 = vpop.f32.mrb[0].mxu0
  %543 = vmatprep.mubr.f32.mxu0 0.0
  %544 = vmatmul.mubr.f32.gmra.mrb[0].mxu0 %v204
  %v545 = vpop.f32.mrb[0].mxu0
  %v546 = vadd.f32 0.0, %v545
  %v547 = vpop.f32.mrb[0].mxu0
  %548 = vmatprep.mubr.f32.mxu0 0.0
  %549 = vmatmul.mubr.f32.gmra.mrb[0].mxu0 %v207
  %v550 = vpop.f32.mrb[0].mxu0
  %v551 = vadd.f32 0.0, %v550
  %v552 = vpop.f32.mrb[0].mxu0
  %553 = vmatprep.mubr.f32.mxu0 0.0
  %554 = vmatmul.mubr.f32.gmra.mrb[0].mxu0 %v210
  %v555 = vpop.f32.mrb[0].mxu0
  %v556 = vadd.f32 0.0, %v555
  %v557 = vpop.f32.mrb[0].mxu0
  %558 = vmatprep.mubr.f32.mxu0 0.0
  %559 = vmatmul.mubr.f32.gmra.mrb[0].mxu0 %v213
  %v560 = vpop.f32.mrb[0].mxu0
  %v561 = vadd.f32 0.0, %v560
  %v562 = vpop.f32.mrb[0].mxu0
  %563 = vmatprep.mubr.f32.mxu0 0.0
  %564 = vmatmul.mubr.f32.gmra.mrb[0].mxu0 %v216
  %v565 = vpop.f32.mrb[0].mxu0
  %v566 = vadd.f32 0.0, %v565
  %v567 = vpop.f32.mrb[0].mxu0
  %568 = vmatprep.mubr.f32.mxu0 0.0
  %569 = vmatmul.mubr.f32.gmra.mrb[0].mxu0 %v219
  %v570 = vpop.f32.mrb[0].mxu0
  %v571 = vadd.f32 0.0, %v570
  %v572 = vpop.f32.mrb[0].mxu0
  %573 = vmatprep.mubr.f32.mxu0 0.0
  %574 = vmatmul.mubr.f32.gmra.mrb[0].mxu0 %v222
  %v575 = vpop.f32.mrb[0].mxu0
  %v576 = vadd.f32 0.0, %v575
  %v577 = vpop.f32.mrb[0].mxu0
  %578 = vmatprep.mubr.f32.mxu0 0.0
  %579 = vmatmul.mubr.f32.gmra.mrb[0].mxu0 %v225
  %v580 = vpop.f32.mrb[0].mxu0
  %v581 = vadd.f32 0.0, %v580
  %v582 = vpop.f32.mrb[0].mxu0
  %583 = vmatprep.mubr.f32.mxu0 0.0
  %584 = vmatmul.mubr.f32.gmra.mrb[0].mxu0 %v228
  %v585 = vpop.f32.mrb[0].mxu0
  %v586 = vadd.f32 0.0, %v585
  %v587 = vpop.f32.mrb[0].mxu0
  %588 = vmatprep.mubr.f32.mxu0 0.0
  %589 = vmatmul.mubr.f32.gmra.mrb[0].mxu0 %v231
  %v590 = vpop.f32.mrb[0].mxu0
  %v591 = vadd.f32 0.0, %v590
  %v592 = vpop.f32.mrb[0].mxu0
  %593 = vmatprep.mubr.f32.mxu0 0.0
  %594 = vmatmul.mubr.f32.gmra.mrb[0].mxu0 %v234
  %v595 = vpop.f32.mrb[0].mxu0
  %v596 = vadd.f32 0.0, %v595
  %v597 = vpop.f32.mrb[0].mxu0
  %598 = vmatprep.mubr.f32.mxu0 0.0
  %599 = vmatmul.mubr.f32.gmra.mrb[0].mxu0 %v237
  %v600 = vpop.f32.mrb[0].mxu0
  %v601 = vadd.f32 0.0, %v600
  %v602 = vpop.f32.mrb[0].mxu0
  %603 = vmatprep.mubr.f32.mxu0 0.0
  %604 = vmatmul.mubr.f32.gmra.mrb[0].mxu0 %v240
  %v605 = vpop.f32.mrb[0].mxu0
  %v606 = vadd.f32 0.0, %v605
  %v607 = vpop.f32.mrb[0].mxu0
  %608 = vmatprep.mubr.f32.mxu0 0.0
  %609 = vmatmul.mubr.f32.gmra.mrb[0].mxu0 %v243
  %v610 = vpop.f32.mrb[0].mxu0
  %v611 = vadd.f32 0.0, %v610
  %v612 = vpop.f32.mrb[0].mxu0
  %613 = vmatprep.mubr.f32.mxu0 0.0
  %614 = vmatmul.mubr.f32.gmra.mrb[0].mxu0 %v246
  %v615 = vpop.f32.mrb[0].mxu0
  %v616 = vadd.f32 0.0, %v615
  %v617 = vpop.f32.mrb[0].mxu0
  %618 = vmatprep.mubr.f32.mxu0 0.0
  %619 = vmatmul.mubr.f32.gmra.mrb[0].mxu0 %v249
  %v620 = vpop.f32.mrb[0].mxu0
  %v621 = vadd.f32 0.0, %v620
  %v622 = vpop.f32.mrb[0].mxu0
  %623 = vmatprep.mubr.f32.mxu0 0.0
  %624 = vmatmul.mubr.f32.gmra.mrb[0].mxu0 %v252
  %v625 = vpop.f32.mrb[0].mxu0
  %v626 = vadd.f32 0.0, %v625
  %v627 = vpop.f32.mrb[0].mxu0
  %628 = vmatprep.mubr.f32.mxu0 0.0
  %629 = vmatmul.mubr.f32.gmra.mrb[0].mxu0 %v255
  %v630 = vpop.f32.mrb[0].mxu0
  %v631 = vadd.f32 0.0, %v630
  %v632 = vpop.f32.mrb[0].mxu0
  %633 = vmatprep.mubr.f32.mxu0 0.0
  %634 = vmatmul.mubr.f32.gmra.mrb[0].mxu0 %v258
  %v635 = vpop.f32.mrb[0].mxu0
  %v636 = vadd.f32 0.0, %v635
  %v637 = vpop.f32.mrb[0].mxu0
  %638 = vmatprep.mubr.f32.mxu0 0.0
  %639 = vmatmul.mubr.f32.gmra.mrb[0].mxu0 %v261
  %v640 = vpop.f32.mrb[0].mxu0
  %v641 = vadd.f32 0.0, %v640
  %v642 = vpop.f32.mrb[0].mxu0
  %643 = vmatprep.mubr.f32.mxu0 0.0
  %644 = vmatmul.mubr.f32.gmra.mrb[0].mxu0 %v264
  %v645 = vpop.f32.mrb[0].mxu0
  %v646 = vadd.f32 0.0, %v645
  %v647 = vpop.f32.mrb[0].mxu0
  %648 = vmatprep.mubr.f32.mxu0 0.0
  %649 = vmatmul.mubr.f32.gmra.mrb[0].mxu0 %v267
  %v650 = vpop.f32.mrb[0].mxu0
  %v651 = vadd.f32 0.0, %v650
  %v652 = vpop.f32.mrb[0].mxu0
  %653 = vdwg.mxu0
  %v654 = vadd.f32 %v336, %v341
  %v655 = vadd.f32 %v654, %v346
  %v656 = vadd.f32 %v655, %v351
  %v657 = vadd.f32 %v656, %v356
  %v658 = vadd.f32 %v657, %v361
  %v659 = vadd.f32 %v658, %v366
  %v660 = vadd.f32 %v659, %v371
  %v661 = vadd.f32 %v660, %v376
  %v662 = vadd.f32 %v661, %v381
  %v663 = vadd.f32 %v662, %v386
  %v664 = vadd.f32 %v663, %v391
  %v665 = vadd.f32 %v664, %v396
  %v666 = vadd.f32 %v665, %v401
  %v667 = vadd.f32 %v666, %v406
  %v668 = vadd.f32 %v667, %v411
  %v669 = vadd.f32 %v668, %v416
  %v670 = vadd.f32 %v669, %v421
  %v671 = vadd.f32 %v670, %v426
  %v672 = vadd.f32 %v671, %v431
  %v673 = vadd.f32 %v672, %v436
  %v674 = vadd.f32 %v673, %v441
  %v675 = vadd.f32 %v674, %v446
  %v676 = vadd.f32 %v675, %v451
  %v677 = vadd.f32 %v676, %v456
  %v678 = vadd.f32 %v677, %v461
  %v679 = vadd.f32 %v678, %v466
  %v680 = vadd.f32 %v679, %v471
  %v681 = vadd.f32 %v680, %v476
  %v682 = vadd.f32 %v681, %v481
  %v683 = vadd.f32 %v682, %v486
  %v684 = vadd.f32 %v683, %v491
  %v685 = vadd.f32 %v684, %v496
  %v686 = vadd.f32 %v685, %v501
  %v687 = vadd.f32 %v686, %v506
  %v688 = vadd.f32 %v687, %v511
  %v689 = vadd.f32 %v688, %v516
  %v690 = vadd.f32 %v689, %v521
  %v691 = vadd.f32 %v690, %v526
  %v692 = vadd.f32 %v691, %v531
  %v693 = vadd.f32 %v692, %v536
  %v694 = vadd.f32 %v693, %v541
  %v695 = vadd.f32 %v694, %v546
  %v696 = vadd.f32 %v695, %v551
  %v697 = vadd.f32 %v696, %v556
  %v698 = vadd.f32 %v697, %v561
  %v699 = vadd.f32 %v698, %v566
  %v700 = vadd.f32 %v699, %v571
  %v701 = vadd.f32 %v700, %v576
  %v702 = vadd.f32 %v701, %v581
  %v703 = vadd.f32 %v702, %v586
  %v704 = vadd.f32 %v703, %v591
  %v705 = vadd.f32 %v704, %v596
  %v706 = vadd.f32 %v705, %v601
  %v707 = vadd.f32 %v706, %v606
  %v708 = vadd.f32 %v707, %v611
  %v709 = vadd.f32 %v708, %v616
  %v710 = vadd.f32 %v709, %v621
  %v711 = vadd.f32 %v710, %v626
  %v712 = vadd.f32 %v711, %v631
  %v713 = vadd.f32 %v712, %v636
  %v714 = vadd.f32 %v713, %v641
  %v715 = vadd.f32 %v714, %v646
  %v716 = vadd.f32 %v715, %v651
  %v717 = vrot.slane %v716, 4
  %v718 = vadd.f32 %v716, %v717
  %v719 = vrot.slane %v718, 2
  %v720 = vadd.f32 %v718, %v719
  %v721 = vrot.slane %v720, 1
  %v722 = vadd.f32 %v720, %v721
  %v723 = vmul.f32 %v336, %v336
  %v724 = vmul.f32 %v341, %v341
  %v725 = vmul.f32 %v346, %v346
  %v726 = vmul.f32 %v351, %v351
  %v727 = vmul.f32 %v356, %v356
  %v728 = vmul.f32 %v361, %v361
  %v729 = vmul.f32 %v366, %v366
  %v730 = vmul.f32 %v371, %v371
  %v731 = vmul.f32 %v376, %v376
  %v732 = vmul.f32 %v381, %v381
  %v733 = vmul.f32 %v386, %v386
  %v734 = vmul.f32 %v391, %v391
  %v735 = vmul.f32 %v396, %v396
  %v736 = vmul.f32 %v401, %v401
  %v737 = vmul.f32 %v406, %v406
  %v738 = vmul.f32 %v411, %v411
  %v739 = vmul.f32 %v416, %v416
  %v740 = vmul.f32 %v421, %v421
  %v741 = vmul.f32 %v426, %v426
  %v742 = vmul.f32 %v431, %v431
  %v743 = vmul.f32 %v436, %v436
  %v744 = vmul.f32 %v441, %v441
  %v745 = vmul.f32 %v446, %v446
  %v746 = vmul.f32 %v451, %v451
  %v747 = vmul.f32 %v456, %v456
  %v748 = vmul.f32 %v461, %v461
  %v749 = vmul.f32 %v466, %v466
  %v750 = vmul.f32 %v471, %v471
  %v751 = vmul.f32 %v476, %v476
  %v752 = vmul.f32 %v481, %v481
  %v753 = vmul.f32 %v486, %v486
  %v754 = vmul.f32 %v491, %v491
  %v755 = vmul.f32 %v496, %v496
  %v756 = vmul.f32 %v501, %v501
  %v757 = vmul.f32 %v506, %v506
  %v758 = vmul.f32 %v511, %v511
  %v759 = vmul.f32 %v516, %v516
  %v760 = vmul.f32 %v521, %v521
  %v761 = vmul.f32 %v526, %v526
  %v762 = vmul.f32 %v531, %v531
  %v763 = vmul.f32 %v536, %v536
  %v764 = vmul.f32 %v541, %v541
  %v765 = vmul.f32 %v546, %v546
  %v766 = vmul.f32 %v551, %v551
  %v767 = vmul.f32 %v556, %v556
  %v768 = vmul.f32 %v561, %v561
  %v769 = vmul.f32 %v566, %v566
  %v770 = vmul.f32 %v571, %v571
  %v771 = vmul.f32 %v576, %v576
  %v772 = vmul.f32 %v581, %v581
  %v773 = vmul.f32 %v586, %v586
  %v774 = vmul.f32 %v591, %v591
  %v775 = vmul.f32 %v596, %v596
  %v776 = vmul.f32 %v601, %v601
  %v777 = vmul.f32 %v606, %v606
  %v778 = vmul.f32 %v611, %v611
  %v779 = vmul.f32 %v616, %v616
  %v780 = vmul.f32 %v621, %v621
  %v781 = vmul.f32 %v626, %v626
  %v782 = vmul.f32 %v631, %v631
  %v783 = vmul.f32 %v636, %v636
  %v784 = vmul.f32 %v641, %v641
  %v785 = vmul.f32 %v646, %v646
  %v786 = vmul.f32 %v651, %v651
  %v787 = vadd.f32 %v723, %v724
  %v788 = vadd.f32 %v787, %v725
  %v789 = vadd.f32 %v788, %v726
  %v790 = vadd.f32 %v789, %v727
  %v791 = vadd.f32 %v790, %v728
  %v792 = vadd.f32 %v791, %v729
  %v793 = vadd.f32 %v792, %v730
  %v794 = vadd.f32 %v793, %v731
  %v795 = vadd.f32 %v794, %v732
  %v796 = vadd.f32 %v795, %v733
  %v797 = vadd.f32 %v796, %v734
  %v798 = vadd.f32 %v797, %v735
  %v799 = vadd.f32 %v798, %v736
  %v800 = vadd.f32 %v799, %v737
  %v801 = vadd.f32 %v800, %v738
  %v802 = vadd.f32 %v801, %v739
  %v803 = vadd.f32 %v802, %v740
  %v804 = vadd.f32 %v803, %v741
  %v805 = vadd.f32 %v804, %v742
  %v806 = vadd.f32 %v805, %v743
  %v807 = vadd.f32 %v806, %v744
  %v808 = vadd.f32 %v807, %v745
  %v809 = vadd.f32 %v808, %v746
  %v810 = vadd.f32 %v809, %v747
  %v811 = vadd.f32 %v810, %v748
  %v812 = vadd.f32 %v811, %v749
  %v813 = vadd.f32 %v812, %v750
  %v814 = vadd.f32 %v813, %v751
  %v815 = vadd.f32 %v814, %v752
  %v816 = vadd.f32 %v815, %v753
  %v817 = vadd.f32 %v816, %v754
  %v818 = vadd.f32 %v817, %v755
  %v819 = vadd.f32 %v818, %v756
  %v820 = vadd.f32 %v819, %v757
  %v821 = vadd.f32 %v820, %v758
  %v822 = vadd.f32 %v821, %v759
  %v823 = vadd.f32 %v822, %v760
  %v824 = vadd.f32 %v823, %v761
  %v825 = vadd.f32 %v824, %v762
  %v826 = vadd.f32 %v825, %v763
  %v827 = vadd.f32 %v826, %v764
  %v828 = vadd.f32 %v827, %v765
  %v829 = vadd.f32 %v828, %v766
  %v830 = vadd.f32 %v829, %v767
  %v831 = vadd.f32 %v830, %v768
  %v832 = vadd.f32 %v831, %v769
  %v833 = vadd.f32 %v832, %v770
  %v834 = vadd.f32 %v833, %v771
  %v835 = vadd.f32 %v834, %v772
  %v836 = vadd.f32 %v835, %v773
  %v837 = vadd.f32 %v836, %v774
  %v838 = vadd.f32 %v837, %v775
  %v839 = vadd.f32 %v838, %v776
  %v840 = vadd.f32 %v839, %v777
  %v841 = vadd.f32 %v840, %v778
  %v842 = vadd.f32 %v841, %v779
  %v843 = vadd.f32 %v842, %v780
  %v844 = vadd.f32 %v843, %v781
  %v845 = vadd.f32 %v844, %v782
  %v846 = vadd.f32 %v845, %v783
  %v847 = vadd.f32 %v846, %v784
  %v848 = vadd.f32 %v847, %v785
  %v849 = vadd.f32 %v848, %v786
  %v850 = vrot.slane %v849, 4
  %v851 = vadd.f32 %v849, %v850
  %v852 = vrot.slane %v851, 2
  %v853 = vadd.f32 %v851, %v852
  %v854 = vrot.slane %v853, 1
  %v855 = vadd.f32 %v853, %v854
  %vm856 = vcmask 1040384
  %v857 = vsel %vm856, %v722, %v855
  %vm858 = vcmask 1041408
  %v859 = vsel %vm858, %v857, 0.0
  %860 = vst [vmem:[%s2] sm:$0xff] %v859
  // Predicated region
  $region10: #{pyramid_pooling_forward.18} parent=0 // pred_check
    _
  $region11: #{pyramid_pooling_forward.18} parent=0 // pred_check_branch
    %862 = sbr.rel (0) target = $region13
  $region12: #{pyramid_pooling_forward.18} parent=0 // pred_region
    _
  $region13: #{pyramid_pooling_forward.18} parent=0 // pred_fallthru
    _
  // Predicated region
  $region14: #{pyramid_pooling_forward.18} parent=0 // pred_check
    _
  $region15: #{pyramid_pooling_forward.18} parent=0 // pred_check_branch
    %864 = sbr.rel (0) target = $region17
  $region16: #{pyramid_pooling_forward.18} parent=0 // pred_region
    _
  $region17: #{pyramid_pooling_forward.18} parent=0 // pred_fallthru
    _

// kernel: pyramid_pooling_forward.19
$region0: #{pyramid_pooling_forward.19}
  #allocation0 [shape = 'u32[]', space=smem, size = 0x4, offset = 0x4, fixed_abs, tag = 'smem constant byte address 0x4 - core index']
  #allocation1 [shape = 'u32[144,128]{1,0:T(1,128)}', space=vmem, size = 0x12000, scoped, tag = 'internal scratch']
  %s0 = inlined_call_operand.vmem [shape: f32[512,8], index: 0, kind: input, shape index: {}]
  %s1 = inlined_call_operand.vmem [shape: f32[8,128], index: 1, kind: input, shape index: {}]
  %s2 = inlined_call_operand.vmem [shape: f32[1,128], index: 2, kind: input, shape index: {}]
  %s3 = inlined_call_operand.vmem [shape: f32[1,128], index: 3, kind: input, shape index: {}]
  %s4 = inlined_call_operand.vmem [shape: f32[512,128], index: 4, kind: output, shape index: {}]
  %s5 = sld [smem:[#allocation0]]
  $region26: #{pyramid_pooling_forward.19} parent=0
    _
  %s7 = ssub.s32 1, %s5
  %s8 = scalar_select 0, %s7, %s5
  // Predicated region
  $region2: #{pyramid_pooling_forward.19} parent=0 // pred_check
    _
  $region3: #{pyramid_pooling_forward.19} parent=0 // pred_check_branch
    %10 = sbr.rel (0) target = $region5
  $region4: #{pyramid_pooling_forward.19} parent=0 // pred_region
    _
  $region5: #{pyramid_pooling_forward.19} parent=0 // pred_fallthru
    _
  // Predicated region
  $region6: #{pyramid_pooling_forward.19} parent=0 // pred_check
    _
  $region7: #{pyramid_pooling_forward.19} parent=0 // pred_check_branch
    %12 = sbr.rel (0) target = $region9
  $region8: #{pyramid_pooling_forward.19} parent=0 // pred_region
    _
  $region9: #{pyramid_pooling_forward.19} parent=0 // pred_fallthru
    _
  // Predicated region
  $region10: #{pyramid_pooling_forward.19} parent=0 // pred_check
    _
  $region11: #{pyramid_pooling_forward.19} parent=0 // pred_check_branch
    %14 = sbr.rel (0) target = $region13
  $region12: #{pyramid_pooling_forward.19} parent=0 // pred_region
    _
  $region13: #{pyramid_pooling_forward.19} parent=0 // pred_fallthru
    _
  // Predicated region
  $region14: #{pyramid_pooling_forward.19} parent=0 // pred_check
    _
  $region15: #{pyramid_pooling_forward.19} parent=0 // pred_check_branch
    %16 = sbr.rel (0) target = $region17
  $region16: #{pyramid_pooling_forward.19} parent=0 // pred_region
    _
  $region17: #{pyramid_pooling_forward.19} parent=0 // pred_fallthru
    _
  %v17 = vld [vmem:[%s0] sm:$0xff]
  %v18 = vld [vmem:[%s0 + $0x8] sm:$0xff]
  %v19 = vld [vmem:[%s0 + $0x10] sm:$0xff]
  %v20 = vld [vmem:[%s0 + $0x18] sm:$0xff]
  %v21 = vld [vmem:[%s0 + $0x20] sm:$0xff]
  %v22 = vld [vmem:[%s0 + $0x28] sm:$0xff]
  %v23 = vld [vmem:[%s0 + $0x30] sm:$0xff]
  %v24 = vld [vmem:[%s0 + $0x38] sm:$0xff]
  %v25 = vld [vmem:[%s0 + $0x40] sm:$0xff]
  %v26 = vld [vmem:[%s0 + $0x48] sm:$0xff]
  %v27 = vld [vmem:[%s0 + $0x50] sm:$0xff]
  %v28 = vld [vmem:[%s0 + $0x58] sm:$0xff]
  %v29 = vld [vmem:[%s0 + $0x60] sm:$0xff]
  %v30 = vld [vmem:[%s0 + $0x68] sm:$0xff]
  %v31 = vld [vmem:[%s0 + $0x70] sm:$0xff]
  %v32 = vld [vmem:[%s0 + $0x78] sm:$0xff]
  %v33 = vld [vmem:[%s0 + $0x80] sm:$0xff]
  %v34 = vld [vmem:[%s0 + $0x88] sm:$0xff]
  %v35 = vld [vmem:[%s0 + $0x90] sm:$0xff]
  %v36 = vld [vmem:[%s0 + $0x98] sm:$0xff]
  %v37 = vld [vmem:[%s0 + $0xa0] sm:$0xff]
  %v38 = vld [vmem:[%s0 + $0xa8] sm:$0xff]
  %v39 = vld [vmem:[%s0 + $0xb0] sm:$0xff]
  %v40 = vld [vmem:[%s0 + $0xb8] sm:$0xff]
  %v41 = vld [vmem:[%s0 + $0xc0] sm:$0xff]
  %v42 = vld [vmem:[%s0 + $0xc8] sm:$0xff]
  %v43 = vld [vmem:[%s0 + $0xd0] sm:$0xff]
  %v44 = vld [vmem:[%s0 + $0xd8] sm:$0xff]
  %v45 = vld [vmem:[%s0 + $0xe0] sm:$0xff]
  %v46 = vld [vmem:[%s0 + $0xe8] sm:$0xff]
  %v47 = vld [vmem:[%s0 + $0xf0] sm:$0xff]
  %v48 = vld [vmem:[%s0 + $0xf8] sm:$0xff]
  %v49 = vld [vmem:[%s0 + $0x100] sm:$0xff]
  %v50 = vld [vmem:[%s0 + $0x108] sm:$0xff]
  %v51 = vld [vmem:[%s0 + $0x110] sm:$0xff]
  %v52 = vld [vmem:[%s0 + $0x118] sm:$0xff]
  %v53 = vld [vmem:[%s0 + $0x120] sm:$0xff]
  %v54 = vld [vmem:[%s0 + $0x128] sm:$0xff]
  %v55 = vld [vmem:[%s0 + $0x130] sm:$0xff]
  %v56 = vld [vmem:[%s0 + $0x138] sm:$0xff]
  %v57 = vld [vmem:[%s0 + $0x140] sm:$0xff]
  %v58 = vld [vmem:[%s0 + $0x148] sm:$0xff]
  %v59 = vld [vmem:[%s0 + $0x150] sm:$0xff]
  %v60 = vld [vmem:[%s0 + $0x158] sm:$0xff]
  %v61 = vld [vmem:[%s0 + $0x160] sm:$0xff]
  %v62 = vld [vmem:[%s0 + $0x168] sm:$0xff]
  %v63 = vld [vmem:[%s0 + $0x170] sm:$0xff]
  %v64 = vld [vmem:[%s0 + $0x178] sm:$0xff]
  %v65 = vld [vmem:[%s0 + $0x180] sm:$0xff]
  %v66 = vld [vmem:[%s0 + $0x188] sm:$0xff]
  %v67 = vld [vmem:[%s0 + $0x190] sm:$0xff]
  %v68 = vld [vmem:[%s0 + $0x198] sm:$0xff]
  %v69 = vld [vmem:[%s0 + $0x1a0] sm:$0xff]
  %v70 = vld [vmem:[%s0 + $0x1a8] sm:$0xff]
  %v71 = vld [vmem:[%s0 + $0x1b0] sm:$0xff]
  %v72 = vld [vmem:[%s0 + $0x1b8] sm:$0xff]
  %v73 = vld [vmem:[%s0 + $0x1c0] sm:$0xff]
  %v74 = vld [vmem:[%s0 + $0x1c8] sm:$0xff]
  %v75 = vld [vmem:[%s0 + $0x1d0] sm:$0xff]
  %v76 = vld [vmem:[%s0 + $0x1d8] sm:$0xff]
  %v77 = vld [vmem:[%s0 + $0x1e0] sm:$0xff]
  %v78 = vld [vmem:[%s0 + $0x1e8] sm:$0xff]
  %v79 = vld [vmem:[%s0 + $0x1f0] sm:$0xff]
  %v80 = vld [vmem:[%s0 + $0x1f8] sm:$0xff]
  %v81 = vld [vmem:[%s1] sm:$0xff]
  %vm82 = vcmask 64512
  %v84 = vsel %vm82, %v17, 0
  %v87 = vsel %vm82, %v18, 0
  %v90 = vsel %vm82, %v19, 0
  %v93 = vsel %vm82, %v20, 0
  %v96 = vsel %vm82, %v21, 0
  %v99 = vsel %vm82, %v22, 0
  %v102 = vsel %vm82, %v23, 0
  %v105 = vsel %vm82, %v24, 0
  %v108 = vsel %vm82, %v25, 0
  %v111 = vsel %vm82, %v26, 0
  %v114 = vsel %vm82, %v27, 0
  %v117 = vsel %vm82, %v28, 0
  %v120 = vsel %vm82, %v29, 0
  %v123 = vsel %vm82, %v30, 0
  %v126 = vsel %vm82, %v31, 0
  %v129 = vsel %vm82, %v32, 0
  %v132 = vsel %vm82, %v33, 0
  %v135 = vsel %vm82, %v34, 0
  %v138 = vsel %vm82, %v35, 0
  %v141 = vsel %vm82, %v36, 0
  %v144 = vsel %vm82, %v37, 0
  %v147 = vsel %vm82, %v38, 0
  %v150 = vsel %vm82, %v39, 0
  %v153 = vsel %vm82, %v40, 0
  %v156 = vsel %vm82, %v41, 0
  %v159 = vsel %vm82, %v42, 0
  %v162 = vsel %vm82, %v43, 0
  %v165 = vsel %vm82, %v44, 0
  %v168 = vsel %vm82, %v45, 0
  %v171 = vsel %vm82, %v46, 0
  %v174 = vsel %vm82, %v47, 0
  %v177 = vsel %vm82, %v48, 0
  %v180 = vsel %vm82, %v49, 0
  %v183 = vsel %vm82, %v50, 0
  %v186 = vsel %vm82, %v51, 0
  %v189 = vsel %vm82, %v52, 0
  %v192 = vsel %vm82, %v53, 0
  %v195 = vsel %vm82, %v54, 0
  %v198 = vsel %vm82, %v55, 0
  %v201 = vsel %vm82, %v56, 0
  %v204 = vsel %vm82, %v57, 0
  %v207 = vsel %vm82, %v58, 0
  %v210 = vsel %vm82, %v59, 0
  %v213 = vsel %vm82, %v60, 0
  %v216 = vsel %vm82, %v61, 0
  %v219 = vsel %vm82, %v62, 0
  %v222 = vsel %vm82, %v63, 0
  %v225 = vsel %vm82, %v64, 0
  %v228 = vsel %vm82, %v65, 0
  %v231 = vsel %vm82, %v66, 0
  %v234 = vsel %vm82, %v67, 0
  %v237 = vsel %vm82, %v68, 0
  %v240 = vsel %vm82, %v69, 0
  %v243 = vsel %vm82, %v70, 0
  %v246 = vsel %vm82, %v71, 0
  %v249 = vsel %vm82, %v72, 0
  %v252 = vsel %vm82, %v73, 0
  %v255 = vsel %vm82, %v74, 0
  %v258 = vsel %vm82, %v75, 0
  %v261 = vsel %vm82, %v76, 0
  %v264 = vsel %vm82, %v77, 0
  %v267 = vsel %vm82, %v78, 0
  %v270 = vsel %vm82, %v79, 0
  %v273 = vsel %vm82, %v80, 0
  %275 = vmatprep.subr.mxu0 0.0
  %276 = vmatpush1.msra.mxu0 %v81
  %277 = vmatprep.subr.mxu0 0.0
  %278 = vmatpush1.msra.mxu0 0.0
  %279 = vmatprep.subr.mxu0 0.0
  %280 = vmatpush1.msra.mxu0 0.0
  %281 = vmatprep.subr.mxu0 0.0
  %282 = vmatpush1.msra.mxu0 0.0
  %283 = vmatprep.subr.mxu0 0.0
  %284 = vmatpush1.msra.mxu0 0.0
  %285 = vmatprep.subr.mxu0 0.0
  %286 = vmatpush1.msra.mxu0 0.0
  %287 = vmatprep.subr.mxu0 0.0
  %288 = vmatpush1.msra.mxu0 0.0
  %289 = vmatprep.subr.mxu0 0.0
  %290 = vmatpush1.msra.mxu0 0.0
  %291 = vmatprep.subr.mxu0 0.0
  %292 = vmatpush1.msra.mxu0 0.0
  %293 = vmatprep.subr.mxu0 0.0
  %294 = vmatpush1.msra.mxu0 0.0
  %295 = vmatprep.subr.mxu0 0.0
  %296 = vmatpush1.msra.mxu0 0.0
  %297 = vmatprep.subr.mxu0 0.0
  %298 = vmatpush1.msra.mxu0 0.0
  %299 = vmatprep.subr.mxu0 0.0
  %300 = vmatpush1.msra.mxu0 0.0
  %301 = vmatprep.subr.mxu0 0.0
  %302 = vmatpush1.msra.mxu0 0.0
  %303 = vmatprep.subr.mxu0 0.0
  %304 = vmatpush1.msra.mxu0 0.0
  %305 = vmatprep.subr.mxu0 0.0
  %306 = vmatpush1.msra.mxu0 0.0
  %307 = vmatprep.subr.mxu0 0.0
  %308 = vmatpush1.msra.mxu0 0.0
  %309 = vmatprep.subr.mxu0 0.0
  %310 = vmatpush1.msra.mxu0 0.0
  %311 = vmatprep.subr.mxu0 0.0
  %312 = vmatpush1.msra.mxu0 0.0
  %313 = vmatprep.subr.mxu0 0.0
  %314 = vmatpush1.msra.mxu0 0.0
  %315 = vmatprep.subr.mxu0 0.0
  %316 = vmatpush1.msra.mxu0 0.0
  %317 = vmatprep.subr.mxu0 0.0
  %318 = vmatpush1.msra.mxu0 0.0
  %319 = vmatprep.subr.mxu0 0.0
  %320 = vmatpush1.msra.mxu0 0.0
  %321 = vmatprep.subr.mxu0 0.0
  %322 = vmatpush1.msra.mxu0 0.0
  %323 = vmatprep.subr.mxu0 0.0
  %324 = vmatpush1.msra.mxu0 0.0
  %325 = vmatprep.subr.mxu0 0.0
  %326 = vmatpush1.msra.mxu0 0.0
  %327 = vmatprep.subr.mxu0 0.0
  %328 = vmatpush1.msra.mxu0 0.0
  %329 = vmatprep.subr.mxu0 0.0
  %330 = vmatpush1.msra.mxu0 0.0
  %331 = vmatprep.subr.mxu0 0.0
  %332 = vmatpush1.msra.mxu0 0.0
  %333 = vmatprep.subr.mxu0 0.0
  %334 = vmatpush1.msra.mxu0 0.0
  %335 = vmatprep.subr.mxu0 0.0
  %336 = vmatpush1.msra.mxu0 0.0
  %337 = vmatprep.subr.mxu0 0.0
  %338 = vmatpush1.msra.mxu0 0.0
  %339 = vmatprep.mubr.f32.mxu0 0.0
  %340 = vmatmul.mubr.f32.gmra.mrb[0].mxu0 %v84
  %v341 = vpop.f32.mrb[0].mxu0
  %v342 = vadd.f32 0.0, %v341
  %v343 = vpop.f32.mrb[0].mxu0
  %344 = vmatprep.mubr.f32.mxu0 0.0
  %345 = vmatmul.mubr.f32.gmra.mrb[0].mxu0 %v87
  %v346 = vpop.f32.mrb[0].mxu0
  %v347 = vadd.f32 0.0, %v346
  %v348 = vpop.f32.mrb[0].mxu0
  %349 = vmatprep.mubr.f32.mxu0 0.0
  %350 = vmatmul.mubr.f32.gmra.mrb[0].mxu0 %v90
  %v351 = vpop.f32.mrb[0].mxu0
  %v352 = vadd.f32 0.0, %v351
  %v353 = vpop.f32.mrb[0].mxu0
  %354 = vmatprep.mubr.f32.mxu0 0.0
  %355 = vmatmul.mubr.f32.gmra.mrb[0].mxu0 %v93
  %v356 = vpop.f32.mrb[0].mxu0
  %v357 = vadd.f32 0.0, %v356
  %v358 = vpop.f32.mrb[0].mxu0
  %359 = vmatprep.mubr.f32.mxu0 0.0
  %360 = vmatmul.mubr.f32.gmra.mrb[0].mxu0 %v96
  %v361 = vpop.f32.mrb[0].mxu0
  %v362 = vadd.f32 0.0, %v361
  %v363 = vpop.f32.mrb[0].mxu0
  %364 = vmatprep.mubr.f32.mxu0 0.0
  %365 = vmatmul.mubr.f32.gmra.mrb[0].mxu0 %v99
  %v366 = vpop.f32.mrb[0].mxu0
  %v367 = vadd.f32 0.0, %v366
  %v368 = vpop.f32.mrb[0].mxu0
  %369 = vmatprep.mubr.f32.mxu0 0.0
  %370 = vmatmul.mubr.f32.gmra.mrb[0].mxu0 %v102
  %v371 = vpop.f32.mrb[0].mxu0
  %v372 = vadd.f32 0.0, %v371
  %v373 = vpop.f32.mrb[0].mxu0
  %374 = vmatprep.mubr.f32.mxu0 0.0
  %375 = vmatmul.mubr.f32.gmra.mrb[0].mxu0 %v105
  %v376 = vpop.f32.mrb[0].mxu0
  %v377 = vadd.f32 0.0, %v376
  %v378 = vpop.f32.mrb[0].mxu0
  %379 = vmatprep.mubr.f32.mxu0 0.0
  %380 = vmatmul.mubr.f32.gmra.mrb[0].mxu0 %v108
  %v381 = vpop.f32.mrb[0].mxu0
  %v382 = vadd.f32 0.0, %v381
  %v383 = vpop.f32.mrb[0].mxu0
  %384 = vmatprep.mubr.f32.mxu0 0.0
  %385 = vmatmul.mubr.f32.gmra.mrb[0].mxu0 %v111
  %v386 = vpop.f32.mrb[0].mxu0
  %v387 = vadd.f32 0.0, %v386
  %v388 = vpop.f32.mrb[0].mxu0
  %389 = vmatprep.mubr.f32.mxu0 0.0
  %390 = vmatmul.mubr.f32.gmra.mrb[0].mxu0 %v114
  %v391 = vpop.f32.mrb[0].mxu0
  %v392 = vadd.f32 0.0, %v391
  %v393 = vpop.f32.mrb[0].mxu0
  %394 = vmatprep.mubr.f32.mxu0 0.0
  %395 = vmatmul.mubr.f32.gmra.mrb[0].mxu0 %v117
  %v396 = vpop.f32.mrb[0].mxu0
  %v397 = vadd.f32 0.0, %v396
  %v398 = vpop.f32.mrb[0].mxu0
  %399 = vmatprep.mubr.f32.mxu0 0.0
  %400 = vmatmul.mubr.f32.gmra.mrb[0].mxu0 %v120
  %v401 = vpop.f32.mrb[0].mxu0
  %v402 = vadd.f32 0.0, %v401
  %v403 = vpop.f32.mrb[0].mxu0
  %404 = vmatprep.mubr.f32.mxu0 0.0
  %405 = vmatmul.mubr.f32.gmra.mrb[0].mxu0 %v123
  %v406 = vpop.f32.mrb[0].mxu0
  %v407 = vadd.f32 0.0, %v406
  %v408 = vpop.f32.mrb[0].mxu0
  %409 = vmatprep.mubr.f32.mxu0 0.0
  %410 = vmatmul.mubr.f32.gmra.mrb[0].mxu0 %v126
  %v411 = vpop.f32.mrb[0].mxu0
  %v412 = vadd.f32 0.0, %v411
  %v413 = vpop.f32.mrb[0].mxu0
  %414 = vmatprep.mubr.f32.mxu0 0.0
  %415 = vmatmul.mubr.f32.gmra.mrb[0].mxu0 %v129
  %v416 = vpop.f32.mrb[0].mxu0
  %v417 = vadd.f32 0.0, %v416
  %v418 = vpop.f32.mrb[0].mxu0
  %419 = vmatprep.mubr.f32.mxu0 0.0
  %420 = vmatmul.mubr.f32.gmra.mrb[0].mxu0 %v132
  %v421 = vpop.f32.mrb[0].mxu0
  %v422 = vadd.f32 0.0, %v421
  %v423 = vpop.f32.mrb[0].mxu0
  %424 = vmatprep.mubr.f32.mxu0 0.0
  %425 = vmatmul.mubr.f32.gmra.mrb[0].mxu0 %v135
  %v426 = vpop.f32.mrb[0].mxu0
  %v427 = vadd.f32 0.0, %v426
  %v428 = vpop.f32.mrb[0].mxu0
  %429 = vmatprep.mubr.f32.mxu0 0.0
  %430 = vmatmul.mubr.f32.gmra.mrb[0].mxu0 %v138
  %v431 = vpop.f32.mrb[0].mxu0
  %v432 = vadd.f32 0.0, %v431
  %v433 = vpop.f32.mrb[0].mxu0
  %434 = vmatprep.mubr.f32.mxu0 0.0
  %435 = vmatmul.mubr.f32.gmra.mrb[0].mxu0 %v141
  %v436 = vpop.f32.mrb[0].mxu0
  %v437 = vadd.f32 0.0, %v436
  %v438 = vpop.f32.mrb[0].mxu0
  %439 = vmatprep.mubr.f32.mxu0 0.0
  %440 = vmatmul.mubr.f32.gmra.mrb[0].mxu0 %v144
  %v441 = vpop.f32.mrb[0].mxu0
  %v442 = vadd.f32 0.0, %v441
  %v443 = vpop.f32.mrb[0].mxu0
  %444 = vmatprep.mubr.f32.mxu0 0.0
  %445 = vmatmul.mubr.f32.gmra.mrb[0].mxu0 %v147
  %v446 = vpop.f32.mrb[0].mxu0
  %v447 = vadd.f32 0.0, %v446
  %v448 = vpop.f32.mrb[0].mxu0
  %449 = vmatprep.mubr.f32.mxu0 0.0
  %450 = vmatmul.mubr.f32.gmra.mrb[0].mxu0 %v150
  %v451 = vpop.f32.mrb[0].mxu0
  %v452 = vadd.f32 0.0, %v451
  %v453 = vpop.f32.mrb[0].mxu0
  %454 = vmatprep.mubr.f32.mxu0 0.0
  %455 = vmatmul.mubr.f32.gmra.mrb[0].mxu0 %v153
  %v456 = vpop.f32.mrb[0].mxu0
  %v457 = vadd.f32 0.0, %v456
  %v458 = vpop.f32.mrb[0].mxu0
  %459 = vmatprep.mubr.f32.mxu0 0.0
  %460 = vmatmul.mubr.f32.gmra.mrb[0].mxu0 %v156
  %v461 = vpop.f32.mrb[0].mxu0
  %v462 = vadd.f32 0.0, %v461
  %v463 = vpop.f32.mrb[0].mxu0
  %464 = vmatprep.mubr.f32.mxu0 0.0
  %465 = vmatmul.mubr.f32.gmra.mrb[0].mxu0 %v159
  %v466 = vpop.f32.mrb[0].mxu0
  %v467 = vadd.f32 0.0, %v466
  %v468 = vpop.f32.mrb[0].mxu0
  %469 = vmatprep.mubr.f32.mxu0 0.0
  %470 = vmatmul.mubr.f32.gmra.mrb[0].mxu0 %v162
  %v471 = vpop.f32.mrb[0].mxu0
  %v472 = vadd.f32 0.0, %v471
  %v473 = vpop.f32.mrb[0].mxu0
  %474 = vmatprep.mubr.f32.mxu0 0.0
  %475 = vmatmul.mubr.f32.gmra.mrb[0].mxu0 %v165
  %v476 = vpop.f32.mrb[0].mxu0
  %v477 = vadd.f32 0.0, %v476
  %v478 = vpop.f32.mrb[0].mxu0
  %479 = vmatprep.mubr.f32.mxu0 0.0
  %480 = vmatmul.mubr.f32.gmra.mrb[0].mxu0 %v168
  %v481 = vpop.f32.mrb[0].mxu0
  %v482 = vadd.f32 0.0, %v481
  %v483 = vpop.f32.mrb[0].mxu0
  %484 = vmatprep.mubr.f32.mxu0 0.0
  %485 = vmatmul.mubr.f32.gmra.mrb[0].mxu0 %v171
  %v486 = vpop.f32.mrb[0].mxu0
  %v487 = vadd.f32 0.0, %v486
  %v488 = vpop.f32.mrb[0].mxu0
  %489 = vmatprep.mubr.f32.mxu0 0.0
  %490 = vmatmul.mubr.f32.gmra.mrb[0].mxu0 %v174
  %v491 = vpop.f32.mrb[0].mxu0
  %v492 = vadd.f32 0.0, %v491
  %v493 = vpop.f32.mrb[0].mxu0
  %494 = vmatprep.mubr.f32.mxu0 0.0
  %495 = vmatmul.mubr.f32.gmra.mrb[0].mxu0 %v177
  %v496 = vpop.f32.mrb[0].mxu0
  %v497 = vadd.f32 0.0, %v496
  %v498 = vpop.f32.mrb[0].mxu0
  %499 = vmatprep.mubr.f32.mxu0 0.0
  %500 = vmatmul.mubr.f32.gmra.mrb[0].mxu0 %v180
  %v501 = vpop.f32.mrb[0].mxu0
  %v502 = vadd.f32 0.0, %v501
  %v503 = vpop.f32.mrb[0].mxu0
  %504 = vmatprep.mubr.f32.mxu0 0.0
  %505 = vmatmul.mubr.f32.gmra.mrb[0].mxu0 %v183
  %v506 = vpop.f32.mrb[0].mxu0
  %v507 = vadd.f32 0.0, %v506
  %v508 = vpop.f32.mrb[0].mxu0
  %509 = vmatprep.mubr.f32.mxu0 0.0
  %510 = vmatmul.mubr.f32.gmra.mrb[0].mxu0 %v186
  %v511 = vpop.f32.mrb[0].mxu0
  %v512 = vadd.f32 0.0, %v511
  %v513 = vpop.f32.mrb[0].mxu0
  %514 = vmatprep.mubr.f32.mxu0 0.0
  %515 = vmatmul.mubr.f32.gmra.mrb[0].mxu0 %v189
  %v516 = vpop.f32.mrb[0].mxu0
  %v517 = vadd.f32 0.0, %v516
  %v518 = vpop.f32.mrb[0].mxu0
  %519 = vmatprep.mubr.f32.mxu0 0.0
  %520 = vmatmul.mubr.f32.gmra.mrb[0].mxu0 %v192
  %v521 = vpop.f32.mrb[0].mxu0
  %v522 = vadd.f32 0.0, %v521
  %v523 = vpop.f32.mrb[0].mxu0
  %524 = vmatprep.mubr.f32.mxu0 0.0
  %525 = vmatmul.mubr.f32.gmra.mrb[0].mxu0 %v195
  %v526 = vpop.f32.mrb[0].mxu0
  %v527 = vadd.f32 0.0, %v526
  %v528 = vpop.f32.mrb[0].mxu0
  %529 = vmatprep.mubr.f32.mxu0 0.0
  %530 = vmatmul.mubr.f32.gmra.mrb[0].mxu0 %v198
  %v531 = vpop.f32.mrb[0].mxu0
  %v532 = vadd.f32 0.0, %v531
  %v533 = vpop.f32.mrb[0].mxu0
  %534 = vmatprep.mubr.f32.mxu0 0.0
  %535 = vmatmul.mubr.f32.gmra.mrb[0].mxu0 %v201
  %v536 = vpop.f32.mrb[0].mxu0
  %v537 = vadd.f32 0.0, %v536
  %v538 = vpop.f32.mrb[0].mxu0
  %539 = vmatprep.mubr.f32.mxu0 0.0
  %540 = vmatmul.mubr.f32.gmra.mrb[0].mxu0 %v204
  %v541 = vpop.f32.mrb[0].mxu0
  %v542 = vadd.f32 0.0, %v541
  %v543 = vpop.f32.mrb[0].mxu0
  %544 = vmatprep.mubr.f32.mxu0 0.0
  %545 = vmatmul.mubr.f32.gmra.mrb[0].mxu0 %v207
  %v546 = vpop.f32.mrb[0].mxu0
  %v547 = vadd.f32 0.0, %v546
  %v548 = vpop.f32.mrb[0].mxu0
  %549 = vmatprep.mubr.f32.mxu0 0.0
  %550 = vmatmul.mubr.f32.gmra.mrb[0].mxu0 %v210
  %v551 = vpop.f32.mrb[0].mxu0
  %v552 = vadd.f32 0.0, %v551
  %v553 = vpop.f32.mrb[0].mxu0
  %554 = vmatprep.mubr.f32.mxu0 0.0
  %555 = vmatmul.mubr.f32.gmra.mrb[0].mxu0 %v213
  %v556 = vpop.f32.mrb[0].mxu0
  %v557 = vadd.f32 0.0, %v556
  %v558 = vpop.f32.mrb[0].mxu0
  %559 = vmatprep.mubr.f32.mxu0 0.0
  %560 = vmatmul.mubr.f32.gmra.mrb[0].mxu0 %v216
  %v561 = vpop.f32.mrb[0].mxu0
  %v562 = vadd.f32 0.0, %v561
  %v563 = vpop.f32.mrb[0].mxu0
  %564 = vmatprep.mubr.f32.mxu0 0.0
  %565 = vmatmul.mubr.f32.gmra.mrb[0].mxu0 %v219
  %v566 = vpop.f32.mrb[0].mxu0
  %v567 = vadd.f32 0.0, %v566
  %v568 = vpop.f32.mrb[0].mxu0
  %569 = vmatprep.mubr.f32.mxu0 0.0
  %570 = vmatmul.mubr.f32.gmra.mrb[0].mxu0 %v222
  %v571 = vpop.f32.mrb[0].mxu0
  %v572 = vadd.f32 0.0, %v571
  %v573 = vpop.f32.mrb[0].mxu0
  %574 = vmatprep.mubr.f32.mxu0 0.0
  %575 = vmatmul.mubr.f32.gmra.mrb[0].mxu0 %v225
  %v576 = vpop.f32.mrb[0].mxu0
  %v577 = vadd.f32 0.0, %v576
  %v578 = vpop.f32.mrb[0].mxu0
  %579 = vmatprep.mubr.f32.mxu0 0.0
  %580 = vmatmul.mubr.f32.gmra.mrb[0].mxu0 %v228
  %v581 = vpop.f32.mrb[0].mxu0
  %v582 = vadd.f32 0.0, %v581
  %v583 = vpop.f32.mrb[0].mxu0
  %584 = vmatprep.mubr.f32.mxu0 0.0
  %585 = vmatmul.mubr.f32.gmra.mrb[0].mxu0 %v231
  %v586 = vpop.f32.mrb[0].mxu0
  %v587 = vadd.f32 0.0, %v586
  %v588 = vpop.f32.mrb[0].mxu0
  %589 = vmatprep.mubr.f32.mxu0 0.0
  %590 = vmatmul.mubr.f32.gmra.mrb[0].mxu0 %v234
  %v591 = vpop.f32.mrb[0].mxu0
  %v592 = vadd.f32 0.0, %v591
  %v593 = vpop.f32.mrb[0].mxu0
  %594 = vmatprep.mubr.f32.mxu0 0.0
  %595 = vmatmul.mubr.f32.gmra.mrb[0].mxu0 %v237
  %v596 = vpop.f32.mrb[0].mxu0
  %v597 = vadd.f32 0.0, %v596
  %v598 = vpop.f32.mrb[0].mxu0
  %599 = vmatprep.mubr.f32.mxu0 0.0
  %600 = vmatmul.mubr.f32.gmra.mrb[0].mxu0 %v240
  %v601 = vpop.f32.mrb[0].mxu0
  %v602 = vadd.f32 0.0, %v601
  %v603 = vpop.f32.mrb[0].mxu0
  %604 = vmatprep.mubr.f32.mxu0 0.0
  %605 = vmatmul.mubr.f32.gmra.mrb[0].mxu0 %v243
  %v606 = vpop.f32.mrb[0].mxu0
  %v607 = vadd.f32 0.0, %v606
  %v608 = vpop.f32.mrb[0].mxu0
  %609 = vmatprep.mubr.f32.mxu0 0.0
  %610 = vmatmul.mubr.f32.gmra.mrb[0].mxu0 %v246
  %v611 = vpop.f32.mrb[0].mxu0
  %v612 = vadd.f32 0.0, %v611
  %v613 = vpop.f32.mrb[0].mxu0
  %614 = vmatprep.mubr.f32.mxu0 0.0
  %615 = vmatmul.mubr.f32.gmra.mrb[0].mxu0 %v249
  %v616 = vpop.f32.mrb[0].mxu0
  %v617 = vadd.f32 0.0, %v616
  %v618 = vpop.f32.mrb[0].mxu0
  %619 = vmatprep.mubr.f32.mxu0 0.0
  %620 = vmatmul.mubr.f32.gmra.mrb[0].mxu0 %v252
  %v621 = vpop.f32.mrb[0].mxu0
  %v622 = vadd.f32 0.0, %v621
  %v623 = vpop.f32.mrb[0].mxu0
  %624 = vmatprep.mubr.f32.mxu0 0.0
  %625 = vmatmul.mubr.f32.gmra.mrb[0].mxu0 %v255
  %v626 = vpop.f32.mrb[0].mxu0
  %v627 = vadd.f32 0.0, %v626
  %v628 = vpop.f32.mrb[0].mxu0
  %629 = vmatprep.mubr.f32.mxu0 0.0
  %630 = vmatmul.mubr.f32.gmra.mrb[0].mxu0 %v258
  %v631 = vpop.f32.mrb[0].mxu0
  %v632 = vadd.f32 0.0, %v631
  %v633 = vpop.f32.mrb[0].mxu0
  %634 = vmatprep.mubr.f32.mxu0 0.0
  %635 = vmatmul.mubr.f32.gmra.mrb[0].mxu0 %v261
  %v636 = vpop.f32.mrb[0].mxu0
  %v637 = vadd.f32 0.0, %v636
  %v638 = vpop.f32.mrb[0].mxu0
  %639 = vmatprep.mubr.f32.mxu0 0.0
  %640 = vmatmul.mubr.f32.gmra.mrb[0].mxu0 %v264
  %v641 = vpop.f32.mrb[0].mxu0
  %v642 = vadd.f32 0.0, %v641
  %v643 = vpop.f32.mrb[0].mxu0
  %644 = vmatprep.mubr.f32.mxu0 0.0
  %645 = vmatmul.mubr.f32.gmra.mrb[0].mxu0 %v267
  %v646 = vpop.f32.mrb[0].mxu0
  %v647 = vadd.f32 0.0, %v646
  %v648 = vpop.f32.mrb[0].mxu0
  %649 = vmatprep.mubr.f32.mxu0 0.0
  %650 = vmatmul.mubr.f32.gmra.mrb[0].mxu0 %v270
  %v651 = vpop.f32.mrb[0].mxu0
  %v652 = vadd.f32 0.0, %v651
  %v653 = vpop.f32.mrb[0].mxu0
  %654 = vmatprep.mubr.f32.mxu0 0.0
  %655 = vmatmul.mubr.f32.gmra.mrb[0].mxu0 %v273
  %v656 = vpop.f32.mrb[0].mxu0
  %v657 = vadd.f32 0.0, %v656
  %v658 = vpop.f32.mrb[0].mxu0
  %659 = vdwg.mxu0
  %v660 = vld [vmem:[%s2] sm:$0x1]
  %v662 = vlaneseq
  %v663 = vshrl.u32 %v662, 7
  %v664 = vsub.s32 0, %v663
  %v665 = vrot.slane %v660, %v664
  %v667 = vmul.f32 %v342, %v665
  %v668 = vmul.f32 %v347, %v665
  %v669 = vmul.f32 %v352, %v665
  %v670 = vmul.f32 %v357, %v665
  %v671 = vmul.f32 %v362, %v665
  %v672 = vmul.f32 %v367, %v665
  %v673 = vmul.f32 %v372, %v665
  %v674 = vmul.f32 %v377, %v665
  %v675 = vmul.f32 %v382, %v665
  %v676 = vmul.f32 %v387, %v665
  %v677 = vmul.f32 %v392, %v665
  %v678 = vmul.f32 %v397, %v665
  %v679 = vmul.f32 %v402, %v665
  %v680 = vmul.f32 %v407, %v665
  %v681 = vmul.f32 %v412, %v665
  %v682 = vmul.f32 %v417, %v665
  %v683 = vmul.f32 %v422, %v665
  %v684 = vmul.f32 %v427, %v665
  %v685 = vmul.f32 %v432, %v665
  %v686 = vmul.f32 %v437, %v665
  %v687 = vmul.f32 %v442, %v665
  %v688 = vmul.f32 %v447, %v665
  %v689 = vmul.f32 %v452, %v665
  %v690 = vmul.f32 %v457, %v665
  %v691 = vmul.f32 %v462, %v665
  %v692 = vmul.f32 %v467, %v665
  %v693 = vmul.f32 %v472, %v665
  %v694 = vmul.f32 %v477, %v665
  %v695 = vmul.f32 %v482, %v665
  %v696 = vmul.f32 %v487, %v665
  %v697 = vmul.f32 %v492, %v665
  %v698 = vmul.f32 %v497, %v665
  %v699 = vmul.f32 %v502, %v665
  %v700 = vmul.f32 %v507, %v665
  %v701 = vmul.f32 %v512, %v665
  %v702 = vmul.f32 %v517, %v665
  %v703 = vmul.f32 %v522, %v665
  %v704 = vmul.f32 %v527, %v665
  %v705 = vmul.f32 %v532, %v665
  %v706 = vmul.f32 %v537, %v665
  %v707 = vmul.f32 %v542, %v665
  %v708 = vmul.f32 %v547, %v665
  %v709 = vmul.f32 %v552, %v665
  %v710 = vmul.f32 %v557, %v665
  %v711 = vmul.f32 %v562, %v665
  %v712 = vmul.f32 %v567, %v665
  %v713 = vmul.f32 %v572, %v665
  %v714 = vmul.f32 %v577, %v665
  %v715 = vmul.f32 %v582, %v665
  %v716 = vmul.f32 %v587, %v665
  %v717 = vmul.f32 %v592, %v665
  %v718 = vmul.f32 %v597, %v665
  %v719 = vmul.f32 %v602, %v665
  %v720 = vmul.f32 %v607, %v665
  %v721 = vmul.f32 %v612, %v665
  %v722 = vmul.f32 %v617, %v665
  %v723 = vmul.f32 %v622, %v665
  %v724 = vmul.f32 %v627, %v665
  %v725 = vmul.f32 %v632, %v665
  %v726 = vmul.f32 %v637, %v665
  %v727 = vmul.f32 %v642, %v665
  %v728 = vmul.f32 %v647, %v665
  %v729 = vmul.f32 %v652, %v665
  %v730 = vmul.f32 %v657, %v665
  %v731 = vld [vmem:[%s3] sm:$0x1]
  %v733 = vlaneseq
  %v734 = vshrl.u32 %v733, 7
  %v735 = vsub.s32 0, %v734
  %v736 = vrot.slane %v731, %v735
  %v738 = vadd.f32 %v667, %v736
  %v739 = vadd.f32 %v668, %v736
  %v740 = vadd.f32 %v669, %v736
  %v741 = vadd.f32 %v670, %v736
  %v742 = vadd.f32 %v671, %v736
  %v743 = vadd.f32 %v672, %v736
  %v744 = vadd.f32 %v673, %v736
  %v745 = vadd.f32 %v674, %v736
  %v746 = vadd.f32 %v675, %v736
  %v747 = vadd.f32 %v676, %v736
  %v748 = vadd.f32 %v677, %v736
  %v749 = vadd.f32 %v678, %v736
  %v750 = vadd.f32 %v679, %v736
  %v751 = vadd.f32 %v680, %v736
  %v752 = vadd.f32 %v681, %v736
  %v753 = vadd.f32 %v682, %v736
  %v754 = vadd.f32 %v683, %v736
  %v755 = vadd.f32 %v684, %v736
  %v756 = vadd.f32 %v685, %v736
  %v757 = vadd.f32 %v686, %v736
  %v758 = vadd.f32 %v687, %v736
  %v759 = vadd.f32 %v688, %v736
  %v760 = vadd.f32 %v689, %v736
  %v761 = vadd.f32 %v690, %v736
  %v762 = vadd.f32 %v691, %v736
  %v763 = vadd.f32 %v692, %v736
  %v764 = vadd.f32 %v693, %v736
  %v765 = vadd.f32 %v694, %v736
  %v766 = vadd.f32 %v695, %v736
  %v767 = vadd.f32 %v696, %v736
  %v768 = vadd.f32 %v697, %v736
  %v769 = vadd.f32 %v698, %v736
  %v770 = vadd.f32 %v699, %v736
  %v771 = vadd.f32 %v700, %v736
  %v772 = vadd.f32 %v701, %v736
  %v773 = vadd.f32 %v702, %v736
  %v774 = vadd.f32 %v703, %v736
  %v775 = vadd.f32 %v704, %v736
  %v776 = vadd.f32 %v705, %v736
  %v777 = vadd.f32 %v706, %v736
  %v778 = vadd.f32 %v707, %v736
  %v779 = vadd.f32 %v708, %v736
  %v780 = vadd.f32 %v709, %v736
  %v781 = vadd.f32 %v710, %v736
  %v782 = vadd.f32 %v711, %v736
  %v783 = vadd.f32 %v712, %v736
  %v784 = vadd.f32 %v713, %v736
  %v785 = vadd.f32 %v714, %v736
  %v786 = vadd.f32 %v715, %v736
  %v787 = vadd.f32 %v716, %v736
  %v788 = vadd.f32 %v717, %v736
  %v789 = vadd.f32 %v718, %v736
  %v790 = vadd.f32 %v719, %v736
  %v791 = vadd.f32 %v720, %v736
  %v792 = vadd.f32 %v721, %v736
  %v793 = vadd.f32 %v722, %v736
  %v794 = vadd.f32 %v723, %v736
  %v795 = vadd.f32 %v724, %v736
  %v796 = vadd.f32 %v725, %v736
  %v797 = vadd.f32 %v726, %v736
  %v798 = vadd.f32 %v727, %v736
  %v799 = vadd.f32 %v728, %v736
  %v800 = vadd.f32 %v729, %v736
  %v801 = vadd.f32 %v730, %v736
  %v802 = vmax.f32 %v738, 0.0
  %v803 = vmax.f32 %v739, 0.0
  %v804 = vmax.f32 %v740, 0.0
  %v805 = vmax.f32 %v741, 0.0
  %v806 = vmax.f32 %v742, 0.0
  %v807 = vmax.f32 %v743, 0.0
  %v808 = vmax.f32 %v744, 0.0
  %v809 = vmax.f32 %v745, 0.0
  %v810 = vmax.f32 %v746, 0.0
  %v811 = vmax.f32 %v747, 0.0
  %v812 = vmax.f32 %v748, 0.0
  %v813 = vmax.f32 %v749, 0.0
  %v814 = vmax.f32 %v750, 0.0
  %v815 = vmax.f32 %v751, 0.0
  %v816 = vmax.f32 %v752, 0.0
  %v817 = vmax.f32 %v753, 0.0
  %v818 = vmax.f32 %v754, 0.0
  %v819 = vmax.f32 %v755, 0.0
  %v820 = vmax.f32 %v756, 0.0
  %v821 = vmax.f32 %v757, 0.0
  %v822 = vmax.f32 %v758, 0.0
  %v823 = vmax.f32 %v759, 0.0
  %v824 = vmax.f32 %v760, 0.0
  %v825 = vmax.f32 %v761, 0.0
  %v826 = vmax.f32 %v762, 0.0
  %v827 = vmax.f32 %v763, 0.0
  %v828 = vmax.f32 %v764, 0.0
  %v829 = vmax.f32 %v765, 0.0
  %v830 = vmax.f32 %v766, 0.0
  %v831 = vmax.f32 %v767, 0.0
  %v832 = vmax.f32 %v768, 0.0
  %v833 = vmax.f32 %v769, 0.0
  %v834 = vmax.f32 %v770, 0.0
  %v835 = vmax.f32 %v771, 0.0
  %v836 = vmax.f32 %v772, 0.0
  %v837 = vmax.f32 %v773, 0.0
  %v838 = vmax.f32 %v774, 0.0
  %v839 = vmax.f32 %v775, 0.0
  %v840 = vmax.f32 %v776, 0.0
  %v841 = vmax.f32 %v777, 0.0
  %v842 = vmax.f32 %v778, 0.0
  %v843 = vmax.f32 %v779, 0.0
  %v844 = vmax.f32 %v780, 0.0
  %v845 = vmax.f32 %v781, 0.0
  %v846 = vmax.f32 %v782, 0.0
  %v847 = vmax.f32 %v783, 0.0
  %v848 = vmax.f32 %v784, 0.0
  %v849 = vmax.f32 %v785, 0.0
  %v850 = vmax.f32 %v786, 0.0
  %v851 = vmax.f32 %v787, 0.0
  %v852 = vmax.f32 %v788, 0.0
  %v853 = vmax.f32 %v789, 0.0
  %v854 = vmax.f32 %v790, 0.0
  %v855 = vmax.f32 %v791, 0.0
  %v856 = vmax.f32 %v792, 0.0
  %v857 = vmax.f32 %v793, 0.0
  %v858 = vmax.f32 %v794, 0.0
  %v859 = vmax.f32 %v795, 0.0
  %v860 = vmax.f32 %v796, 0.0
  %v861 = vmax.f32 %v797, 0.0
  %v862 = vmax.f32 %v798, 0.0
  %v863 = vmax.f32 %v799, 0.0
  %v864 = vmax.f32 %v800, 0.0
  %v865 = vmax.f32 %v801, 0.0
  %866 = vst [vmem:[%s4] sm:$0xff] %v802
  %867 = vst [vmem:[%s4 + $0x8] sm:$0xff] %v803
  %868 = vst [vmem:[%s4 + $0x10] sm:$0xff] %v804
  %869 = vst [vmem:[%s4 + $0x18] sm:$0xff] %v805
  %870 = vst [vmem:[%s4 + $0x20] sm:$0xff] %v806
  %871 = vst [vmem:[%s4 + $0x28] sm:$0xff] %v807
  %872 = vst [vmem:[%s4 + $0x30] sm:$0xff] %v808
  %873 = vst [vmem:[%s4 + $0x38] sm:$0xff] %v809
  %874 = vst [vmem:[%s4 + $0x40] sm:$0xff] %v810
  %875 = vst [vmem:[%s4 + $0x48] sm:$0xff] %v811
  %876 = vst [vmem:[%s4 + $0x50] sm:$0xff] %v812
  %877 = vst [vmem:[%s4 + $0x58] sm:$0xff] %v813
  %878 = vst [vmem:[%s4 + $0x60] sm:$0xff] %v814
  %879 = vst [vmem:[%s4 + $0x68] sm:$0xff] %v815
  %880 = vst [vmem:[%s4 + $0x70] sm:$0xff] %v816
  %881 = vst [vmem:[%s4 + $0x78] sm:$0xff] %v817
  %882 = vst [vmem:[%s4 + $0x80] sm:$0xff] %v818
  %883 = vst [vmem:[%s4 + $0x88] sm:$0xff] %v819
  %884 = vst [vmem:[%s4 + $0x90] sm:$0xff] %v820
  %885 = vst [vmem:[%s4 + $0x98] sm:$0xff] %v821
  %886 = vst [vmem:[%s4 + $0xa0] sm:$0xff] %v822
  %887 = vst [vmem:[%s4 + $0xa8] sm:$0xff] %v823
  %888 = vst [vmem:[%s4 + $0xb0] sm:$0xff] %v824
  %889 = vst [vmem:[%s4 + $0xb8] sm:$0xff] %v825
  %890 = vst [vmem:[%s4 + $0xc0] sm:$0xff] %v826
  %891 = vst [vmem:[%s4 + $0xc8] sm:$0xff] %v827
  %892 = vst [vmem:[%s4 + $0xd0] sm:$0xff] %v828
  %893 = vst [vmem:[%s4 + $0xd8] sm:$0xff] %v829
  %894 = vst [vmem:[%s4 + $0xe0] sm:$0xff] %v830
  %895 = vst [vmem:[%s4 + $0xe8] sm:$0xff] %v831
  %896 = vst [vmem:[%s4 + $0xf0] sm:$0xff] %v832
  %897 = vst [vmem:[%s4 + $0xf8] sm:$0xff] %v833
  %898 = vst [vmem:[%s4 + $0x100] sm:$0xff] %v834
  %899 = vst [vmem:[%s4 + $0x108] sm:$0xff] %v835
  %900 = vst [vmem:[%s4 + $0x110] sm:$0xff] %v836
  %901 = vst [vmem:[%s4 + $0x118] sm:$0xff] %v837
  %902 = vst [vmem:[%s4 + $0x120] sm:$0xff] %v838
  %903 = vst [vmem:[%s4 + $0x128] sm:$0xff] %v839
  %904 = vst [vmem:[%s4 + $0x130] sm:$0xff] %v840
  %905 = vst [vmem:[%s4 + $0x138] sm:$0xff] %v841
  %906 = vst [vmem:[%s4 + $0x140] sm:$0xff] %v842
  %907 = vst [vmem:[%s4 + $0x148] sm:$0xff] %v843
  %908 = vst [vmem:[%s4 + $0x150] sm:$0xff] %v844
  %909 = vst [vmem:[%s4 + $0x158] sm:$0xff] %v845
  %910 = vst [vmem:[%s4 + $0x160] sm:$0xff] %v846
  %911 = vst [vmem:[%s4 + $0x168] sm:$0xff] %v847
  %912 = vst [vmem:[%s4 + $0x170] sm:$0xff] %v848
  %913 = vst [vmem:[%s4 + $0x178] sm:$0xff] %v849
  %914 = vst [vmem:[%s4 + $0x180] sm:$0xff] %v850
  %915 = vst [vmem:[%s4 + $0x188] sm:$0xff] %v851
  %916 = vst [vmem:[%s4 + $0x190] sm:$0xff] %v852
  %917 = vst [vmem:[%s4 + $0x198] sm:$0xff] %v853
  %918 = vst [vmem:[%s4 + $0x1a0] sm:$0xff] %v854
  %919 = vst [vmem:[%s4 + $0x1a8] sm:$0xff] %v855
  %920 = vst [vmem:[%s4 + $0x1b0] sm:$0xff] %v856
  %921 = vst [vmem:[%s4 + $0x1b8] sm:$0xff] %v857
  %922 = vst [vmem:[%s4 + $0x1c0] sm:$0xff] %v858
  %923 = vst [vmem:[%s4 + $0x1c8] sm:$0xff] %v859
  %924 = vst [vmem:[%s4 + $0x1d0] sm:$0xff] %v860
  %925 = vst [vmem:[%s4 + $0x1d8] sm:$0xff] %v861
  %926 = vst [vmem:[%s4 + $0x1e0] sm:$0xff] %v862
  %927 = vst [vmem:[%s4 + $0x1e8] sm:$0xff] %v863
  %928 = vst [vmem:[%s4 + $0x1f0] sm:$0xff] %v864
  %929 = vst [vmem:[%s4 + $0x1f8] sm:$0xff] %v865
  // Predicated region
  $region18: #{pyramid_pooling_forward.19} parent=0 // pred_check
    _
  $region19: #{pyramid_pooling_forward.19} parent=0 // pred_check_branch
    %931 = sbr.rel (0) target = $region21
  $region20: #{pyramid_pooling_forward.19} parent=0 // pred_region
    _
  $region21: #{pyramid_pooling_forward.19} parent=0 // pred_fallthru
    _
  // Predicated region
  $region22: #{pyramid_pooling_forward.19} parent=0 // pred_check
    _
  $region23: #{pyramid_pooling_forward.19} parent=0 // pred_check_branch
    %933 = sbr.rel (0) target = $region25
  $region24: #{pyramid_pooling_forward.19} parent=0 // pred_region
    _
  $region25: #{pyramid_pooling_forward.19} parent=0 // pred_fallthru
    _

</llo_original>
